<compile_context>
chip_gen: v7x
topology: tpu7x:2x2x1
jax: 0.10.0
libtpu: 0.0.40
codegen_flags: <defaults>
</compile_context>

<pallas_src>
import math
import functools

import jax
import jax.numpy as jnp
from jax.experimental import pallas as pl
from jax.experimental.pallas import tpu as pltpu


# ----------------------------------------------------------------------------- kernel
def _fusion_kernel(q_ref, kv_ref, wqkv_ref, wo_ref, bqkv_ref, obg_ref, out_ref,
                   *, num_heads: int, batch_tile: int, seq_len: int,
                   kv_len: int, eps: float = 1e-5):
    H, Bt, S, L = num_heads, batch_tile, seq_len, kv_len
    D = q_ref.shape[-1]
    Dh = D // H
    M = Bt * S            # query rows in this block
    N = Bt * L            # key/value rows in this block

    f32 = jnp.float32
    q = q_ref[...].astype(f32)                     # (M, D)
    kv = kv_ref[...].astype(f32)                   # (N, D)
    obg = obg_ref[...].astype(f32)                 # (3, D)  [bo | gamma | beta]
    bo, gamma, beta = obg[0:1, :], obg[1:2, :], obg[2:3, :]

    # ---- per-head cross-attention, unrolled at trace time -------------------
    # wqkv_ref: (3H, D, Dh) = [Wq*scale | Wk | Wv] pre-transposed, per head
    # bqkv_ref: (3H, 1, Dh) = [bq*scale | bk | bv]
    # wo_ref  : (H, Dh, D)  = Wo^T split by head rows
    # No (H, M, D) broadcast copies: every head re-uses the resident q/kv tiles.
    proj = jnp.zeros((M, D), f32)
    for h in range(H):
        Qh = jnp.dot(q, wqkv_ref[h].astype(f32),
                     preferred_element_type=f32) + bqkv_ref[h].astype(f32)          # (M, Dh)
        Kh = jnp.dot(kv, wqkv_ref[H + h].astype(f32),
                     preferred_element_type=f32) + bqkv_ref[H + h].astype(f32)      # (N, Dh)
        Vh = jnp.dot(kv, wqkv_ref[2 * H + h].astype(f32),
                     preferred_element_type=f32) + bqkv_ref[2 * H + h].astype(f32)  # (N, Dh)

        # leading-dim-only reshapes (last dim untouched -> no relayout)
        Qb = Qh.reshape(Bt, S, Dh)
        Kb = Kh.reshape(Bt, L, Dh)
        Vb = Vh.reshape(Bt, L, Dh)

        # scaled-dot-product attention (scale already folded into Wq/bq)
        s = jnp.einsum('bse,ble->bsl', Qb, Kb, preferred_element_type=f32)   # (Bt, S, L)
        s = s - jnp.max(s, axis=-1, keepdims=True)
        p = jnp.exp(s)
        denom = jnp.sum(p, axis=-1, keepdims=True)                           # (Bt, S, 1)
        o = jnp.einsum('bsl,ble->bse', p, Vb, preferred_element_type=f32)    # (Bt, S, Dh)
        o = o * pl.reciprocal(denom, approx=False)   # rescale S*Dh values instead of S*L

        # per-head output projection, accumulated over heads (no concat)
        proj = proj + jnp.dot(o.reshape(M, Dh), wo_ref[h].astype(f32),
                              preferred_element_type=f32)                    # (M, D)

    # ---- residual + LayerNorm over the feature axis --------------------------
    res = q + proj + bo
    mean = jnp.mean(res, axis=-1, keepdims=True)
    cent = res - mean
    var = jnp.mean(cent * cent, axis=-1, keepdims=True)
    out = cent * jax.lax.rsqrt(var + eps) * gamma + beta

    out_ref[...] = out.astype(out_ref.dtype)


# ----------------------------------------------------------------------------- wrapper
def _padded_bytes(lead, rows, cols, itemsize=4):
    rows_p = -(-rows // 8) * 8
    cols_p = -(-cols // 128) * 128
    return lead * rows_p * cols_p * itemsize


def _pick_batch_tile(bs, S, L, D, H, vmem_budget=12 * 1024 * 1024, max_rows=1024):
    """Largest divisor of bs whose per-step working set fits a VMEM budget.
    Bigger tiles feed the MXU with M = Bt*S rows and amortize grid overhead.
    (Per-head unrolling means the working set no longer scales with H.)"""
    Dh = max(D // H, 1)
    candidates = [bt for bt in range(1, bs + 1)
                  if bs % bt == 0
                  and (bt == bs or ((bt * S) % 8 == 0 and (bt * L) % 8 == 0))]
    best = candidates[0]          # smallest legal tile is always a valid fallback
    for bt in candidates:
        M, N = bt * S, bt * L
        est = (2 * (2 * _padded_bytes(1, M, D) + _padded_bytes(1, N, D))    # dbl-buffered q/kv/out IO
               + 4 * _padded_bytes(1, M, D) + _padded_bytes(1, N, D)        # f32 q/proj/res/out, kv
               + 2 * _padded_bytes(1, M, Dh) + 3 * _padded_bytes(1, N, Dh)  # per-head Q/o, K/V temporaries
               + 2 * _padded_bytes(bt, S, L))                               # scores / probs
        if est <= vmem_budget and M <= max_rows:
            best = max(best, bt)
    return best


def _prepare_params(params, num_heads, embed_dim):
    """One-time wrapper-side layout work: transpose, per-head split, scale fold, pack."""
    wq, wk, wv, bq, bk, bv, wo, bo, gamma, beta = params
    D, H = embed_dim, num_heads
    Dh = D // H
    scale = 1.0 / math.sqrt(Dh)
    f32 = jnp.float32

    def split_cols(w, s=1.0):                       # (D, D) -> w.T split by out-cols: (H, D, Dh)
        return (jnp.transpose(w).reshape(D, H, Dh).transpose(1, 0, 2) * s).astype(f32)

    wqkv3 = jnp.concatenate(
        [split_cols(wq, scale), split_cols(wk), split_cols(wv)], axis=0)   # (3H, D, Dh)
    wo3 = jnp.transpose(wo).reshape(H, Dh, D).astype(f32)                  # (H, Dh, D)

    def bias3(b, s=1.0):
        return (jnp.reshape(b, (D,)).reshape(H, 1, Dh) * s).astype(f32)

    bqkv3 = jnp.concatenate([bias3(bq, scale), bias3(bk), bias3(bv)], axis=0)  # (3H, 1, Dh)
    obg = jnp.stack([jnp.reshape(bo, (D,)), jnp.reshape(gamma, (D,)),
                     jnp.reshape(beta, (D,))], axis=0).astype(f32)             # (3, D)
    return wqkv3, wo3, bqkv3, obg


def fusion_transformer_forward(cls_embeds, prompt_embeds, params,
                               *, seq_len: int, num_heads: int):
    """cls_embeds: (bs*seq_len, D); prompt_embeds: (bs*seq_len*seq_len, D)."""
    D = cls_embeds.shape[-1]
    assert D % num_heads == 0, "embed_dim must be divisible by num_heads"
    assert cls_embeds.shape[0] % seq_len == 0
    bs = cls_embeds.shape[0] // seq_len
    L = seq_len * seq_len
    assert prompt_embeds.shape == (bs * L, D)

    H = num_heads
    Dh = D // H
    Bt = _pick_batch_tile(bs, seq_len, L, D, H)
    num_groups = bs // Bt

    wqkv3, wo3, bqkv3, obg = _prepare_params(params, H, D)

    kernel = functools.partial(_fusion_kernel, num_heads=H, batch_tile=Bt,
                               seq_len=seq_len, kv_len=L)

    out = pl.pallas_call(
        kernel,
        out_shape=jax.ShapeDtypeStruct((bs * seq_len, D), cls_embeds.dtype),
        grid_spec=pltpu.PrefetchScalarGridSpec(
            num_scalar_prefetch=0,
            grid=(num_groups,),
            in_specs=[
                pl.BlockSpec((Bt * seq_len, D), lambda g: (g, 0)),   # q rows of this group
                pl.BlockSpec((Bt * L, D), lambda g: (g, 0)),         # kv rows of this group
                pl.BlockSpec((3 * H, D, Dh), lambda g: (0, 0, 0)),   # packed Wq*s|Wk|Wv (pre-T, per-head)
                pl.BlockSpec((H, Dh, D), lambda g: (0, 0, 0)),       # Wo^T split by head rows
                pl.BlockSpec((3 * H, 1, Dh), lambda g: (0, 0, 0)),   # packed bq*s|bk|bv
                pl.BlockSpec((3, D), lambda g: (0, 0)),              # packed bo|gamma|beta
            ],
            out_specs=pl.BlockSpec((Bt * seq_len, D), lambda g: (g, 0)),
        ),
        compiler_params=pltpu.CompilerParams(
            dimension_semantics=("parallel",),
            vmem_limit_bytes=32 * 1024 * 1024),
    )(cls_embeds, prompt_embeds, wqkv3, wo3, bqkv3, obg)

    return out


# ----------------------------------------------------------------------------- reference / params
def _reference_forward(cls_embeds, prompt_embeds, params, *, seq_len, num_heads):
    # Pure-JAX reference of the (intended) PyTorch forward, for correctness check.
    D = cls_embeds.shape[-1]
    bs = cls_embeds.shape[0] // seq_len
    L = seq_len * seq_len
    Dh = D // num_heads
    wq, wk, wv, bq, bk, bv, wo, bo, gamma, beta = params

    q = cls_embeds.reshape(bs, seq_len, D)
    kv = prompt_embeds.reshape(bs, L, D)
    Q = q @ wq.T + bq[0]
    K = kv @ wk.T + bk[0]
    V = kv @ wv.T + bv[0]
    Qh = Q.reshape(bs, seq_len, num_heads, Dh).transpose(0, 2, 1, 3)
    Kh = K.reshape(bs, L, num_heads, Dh).transpose(0, 2, 1, 3)
    Vh = V.reshape(bs, L, num_heads, Dh).transpose(0, 2, 1, 3)
    s = jnp.einsum("bhsd,bhld->bhsl", Qh, Kh) / math.sqrt(Dh)
    p = jax.nn.softmax(s, axis=-1)
    o = jnp.einsum("bhsl,bhld->bhsd", p, Vh)
    o = o.transpose(0, 2, 1, 3).reshape(bs, seq_len, D)
    proj = o @ wo.T + bo[0]
    res = q + proj
    mean = res.mean(-1, keepdims=True)
    var = ((res - mean) ** 2).mean(-1, keepdims=True)
    out = (res - mean) / jnp.sqrt(var + 1e-5) * gamma[0] + beta[0]
    return out.reshape(bs * seq_len, D)


def make_params(key, embed_dim):
    # Deterministic synthetic parameters (shapes follow nn.MultiheadAttention +
    # LayerNorm(embed_dim)).  Random init is used so the attention path is
    # actually exercised; the module's own eye_/zero init would make the
    # k/v projections all-zero and the attention output degenerate.
    D = embed_dim
    ks = jax.random.split(key, 4)
    wq = 0.05 * jax.random.normal(ks[0], (D, D), jnp.float32)
    wk = 0.05 * jax.random.normal(ks[1], (D, D), jnp.float32)
    wv = 0.05 * jax.random.normal(ks[2], (D, D), jnp.float32)
    wo = 0.05 * jax.random.normal(ks[3], (D, D), jnp.float32)
    bq = jnp.zeros((1, D), jnp.float32)
    bk = jnp.zeros((1, D), jnp.float32)
    bv = jnp.zeros((1, D), jnp.float32)
    bo = jnp.zeros((1, D), jnp.float32)
    gamma = jnp.ones((1, D), jnp.float32)   # LayerNorm default affine
    beta = jnp.zeros((1, D), jnp.float32)
    return (wq, wk, wv, bq, bk, bv, wo, bo, gamma, beta)


if __name__ == "__main__":
    # Small shapes consistent with the forward pass.
    embed_dim = 32
    num_heads = 4
    seq_len = 8
    bs = 2

    key = jax.random.PRNGKey(0)
    k1, k2, k3 = jax.random.split(key, 3)
    cls_embeds = jax.random.normal(k1, (bs * seq_len, embed_dim), jnp.float32)
    prompt_embeds = jax.random.normal(
        k2, (bs * seq_len * seq_len, embed_dim), jnp.float32)
    params = make_params(k3, embed_dim)

    out = fusion_transformer_forward(
        cls_embeds, prompt_embeds, params, seq_len=seq_len, num_heads=num_heads)
    out = jax.block_until_ready(out)

    ref = _reference_forward(
        cls_embeds, prompt_embeds, params, seq_len=seq_len, num_heads=num_heads)
    assert out.shape == (bs * seq_len, embed_dim)
    assert jnp.allclose(out, ref, atol=1e-4, rtol=1e-4), "mismatch vs reference"

    print("KERNEL_OK")
</pallas_src>

<mosaic_0001>
module attributes {stable_mosaic.version = 11 : i64} {
  func.func @_fusion_kernel(%arg0: i32, %arg1: memref<16x32xf32, #tpu.memory_space<vmem>>, %arg2: memref<128x32xf32, #tpu.memory_space<vmem>>, %arg3: memref<12x32x8xf32, #tpu.memory_space<vmem>>, %arg4: memref<4x8x32xf32, #tpu.memory_space<vmem>>, %arg5: memref<12x1x8xf32, #tpu.memory_space<vmem>>, %arg6: memref<3x32xf32, #tpu.memory_space<vmem>>, %arg7: memref<16x32xf32, #tpu.memory_space<vmem>>) attributes {dimension_semantics = [#tpu.dimension_semantics<parallel>], iteration_bounds = array<i64: 1>, scalar_prefetch = 0 : i64, scratch_operands = 0 : i64, tpu.core_type = #tpu.core_type<tc>, window_params = [{transform_indices = @transform_0, window_bounds = array<i64: 16, 32>}, {transform_indices = @transform_1, window_bounds = array<i64: 128, 32>}, {pipeline_mode = #tpu.pipeline_mode<synchronous>, transform_indices = @transform_2, window_bounds = array<i64: 12, 32, 8>}, {pipeline_mode = #tpu.pipeline_mode<synchronous>, transform_indices = @transform_3, window_bounds = array<i64: 4, 8, 32>}, {pipeline_mode = #tpu.pipeline_mode<synchronous>, transform_indices = @transform_4, window_bounds = array<i64: 12, 1, 8>}, {pipeline_mode = #tpu.pipeline_mode<synchronous>, transform_indices = @transform_5, window_bounds = array<i64: 3, 32>}, {transform_indices = @transform_6, window_bounds = array<i64: 16, 32>}]} {
    %c0 = arith.constant 0 : index
    %c0_0 = arith.constant 0 : index
    %0 = vector.load %arg1[%c0, %c0_0] : memref<16x32xf32, #tpu.memory_space<vmem>>, vector<16x32xf32>
    %c0_1 = arith.constant 0 : index
    %c0_2 = arith.constant 0 : index
    %1 = vector.load %arg2[%c0_1, %c0_2] : memref<128x32xf32, #tpu.memory_space<vmem>>, vector<128x32xf32>
    %c0_3 = arith.constant 0 : index
    %c0_4 = arith.constant 0 : index
    %2 = vector.load %arg6[%c0_3, %c0_4] : memref<3x32xf32, #tpu.memory_space<vmem>>, vector<3x32xf32>
    %3 = vector.extract_strided_slice %2 {offsets = [0, 0], sizes = [1, 32], strides = [1, 1]} : vector<3x32xf32> to vector<1x32xf32>
    %4 = vector.extract_strided_slice %2 {offsets = [1, 0], sizes = [1, 32], strides = [1, 1]} : vector<3x32xf32> to vector<1x32xf32>
    %5 = vector.extract_strided_slice %2 {offsets = [2, 0], sizes = [1, 32], strides = [1, 1]} : vector<3x32xf32> to vector<1x32xf32>
    %cst = arith.constant 0.000000e+00 : f32
    %6 = vector.broadcast %cst : f32 to vector<16x32xf32>
    %c0_5 = arith.constant 0 : index
    %c0_6 = arith.constant 0 : index
    %c0_7 = arith.constant 0 : index
    %7 = vector.load %arg3[%c0_5, %c0_6, %c0_7] : memref<12x32x8xf32, #tpu.memory_space<vmem>>, vector<1x32x8xf32>
    %8 = vector.shape_cast %7 : vector<1x32x8xf32> to vector<32x8xf32>
    %cst_8 = arith.constant dense<0.000000e+00> : vector<16x8xf32>
    %9 = tpu.matmul %0, %8, %cst_8 {dimension_numbers = #tpu.dot_dimension_numbers<[1], [0], [0], [1], [0, 0, 1, 1], [], []>} : vector<16x32xf32>, vector<32x8xf32>, vector<16x8xf32> -> vector<16x8xf32>
    %c0_9 = arith.constant 0 : index
    %c0_10 = arith.constant 0 : index
    %c0_11 = arith.constant 0 : index
    %10 = vector.load %arg5[%c0_9, %c0_10, %c0_11] : memref<12x1x8xf32, #tpu.memory_space<vmem>>, vector<1x1x8xf32>
    %11 = vector.shape_cast %10 : vector<1x1x8xf32> to vector<1x8xf32>
    %12 = vector.broadcast %11 : vector<1x8xf32> to vector<16x8xf32>
    %13 = arith.addf %9, %12 : vector<16x8xf32>
    %c4 = arith.constant 4 : index
    %c0_12 = arith.constant 0 : index
    %c0_13 = arith.constant 0 : index
    %14 = vector.load %arg3[%c4, %c0_12, %c0_13] : memref<12x32x8xf32, #tpu.memory_space<vmem>>, vector<1x32x8xf32>
    %15 = vector.shape_cast %14 : vector<1x32x8xf32> to vector<32x8xf32>
    %cst_14 = arith.constant dense<0.000000e+00> : vector<128x8xf32>
    %16 = tpu.matmul %1, %15, %cst_14 {dimension_numbers = #tpu.dot_dimension_numbers<[1], [0], [0], [1], [0, 0, 1, 1], [], []>} : vector<128x32xf32>, vector<32x8xf32>, vector<128x8xf32> -> vector<128x8xf32>
    %c4_15 = arith.constant 4 : index
    %c0_16 = arith.constant 0 : index
    %c0_17 = arith.constant 0 : index
    %17 = vector.load %arg5[%c4_15, %c0_16, %c0_17] : memref<12x1x8xf32, #tpu.memory_space<vmem>>, vector<1x1x8xf32>
    %18 = vector.shape_cast %17 : vector<1x1x8xf32> to vector<1x8xf32>
    %19 = vector.broadcast %18 : vector<1x8xf32> to vector<128x8xf32>
    %20 = arith.addf %16, %19 : vector<128x8xf32>
    %c8 = arith.constant 8 : index
    %c0_18 = arith.constant 0 : index
    %c0_19 = arith.constant 0 : index
    %21 = vector.load %arg3[%c8, %c0_18, %c0_19] : memref<12x32x8xf32, #tpu.memory_space<vmem>>, vector<1x32x8xf32>
    %22 = vector.shape_cast %21 : vector<1x32x8xf32> to vector<32x8xf32>
    %cst_20 = arith.constant dense<0.000000e+00> : vector<128x8xf32>
    %23 = tpu.matmul %1, %22, %cst_20 {dimension_numbers = #tpu.dot_dimension_numbers<[1], [0], [0], [1], [0, 0, 1, 1], [], []>} : vector<128x32xf32>, vector<32x8xf32>, vector<128x8xf32> -> vector<128x8xf32>
    %c8_21 = arith.constant 8 : index
    %c0_22 = arith.constant 0 : index
    %c0_23 = arith.constant 0 : index
    %24 = vector.load %arg5[%c8_21, %c0_22, %c0_23] : memref<12x1x8xf32, #tpu.memory_space<vmem>>, vector<1x1x8xf32>
    %25 = vector.shape_cast %24 : vector<1x1x8xf32> to vector<1x8xf32>
    %26 = vector.broadcast %25 : vector<1x8xf32> to vector<128x8xf32>
    %27 = arith.addf %23, %26 : vector<128x8xf32>
    %28 = vector.shape_cast %13 : vector<16x8xf32> to vector<2x8x8xf32>
    %29 = vector.shape_cast %20 : vector<128x8xf32> to vector<2x64x8xf32>
    %30 = vector.shape_cast %27 : vector<128x8xf32> to vector<2x64x8xf32>
    "tpu.trace_start"() <{level = 10 : i32, message = "bse,ble->bsl"}> : () -> ()
    %cst_24 = arith.constant dense<0.000000e+00> : vector<2x8x64xf32>
    %31 = tpu.matmul %28, %29, %cst_24 {dimension_numbers = #tpu.dot_dimension_numbers<[2], [2], [1], [1], [0, 0, 0, 1, 1, 1], [0], [0]>} : vector<2x8x8xf32>, vector<2x64x8xf32>, vector<2x8x64xf32> -> vector<2x8x64xf32>
    "tpu.trace_stop"() : () -> ()
    %cst_25 = arith.constant dense<0xFF800000> : vector<2x8xf32>
    %32 = vector.multi_reduction <maximumf>, %31, %cst_25 [2] : vector<2x8x64xf32> to vector<2x8xf32>
    %33 = vector.shape_cast %32 : vector<2x8xf32> to vector<2x8x1xf32>
    %34 = vector.broadcast %33 : vector<2x8x1xf32> to vector<2x8x64xf32>
    %35 = arith.subf %31, %34 : vector<2x8x64xf32>
    %36 = math.exp %35 : vector<2x8x64xf32>
    %cst_26 = arith.constant dense<0.000000e+00> : vector<2x8xf32>
    %37 = vector.multi_reduction <add>, %36, %cst_26 [2] : vector<2x8x64xf32> to vector<2x8xf32>
    %38 = vector.shape_cast %37 : vector<2x8xf32> to vector<2x8x1xf32>
    "tpu.trace_start"() <{level = 10 : i32, message = "bsl,ble->bse"}> : () -> ()
    %cst_27 = arith.constant dense<0.000000e+00> : vector<2x8x8xf32>
    %39 = tpu.matmul %36, %30, %cst_27 {dimension_numbers = #tpu.dot_dimension_numbers<[2], [1], [1], [2], [0, 0, 0, 1, 1, 2], [0], [0]>} : vector<2x8x64xf32>, vector<2x64x8xf32>, vector<2x8x8xf32> -> vector<2x8x8xf32>
    "tpu.trace_stop"() : () -> ()
    %40 = tpu.reciprocal %38 : vector<2x8x1xf32> -> vector<2x8x1xf32>
    %41 = vector.broadcast %40 : vector<2x8x1xf32> to vector<2x8x8xf32>
    %42 = arith.mulf %39, %41 : vector<2x8x8xf32>
    %43 = vector.shape_cast %42 : vector<2x8x8xf32> to vector<16x8xf32>
    %c0_28 = arith.constant 0 : index
    %c0_29 = arith.constant 0 : index
    %c0_30 = arith.constant 0 : index
    %44 = vector.load %arg4[%c0_28, %c0_29, %c0_30] : memref<4x8x32xf32, #tpu.memory_space<vmem>>, vector<1x8x32xf32>
    %45 = vector.shape_cast %44 : vector<1x8x32xf32> to vector<8x32xf32>
    %cst_31 = arith.constant dense<0.000000e+00> : vector<16x32xf32>
    %46 = tpu.matmul %43, %45, %cst_31 {dimension_numbers = #tpu.dot_dimension_numbers<[1], [0], [0], [1], [0, 0, 1, 1], [], []>} : vector<16x8xf32>, vector<8x32xf32>, vector<16x32xf32> -> vector<16x32xf32>
    %47 = arith.addf %6, %46 : vector<16x32xf32>
    %c1 = arith.constant 1 : index
    %c0_32 = arith.constant 0 : index
    %c0_33 = arith.constant 0 : index
    %48 = vector.load %arg3[%c1, %c0_32, %c0_33] : memref<12x32x8xf32, #tpu.memory_space<vmem>>, vector<1x32x8xf32>
    %49 = vector.shape_cast %48 : vector<1x32x8xf32> to vector<32x8xf32>
    %cst_34 = arith.constant dense<0.000000e+00> : vector<16x8xf32>
    %50 = tpu.matmul %0, %49, %cst_34 {dimension_numbers = #tpu.dot_dimension_numbers<[1], [0], [0], [1], [0, 0, 1, 1], [], []>} : vector<16x32xf32>, vector<32x8xf32>, vector<16x8xf32> -> vector<16x8xf32>
    %c1_35 = arith.constant 1 : index
    %c0_36 = arith.constant 0 : index
    %c0_37 = arith.constant 0 : index
    %51 = vector.load %arg5[%c1_35, %c0_36, %c0_37] : memref<12x1x8xf32, #tpu.memory_space<vmem>>, vector<1x1x8xf32>
    %52 = vector.shape_cast %51 : vector<1x1x8xf32> to vector<1x8xf32>
    %53 = vector.broadcast %52 : vector<1x8xf32> to vector<16x8xf32>
    %54 = arith.addf %50, %53 : vector<16x8xf32>
    %c5 = arith.constant 5 : index
    %c0_38 = arith.constant 0 : index
    %c0_39 = arith.constant 0 : index
    %55 = vector.load %arg3[%c5, %c0_38, %c0_39] : memref<12x32x8xf32, #tpu.memory_space<vmem>>, vector<1x32x8xf32>
    %56 = vector.shape_cast %55 : vector<1x32x8xf32> to vector<32x8xf32>
    %cst_40 = arith.constant dense<0.000000e+00> : vector<128x8xf32>
    %57 = tpu.matmul %1, %56, %cst_40 {dimension_numbers = #tpu.dot_dimension_numbers<[1], [0], [0], [1], [0, 0, 1, 1], [], []>} : vector<128x32xf32>, vector<32x8xf32>, vector<128x8xf32> -> vector<128x8xf32>
    %c5_41 = arith.constant 5 : index
    %c0_42 = arith.constant 0 : index
    %c0_43 = arith.constant 0 : index
    %58 = vector.load %arg5[%c5_41, %c0_42, %c0_43] : memref<12x1x8xf32, #tpu.memory_space<vmem>>, vector<1x1x8xf32>
    %59 = vector.shape_cast %58 : vector<1x1x8xf32> to vector<1x8xf32>
    %60 = vector.broadcast %59 : vector<1x8xf32> to vector<128x8xf32>
    %61 = arith.addf %57, %60 : vector<128x8xf32>
    %c9 = arith.constant 9 : index
    %c0_44 = arith.constant 0 : index
    %c0_45 = arith.constant 0 : index
    %62 = vector.load %arg3[%c9, %c0_44, %c0_45] : memref<12x32x8xf32, #tpu.memory_space<vmem>>, vector<1x32x8xf32>
    %63 = vector.shape_cast %62 : vector<1x32x8xf32> to vector<32x8xf32>
    %cst_46 = arith.constant dense<0.000000e+00> : vector<128x8xf32>
    %64 = tpu.matmul %1, %63, %cst_46 {dimension_numbers = #tpu.dot_dimension_numbers<[1], [0], [0], [1], [0, 0, 1, 1], [], []>} : vector<128x32xf32>, vector<32x8xf32>, vector<128x8xf32> -> vector<128x8xf32>
    %c9_47 = arith.constant 9 : index
    %c0_48 = arith.constant 0 : index
    %c0_49 = arith.constant 0 : index
    %65 = vector.load %arg5[%c9_47, %c0_48, %c0_49] : memref<12x1x8xf32, #tpu.memory_space<vmem>>, vector<1x1x8xf32>
    %66 = vector.shape_cast %65 : vector<1x1x8xf32> to vector<1x8xf32>
    %67 = vector.broadcast %66 : vector<1x8xf32> to vector<128x8xf32>
    %68 = arith.addf %64, %67 : vector<128x8xf32>
    %69 = vector.shape_cast %54 : vector<16x8xf32> to vector<2x8x8xf32>
    %70 = vector.shape_cast %61 : vector<128x8xf32> to vector<2x64x8xf32>
    %71 = vector.shape_cast %68 : vector<128x8xf32> to vector<2x64x8xf32>
    "tpu.trace_start"() <{level = 10 : i32, message = "bse,ble->bsl"}> : () -> ()
    %cst_50 = arith.constant dense<0.000000e+00> : vector<2x8x64xf32>
    %72 = tpu.matmul %69, %70, %cst_50 {dimension_numbers = #tpu.dot_dimension_numbers<[2], [2], [1], [1], [0, 0, 0, 1, 1, 1], [0], [0]>} : vector<2x8x8xf32>, vector<2x64x8xf32>, vector<2x8x64xf32> -> vector<2x8x64xf32>
    "tpu.trace_stop"() : () -> ()
    %cst_51 = arith.constant dense<0xFF800000> : vector<2x8xf32>
    %73 = vector.multi_reduction <maximumf>, %72, %cst_51 [2] : vector<2x8x64xf32> to vector<2x8xf32>
    %74 = vector.shape_cast %73 : vector<2x8xf32> to vector<2x8x1xf32>
    %75 = vector.broadcast %74 : vector<2x8x1xf32> to vector<2x8x64xf32>
    %76 = arith.subf %72, %75 : vector<2x8x64xf32>
    %77 = math.exp %76 : vector<2x8x64xf32>
    %cst_52 = arith.constant dense<0.000000e+00> : vector<2x8xf32>
    %78 = vector.multi_reduction <add>, %77, %cst_52 [2] : vector<2x8x64xf32> to vector<2x8xf32>
    %79 = vector.shape_cast %78 : vector<2x8xf32> to vector<2x8x1xf32>
    "tpu.trace_start"() <{level = 10 : i32, message = "bsl,ble->bse"}> : () -> ()
    %cst_53 = arith.constant dense<0.000000e+00> : vector<2x8x8xf32>
    %80 = tpu.matmul %77, %71, %cst_53 {dimension_numbers = #tpu.dot_dimension_numbers<[2], [1], [1], [2], [0, 0, 0, 1, 1, 2], [0], [0]>} : vector<2x8x64xf32>, vector<2x64x8xf32>, vector<2x8x8xf32> -> vector<2x8x8xf32>
    "tpu.trace_stop"() : () -> ()
    %81 = tpu.reciprocal %79 : vector<2x8x1xf32> -> vector<2x8x1xf32>
    %82 = vector.broadcast %81 : vector<2x8x1xf32> to vector<2x8x8xf32>
    %83 = arith.mulf %80, %82 : vector<2x8x8xf32>
    %84 = vector.shape_cast %83 : vector<2x8x8xf32> to vector<16x8xf32>
    %c1_54 = arith.constant 1 : index
    %c0_55 = arith.constant 0 : index
    %c0_56 = arith.constant 0 : index
    %85 = vector.load %arg4[%c1_54, %c0_55, %c0_56] : memref<4x8x32xf32, #tpu.memory_space<vmem>>, vector<1x8x32xf32>
    %86 = vector.shape_cast %85 : vector<1x8x32xf32> to vector<8x32xf32>
    %cst_57 = arith.constant dense<0.000000e+00> : vector<16x32xf32>
    %87 = tpu.matmul %84, %86, %cst_57 {dimension_numbers = #tpu.dot_dimension_numbers<[1], [0], [0], [1], [0, 0, 1, 1], [], []>} : vector<16x8xf32>, vector<8x32xf32>, vector<16x32xf32> -> vector<16x32xf32>
    %88 = arith.addf %47, %87 : vector<16x32xf32>
    %c2 = arith.constant 2 : index
    %c0_58 = arith.constant 0 : index
    %c0_59 = arith.constant 0 : index
    %89 = vector.load %arg3[%c2, %c0_58, %c0_59] : memref<12x32x8xf32, #tpu.memory_space<vmem>>, vector<1x32x8xf32>
    %90 = vector.shape_cast %89 : vector<1x32x8xf32> to vector<32x8xf32>
    %cst_60 = arith.constant dense<0.000000e+00> : vector<16x8xf32>
    %91 = tpu.matmul %0, %90, %cst_60 {dimension_numbers = #tpu.dot_dimension_numbers<[1], [0], [0], [1], [0, 0, 1, 1], [], []>} : vector<16x32xf32>, vector<32x8xf32>, vector<16x8xf32> -> vector<16x8xf32>
    %c2_61 = arith.constant 2 : index
    %c0_62 = arith.constant 0 : index
    %c0_63 = arith.constant 0 : index
    %92 = vector.load %arg5[%c2_61, %c0_62, %c0_63] : memref<12x1x8xf32, #tpu.memory_space<vmem>>, vector<1x1x8xf32>
    %93 = vector.shape_cast %92 : vector<1x1x8xf32> to vector<1x8xf32>
    %94 = vector.broadcast %93 : vector<1x8xf32> to vector<16x8xf32>
    %95 = arith.addf %91, %94 : vector<16x8xf32>
    %c6 = arith.constant 6 : index
    %c0_64 = arith.constant 0 : index
    %c0_65 = arith.constant 0 : index
    %96 = vector.load %arg3[%c6, %c0_64, %c0_65] : memref<12x32x8xf32, #tpu.memory_space<vmem>>, vector<1x32x8xf32>
    %97 = vector.shape_cast %96 : vector<1x32x8xf32> to vector<32x8xf32>
    %cst_66 = arith.constant dense<0.000000e+00> : vector<128x8xf32>
    %98 = tpu.matmul %1, %97, %cst_66 {dimension_numbers = #tpu.dot_dimension_numbers<[1], [0], [0], [1], [0, 0, 1, 1], [], []>} : vector<128x32xf32>, vector<32x8xf32>, vector<128x8xf32> -> vector<128x8xf32>
    %c6_67 = arith.constant 6 : index
    %c0_68 = arith.constant 0 : index
    %c0_69 = arith.constant 0 : index
    %99 = vector.load %arg5[%c6_67, %c0_68, %c0_69] : memref<12x1x8xf32, #tpu.memory_space<vmem>>, vector<1x1x8xf32>
    %100 = vector.shape_cast %99 : vector<1x1x8xf32> to vector<1x8xf32>
    %101 = vector.broadcast %100 : vector<1x8xf32> to vector<128x8xf32>
    %102 = arith.addf %98, %101 : vector<128x8xf32>
    %c10 = arith.constant 10 : index
    %c0_70 = arith.constant 0 : index
    %c0_71 = arith.constant 0 : index
    %103 = vector.load %arg3[%c10, %c0_70, %c0_71] : memref<12x32x8xf32, #tpu.memory_space<vmem>>, vector<1x32x8xf32>
    %104 = vector.shape_cast %103 : vector<1x32x8xf32> to vector<32x8xf32>
    %cst_72 = arith.constant dense<0.000000e+00> : vector<128x8xf32>
    %105 = tpu.matmul %1, %104, %cst_72 {dimension_numbers = #tpu.dot_dimension_numbers<[1], [0], [0], [1], [0, 0, 1, 1], [], []>} : vector<128x32xf32>, vector<32x8xf32>, vector<128x8xf32> -> vector<128x8xf32>
    %c10_73 = arith.constant 10 : index
    %c0_74 = arith.constant 0 : index
    %c0_75 = arith.constant 0 : index
    %106 = vector.load %arg5[%c10_73, %c0_74, %c0_75] : memref<12x1x8xf32, #tpu.memory_space<vmem>>, vector<1x1x8xf32>
    %107 = vector.shape_cast %106 : vector<1x1x8xf32> to vector<1x8xf32>
    %108 = vector.broadcast %107 : vector<1x8xf32> to vector<128x8xf32>
    %109 = arith.addf %105, %108 : vector<128x8xf32>
    %110 = vector.shape_cast %95 : vector<16x8xf32> to vector<2x8x8xf32>
    %111 = vector.shape_cast %102 : vector<128x8xf32> to vector<2x64x8xf32>
    %112 = vector.shape_cast %109 : vector<128x8xf32> to vector<2x64x8xf32>
    "tpu.trace_start"() <{level = 10 : i32, message = "bse,ble->bsl"}> : () -> ()
    %cst_76 = arith.constant dense<0.000000e+00> : vector<2x8x64xf32>
    %113 = tpu.matmul %110, %111, %cst_76 {dimension_numbers = #tpu.dot_dimension_numbers<[2], [2], [1], [1], [0, 0, 0, 1, 1, 1], [0], [0]>} : vector<2x8x8xf32>, vector<2x64x8xf32>, vector<2x8x64xf32> -> vector<2x8x64xf32>
    "tpu.trace_stop"() : () -> ()
    %cst_77 = arith.constant dense<0xFF800000> : vector<2x8xf32>
    %114 = vector.multi_reduction <maximumf>, %113, %cst_77 [2] : vector<2x8x64xf32> to vector<2x8xf32>
    %115 = vector.shape_cast %114 : vector<2x8xf32> to vector<2x8x1xf32>
    %116 = vector.broadcast %115 : vector<2x8x1xf32> to vector<2x8x64xf32>
    %117 = arith.subf %113, %116 : vector<2x8x64xf32>
    %118 = math.exp %117 : vector<2x8x64xf32>
    %cst_78 = arith.constant dense<0.000000e+00> : vector<2x8xf32>
    %119 = vector.multi_reduction <add>, %118, %cst_78 [2] : vector<2x8x64xf32> to vector<2x8xf32>
    %120 = vector.shape_cast %119 : vector<2x8xf32> to vector<2x8x1xf32>
    "tpu.trace_start"() <{level = 10 : i32, message = "bsl,ble->bse"}> : () -> ()
    %cst_79 = arith.constant dense<0.000000e+00> : vector<2x8x8xf32>
    %121 = tpu.matmul %118, %112, %cst_79 {dimension_numbers = #tpu.dot_dimension_numbers<[2], [1], [1], [2], [0, 0, 0, 1, 1, 2], [0], [0]>} : vector<2x8x64xf32>, vector<2x64x8xf32>, vector<2x8x8xf32> -> vector<2x8x8xf32>
    "tpu.trace_stop"() : () -> ()
    %122 = tpu.reciprocal %120 : vector<2x8x1xf32> -> vector<2x8x1xf32>
    %123 = vector.broadcast %122 : vector<2x8x1xf32> to vector<2x8x8xf32>
    %124 = arith.mulf %121, %123 : vector<2x8x8xf32>
    %125 = vector.shape_cast %124 : vector<2x8x8xf32> to vector<16x8xf32>
    %c2_80 = arith.constant 2 : index
    %c0_81 = arith.constant 0 : index
    %c0_82 = arith.constant 0 : index
    %126 = vector.load %arg4[%c2_80, %c0_81, %c0_82] : memref<4x8x32xf32, #tpu.memory_space<vmem>>, vector<1x8x32xf32>
    %127 = vector.shape_cast %126 : vector<1x8x32xf32> to vector<8x32xf32>
    %cst_83 = arith.constant dense<0.000000e+00> : vector<16x32xf32>
    %128 = tpu.matmul %125, %127, %cst_83 {dimension_numbers = #tpu.dot_dimension_numbers<[1], [0], [0], [1], [0, 0, 1, 1], [], []>} : vector<16x8xf32>, vector<8x32xf32>, vector<16x32xf32> -> vector<16x32xf32>
    %129 = arith.addf %88, %128 : vector<16x32xf32>
    %c3 = arith.constant 3 : index
    %c0_84 = arith.constant 0 : index
    %c0_85 = arith.constant 0 : index
    %130 = vector.load %arg3[%c3, %c0_84, %c0_85] : memref<12x32x8xf32, #tpu.memory_space<vmem>>, vector<1x32x8xf32>
    %131 = vector.shape_cast %130 : vector<1x32x8xf32> to vector<32x8xf32>
    %cst_86 = arith.constant dense<0.000000e+00> : vector<16x8xf32>
    %132 = tpu.matmul %0, %131, %cst_86 {dimension_numbers = #tpu.dot_dimension_numbers<[1], [0], [0], [1], [0, 0, 1, 1], [], []>} : vector<16x32xf32>, vector<32x8xf32>, vector<16x8xf32> -> vector<16x8xf32>
    %c3_87 = arith.constant 3 : index
    %c0_88 = arith.constant 0 : index
    %c0_89 = arith.constant 0 : index
    %133 = vector.load %arg5[%c3_87, %c0_88, %c0_89] : memref<12x1x8xf32, #tpu.memory_space<vmem>>, vector<1x1x8xf32>
    %134 = vector.shape_cast %133 : vector<1x1x8xf32> to vector<1x8xf32>
    %135 = vector.broadcast %134 : vector<1x8xf32> to vector<16x8xf32>
    %136 = arith.addf %132, %135 : vector<16x8xf32>
    %c7 = arith.constant 7 : index
    %c0_90 = arith.constant 0 : index
    %c0_91 = arith.constant 0 : index
    %137 = vector.load %arg3[%c7, %c0_90, %c0_91] : memref<12x32x8xf32, #tpu.memory_space<vmem>>, vector<1x32x8xf32>
    %138 = vector.shape_cast %137 : vector<1x32x8xf32> to vector<32x8xf32>
    %cst_92 = arith.constant dense<0.000000e+00> : vector<128x8xf32>
    %139 = tpu.matmul %1, %138, %cst_92 {dimension_numbers = #tpu.dot_dimension_numbers<[1], [0], [0], [1], [0, 0, 1, 1], [], []>} : vector<128x32xf32>, vector<32x8xf32>, vector<128x8xf32> -> vector<128x8xf32>
    %c7_93 = arith.constant 7 : index
    %c0_94 = arith.constant 0 : index
    %c0_95 = arith.constant 0 : index
    %140 = vector.load %arg5[%c7_93, %c0_94, %c0_95] : memref<12x1x8xf32, #tpu.memory_space<vmem>>, vector<1x1x8xf32>
    %141 = vector.shape_cast %140 : vector<1x1x8xf32> to vector<1x8xf32>
    %142 = vector.broadcast %141 : vector<1x8xf32> to vector<128x8xf32>
    %143 = arith.addf %139, %142 : vector<128x8xf32>
    %c11 = arith.constant 11 : index
    %c0_96 = arith.constant 0 : index
    %c0_97 = arith.constant 0 : index
    %144 = vector.load %arg3[%c11, %c0_96, %c0_97] : memref<12x32x8xf32, #tpu.memory_space<vmem>>, vector<1x32x8xf32>
    %145 = vector.shape_cast %144 : vector<1x32x8xf32> to vector<32x8xf32>
    %cst_98 = arith.constant dense<0.000000e+00> : vector<128x8xf32>
    %146 = tpu.matmul %1, %145, %cst_98 {dimension_numbers = #tpu.dot_dimension_numbers<[1], [0], [0], [1], [0, 0, 1, 1], [], []>} : vector<128x32xf32>, vector<32x8xf32>, vector<128x8xf32> -> vector<128x8xf32>
    %c11_99 = arith.constant 11 : index
    %c0_100 = arith.constant 0 : index
    %c0_101 = arith.constant 0 : index
    %147 = vector.load %arg5[%c11_99, %c0_100, %c0_101] : memref<12x1x8xf32, #tpu.memory_space<vmem>>, vector<1x1x8xf32>
    %148 = vector.shape_cast %147 : vector<1x1x8xf32> to vector<1x8xf32>
    %149 = vector.broadcast %148 : vector<1x8xf32> to vector<128x8xf32>
    %150 = arith.addf %146, %149 : vector<128x8xf32>
    %151 = vector.shape_cast %136 : vector<16x8xf32> to vector<2x8x8xf32>
    %152 = vector.shape_cast %143 : vector<128x8xf32> to vector<2x64x8xf32>
    %153 = vector.shape_cast %150 : vector<128x8xf32> to vector<2x64x8xf32>
    "tpu.trace_start"() <{level = 10 : i32, message = "bse,ble->bsl"}> : () -> ()
    %cst_102 = arith.constant dense<0.000000e+00> : vector<2x8x64xf32>
    %154 = tpu.matmul %151, %152, %cst_102 {dimension_numbers = #tpu.dot_dimension_numbers<[2], [2], [1], [1], [0, 0, 0, 1, 1, 1], [0], [0]>} : vector<2x8x8xf32>, vector<2x64x8xf32>, vector<2x8x64xf32> -> vector<2x8x64xf32>
    "tpu.trace_stop"() : () -> ()
    %cst_103 = arith.constant dense<0xFF800000> : vector<2x8xf32>
    %155 = vector.multi_reduction <maximumf>, %154, %cst_103 [2] : vector<2x8x64xf32> to vector<2x8xf32>
    %156 = vector.shape_cast %155 : vector<2x8xf32> to vector<2x8x1xf32>
    %157 = vector.broadcast %156 : vector<2x8x1xf32> to vector<2x8x64xf32>
    %158 = arith.subf %154, %157 : vector<2x8x64xf32>
    %159 = math.exp %158 : vector<2x8x64xf32>
    %cst_104 = arith.constant dense<0.000000e+00> : vector<2x8xf32>
    %160 = vector.multi_reduction <add>, %159, %cst_104 [2] : vector<2x8x64xf32> to vector<2x8xf32>
    %161 = vector.shape_cast %160 : vector<2x8xf32> to vector<2x8x1xf32>
    "tpu.trace_start"() <{level = 10 : i32, message = "bsl,ble->bse"}> : () -> ()
    %cst_105 = arith.constant dense<0.000000e+00> : vector<2x8x8xf32>
    %162 = tpu.matmul %159, %153, %cst_105 {dimension_numbers = #tpu.dot_dimension_numbers<[2], [1], [1], [2], [0, 0, 0, 1, 1, 2], [0], [0]>} : vector<2x8x64xf32>, vector<2x64x8xf32>, vector<2x8x8xf32> -> vector<2x8x8xf32>
    "tpu.trace_stop"() : () -> ()
    %163 = tpu.reciprocal %161 : vector<2x8x1xf32> -> vector<2x8x1xf32>
    %164 = vector.broadcast %163 : vector<2x8x1xf32> to vector<2x8x8xf32>
    %165 = arith.mulf %162, %164 : vector<2x8x8xf32>
    %166 = vector.shape_cast %165 : vector<2x8x8xf32> to vector<16x8xf32>
    %c3_106 = arith.constant 3 : index
    %c0_107 = arith.constant 0 : index
    %c0_108 = arith.constant 0 : index
    %167 = vector.load %arg4[%c3_106, %c0_107, %c0_108] : memref<4x8x32xf32, #tpu.memory_space<vmem>>, vector<1x8x32xf32>
    %168 = vector.shape_cast %167 : vector<1x8x32xf32> to vector<8x32xf32>
    %cst_109 = arith.constant dense<0.000000e+00> : vector<16x32xf32>
    %169 = tpu.matmul %166, %168, %cst_109 {dimension_numbers = #tpu.dot_dimension_numbers<[1], [0], [0], [1], [0, 0, 1, 1], [], []>} : vector<16x8xf32>, vector<8x32xf32>, vector<16x32xf32> -> vector<16x32xf32>
    %170 = arith.addf %129, %169 : vector<16x32xf32>
    %171 = arith.addf %0, %170 : vector<16x32xf32>
    %172 = vector.broadcast %3 : vector<1x32xf32> to vector<16x32xf32>
    %173 = arith.addf %171, %172 : vector<16x32xf32>
    %cst_110 = arith.constant dense<0.000000e+00> : vector<16xf32>
    %174 = vector.multi_reduction <add>, %173, %cst_110 [1] : vector<16x32xf32> to vector<16xf32>
    %175 = vector.shape_cast %174 : vector<16xf32> to vector<16x1xf32>
    %cst_111 = arith.constant 3.200000e+01 : f32
    %176 = vector.broadcast %cst_111 : f32 to vector<16x1xf32>
    %177 = arith.divf %175, %176 : vector<16x1xf32>
    %178 = vector.broadcast %177 : vector<16x1xf32> to vector<16x32xf32>
    %179 = arith.subf %173, %178 : vector<16x32xf32>
    %180 = arith.mulf %179, %179 : vector<16x32xf32>
    %cst_112 = arith.constant dense<0.000000e+00> : vector<16xf32>
    %181 = vector.multi_reduction <add>, %180, %cst_112 [1] : vector<16x32xf32> to vector<16xf32>
    %182 = vector.shape_cast %181 : vector<16xf32> to vector<16x1xf32>
    %cst_113 = arith.constant 3.200000e+01 : f32
    %183 = vector.broadcast %cst_113 : f32 to vector<16x1xf32>
    %184 = arith.divf %182, %183 : vector<16x1xf32>
    %cst_114 = arith.constant 9.99999974E-6 : f32
    %185 = vector.broadcast %cst_114 : f32 to vector<16x1xf32>
    %186 = arith.addf %184, %185 : vector<16x1xf32>
    %187 = math.rsqrt %186 : vector<16x1xf32>
    %188 = vector.broadcast %187 : vector<16x1xf32> to vector<16x32xf32>
    %189 = arith.mulf %179, %188 : vector<16x32xf32>
    %190 = vector.broadcast %4 : vector<1x32xf32> to vector<16x32xf32>
    %191 = arith.mulf %189, %190 : vector<16x32xf32>
    %192 = vector.broadcast %5 : vector<1x32xf32> to vector<16x32xf32>
    %193 = arith.addf %191, %192 : vector<16x32xf32>
    %c0_115 = arith.constant 0 : index
    %c0_116 = arith.constant 0 : index
    %194 = vector.load %arg7[%c0_115, %c0_116] : memref<16x32xf32, #tpu.memory_space<vmem>>, vector<16x32xf32>
    tpu.vector_store %arg7[%c0_115, %c0_116], %193 {strides = array<i32>} : memref<16x32xf32, #tpu.memory_space<vmem>>, vector<16x32xf32>,
    return
  }
  func.func @transform_0(%arg0: i32) -> (i32, i32) {
    %c0_i32 = arith.constant 0 : i32
    %c0_i32_0 = arith.constant 0 : i32
    return %arg0, %c0_i32 : i32, i32
  }
  func.func @transform_1(%arg0: i32) -> (i32, i32) {
    %c0_i32 = arith.constant 0 : i32
    %c0_i32_0 = arith.constant 0 : i32
    return %arg0, %c0_i32 : i32, i32
  }
  func.func @transform_2(%arg0: i32) -> (i32, i32, i32) {
    %c0_i32 = arith.constant 0 : i32
    %c0_i32_0 = arith.constant 0 : i32
    %c0_i32_1 = arith.constant 0 : i32
    %c0_i32_2 = arith.constant 0 : i32
    return %c0_i32, %c0_i32_0, %c0_i32_1 : i32, i32, i32
  }
  func.func @transform_3(%arg0: i32) -> (i32, i32, i32) {
    %c0_i32 = arith.constant 0 : i32
    %c0_i32_0 = arith.constant 0 : i32
    %c0_i32_1 = arith.constant 0 : i32
    %c0_i32_2 = arith.constant 0 : i32
    return %c0_i32, %c0_i32_0, %c0_i32_1 : i32, i32, i32
  }
  func.func @transform_4(%arg0: i32) -> (i32, i32, i32) {
    %c0_i32 = arith.constant 0 : i32
    %c0_i32_0 = arith.constant 0 : i32
    %c0_i32_1 = arith.constant 0 : i32
    %c0_i32_2 = arith.constant 0 : i32
    return %c0_i32, %c0_i32_0, %c0_i32_1 : i32, i32, i32
  }
  func.func @transform_5(%arg0: i32) -> (i32, i32) {
    %c0_i32 = arith.constant 0 : i32
    %c0_i32_0 = arith.constant 0 : i32
    %c0_i32_1 = arith.constant 0 : i32
    return %c0_i32, %c0_i32_0 : i32, i32
  }
  func.func @transform_6(%arg0: i32) -> (i32, i32) {
    %c0_i32 = arith.constant 0 : i32
    %c0_i32_0 = arith.constant 0 : i32
    return %arg0, %c0_i32 : i32, i32
  }
}

</mosaic_0001>

<llo_original>
// kernel: tpu_custom_call.1
$region0: #{tpu_custom_call.1}
  #allocation0 [shape = 'u32[]', space=smem, size = 0x4, offset = 0x4, fixed_abs, tag = 'smem constant byte address 0x4 - core index']
  #allocation1 [shape = 'u32[144,128]{1,0:T(1,128)}', space=vmem, size = 0x12000, scoped, tag = 'internal scratch']
  %s0 = inlined_call_operand.vmem [shape: f32[16,32], index: 0, kind: input, shape index: {}]
  %s1 = inlined_call_operand.vmem [shape: f32[128,32], index: 1, kind: input, shape index: {}]
  %s2 = inlined_call_operand.vmem [shape: f32[12,32,8], index: 2, kind: input, shape index: {}]
  %s3 = inlined_call_operand.vmem [shape: f32[4,8,32], index: 3, kind: input, shape index: {}]
  %s4 = inlined_call_operand.vmem [shape: f32[12,1,8], index: 4, kind: input, shape index: {}]
  %s5 = inlined_call_operand.vmem [shape: f32[3,32], index: 5, kind: input, shape index: {}]
  %s6 = inlined_call_operand.hbm [shape: f32[16,32], index: 6, kind: output, shape index: {}]
  %s7 = sld [smem:[#allocation0]]
  $region34: #{tpu_custom_call.1} parent=0
    _
  %s9 = ssub.s32 1, %s7
  %s10 = scalar_select 0, %s9, %s7
  $region1: #{tpu_custom_call.1} parent=0
    #allocation2 [shape = 'u8[8192]{0}', space=vmem, size = 0x2000, scoped, tag = 'output window, operand 0, single buffered']
    #allocation3 [shape = 's32[1]{0}', space=sflag, size = 0x4, scoped, tag = 'scoped memory for tpu_custom_call.1']
    %11 = vsyncpa [#allocation3], 0
    // Predicated region
    $region2: #{tpu_custom_call.1} parent=1 // pred_check
      _
    $region3: #{tpu_custom_call.1} parent=1 // pred_check_branch
      %13 = sbr.rel (0) target = $region5
    $region4: #{tpu_custom_call.1} parent=1 // pred_region
      _
    $region5: #{tpu_custom_call.1} parent=1 // pred_fallthru
      _
    // Predicated region
    $region6: #{tpu_custom_call.1} parent=1 // pred_check
      _
    $region7: #{tpu_custom_call.1} parent=1 // pred_check_branch
      %15 = sbr.rel (0) target = $region9
    $region8: #{tpu_custom_call.1} parent=1 // pred_region
      _
    $region9: #{tpu_custom_call.1} parent=1 // pred_fallthru
      _
    // Predicated region
    $region10: #{tpu_custom_call.1} parent=1 // pred_check
      _
    $region11: #{tpu_custom_call.1} parent=1 // pred_check_branch
      %17 = sbr.rel (0) target = $region13
    $region12: #{tpu_custom_call.1} parent=1 // pred_region
      _
    $region13: #{tpu_custom_call.1} parent=1 // pred_fallthru
      _
    // Predicated region
    $region14: #{tpu_custom_call.1} parent=1 // pred_check
      _
    $region15: #{tpu_custom_call.1} parent=1 // pred_check_branch
      %19 = sbr.rel (0) target = $region17
    $region16: #{tpu_custom_call.1} parent=1 // pred_region
      _
    $region17: #{tpu_custom_call.1} parent=1 // pred_fallthru
      _
    // Predicated region
    $region18: #{tpu_custom_call.1} parent=1 // pred_check
      _
    $region19: #{tpu_custom_call.1} parent=1 // pred_check_branch
      %21 = sbr.rel (0) target = $region21
    $region20: #{tpu_custom_call.1} parent=1 // pred_region
      _
    $region21: #{tpu_custom_call.1} parent=1 // pred_fallthru
      _
    // Predicated region
    $region22: #{tpu_custom_call.1} parent=1 // pred_check
      _
    $region23: #{tpu_custom_call.1} parent=1 // pred_check_branch
      %23 = sbr.rel (0) target = $region25
    $region24: #{tpu_custom_call.1} parent=1 // pred_region
      _
    $region25: #{tpu_custom_call.1} parent=1 // pred_fallthru
      _
    %v24 = vld [vmem:[%s0] sm:$0xff]
    %v25 = vld [vmem:[%s0 + $0x8] sm:$0xff]
    %v26 = vld [vmem:[%s1] sm:$0xff]
    %v27 = vld [vmem:[%s1 + $0x8] sm:$0xff]
    %v28 = vld [vmem:[%s1 + $0x10] sm:$0xff]
    %v29 = vld [vmem:[%s1 + $0x18] sm:$0xff]
    %v30 = vld [vmem:[%s1 + $0x20] sm:$0xff]
    %v31 = vld [vmem:[%s1 + $0x28] sm:$0xff]
    %v32 = vld [vmem:[%s1 + $0x30] sm:$0xff]
    %v33 = vld [vmem:[%s1 + $0x38] sm:$0xff]
    %v34 = vld [vmem:[%s1 + $0x40] sm:$0xff]
    %v35 = vld [vmem:[%s1 + $0x48] sm:$0xff]
    %v36 = vld [vmem:[%s1 + $0x50] sm:$0xff]
    %v37 = vld [vmem:[%s1 + $0x58] sm:$0xff]
    %v38 = vld [vmem:[%s1 + $0x60] sm:$0xff]
    %v39 = vld [vmem:[%s1 + $0x68] sm:$0xff]
    %v40 = vld [vmem:[%s1 + $0x70] sm:$0xff]
    %v41 = vld [vmem:[%s1 + $0x78] sm:$0xff]
    %v42 = vld [vmem:[%s5] sm:$0x7]
    %v43 = vld [vmem:[%s2] sm:$0xff]
    %v44 = vld [vmem:[%s2 + $0x8] sm:$0xff]
    %v45 = vld [vmem:[%s2 + $0x10] sm:$0xff]
    %v46 = vld [vmem:[%s2 + $0x18] sm:$0xff]
    %v47 = vld [vmem:[%s4] sm:$0x1]
    %v49 = vlaneseq
    %v50 = vshrl.u32 %v49, 7
    %v51 = vsub.s32 0, %v50
    %v52 = vrot.slane %v47, %v51
    %vm54 = vcmask 261120
    %v56 = vsel %vm54, %v24, 0
    %v59 = vsel %vm54, %v25, 0
    %61 = vmatprep.subr.mxu0 0.0
    %62 = vmatpush1.msra.mxu0 %v43
    %63 = vmatprep.subr.mxu0 0.0
    %64 = vmatpush1.msra.mxu0 %v44
    %65 = vmatprep.subr.mxu0 0.0
    %66 = vmatpush1.msra.mxu0 %v45
    %67 = vmatprep.subr.mxu0 0.0
    %68 = vmatpush1.msra.mxu0 %v46
    %69 = vmatprep.subr.mxu0 0.0
    %70 = vmatpush1.msra.mxu0 0.0
    %71 = vmatprep.subr.mxu0 0.0
    %72 = vmatpush1.msra.mxu0 0.0
    %73 = vmatprep.subr.mxu0 0.0
    %74 = vmatpush1.msra.mxu0 0.0
    %75 = vmatprep.subr.mxu0 0.0
    %76 = vmatpush1.msra.mxu0 0.0
    %77 = vmatprep.subr.mxu0 0.0
    %78 = vmatpush1.msra.mxu0 0.0
    %79 = vmatprep.subr.mxu0 0.0
    %80 = vmatpush1.msra.mxu0 0.0
    %81 = vmatprep.subr.mxu0 0.0
    %82 = vmatpush1.msra.mxu0 0.0
    %83 = vmatprep.subr.mxu0 0.0
    %84 = vmatpush1.msra.mxu0 0.0
    %85 = vmatprep.subr.mxu0 0.0
    %86 = vmatpush1.msra.mxu0 0.0
    %87 = vmatprep.subr.mxu0 0.0
    %88 = vmatpush1.msra.mxu0 0.0
    %89 = vmatprep.subr.mxu0 0.0
    %90 = vmatpush1.msra.mxu0 0.0
    %91 = vmatprep.subr.mxu0 0.0
    %92 = vmatpush1.msra.mxu0 0.0
    %93 = vmatprep.subr.mxu0 0.0
    %94 = vmatpush1.msra.mxu0 0.0
    %95 = vmatprep.subr.mxu0 0.0
    %96 = vmatpush1.msra.mxu0 0.0
    %97 = vmatprep.subr.mxu0 0.0
    %98 = vmatpush1.msra.mxu0 0.0
    %99 = vmatprep.subr.mxu0 0.0
    %100 = vmatpush1.msra.mxu0 0.0
    %101 = vmatprep.subr.mxu0 0.0
    %102 = vmatpush1.msra.mxu0 0.0
    %103 = vmatprep.subr.mxu0 0.0
    %104 = vmatpush1.msra.mxu0 0.0
    %105 = vmatprep.subr.mxu0 0.0
    %106 = vmatpush1.msra.mxu0 0.0
    %107 = vmatprep.subr.mxu0 0.0
    %108 = vmatpush1.msra.mxu0 0.0
    %109 = vmatprep.subr.mxu0 0.0
    %110 = vmatpush1.msra.mxu0 0.0
    %111 = vmatprep.subr.mxu0 0.0
    %112 = vmatpush1.msra.mxu0 0.0
    %113 = vmatprep.subr.mxu0 0.0
    %114 = vmatpush1.msra.mxu0 0.0
    %115 = vmatprep.subr.mxu0 0.0
    %116 = vmatpush1.msra.mxu0 0.0
    %117 = vmatprep.subr.mxu0 0.0
    %118 = vmatpush1.msra.mxu0 0.0
    %119 = vmatprep.subr.mxu0 0.0
    %120 = vmatpush1.msra.mxu0 0.0
    %121 = vmatprep.subr.mxu0 0.0
    %122 = vmatpush1.msra.mxu0 0.0
    %123 = vmatprep.subr.mxu0 0.0
    %124 = vmatpush1.msra.mxu0 0.0
    %125 = vmatprep.mubr.f32.mxu0 0.0
    %126 = vmatmul.mubr.f32.gmra.mrb[0].mxu0 %v56
    %v127 = vpop.f32.mrb[0].mxu0
    %v128 = vadd.f32 %v52, %v127
    %v129 = vpop.f32.mrb[0].mxu0
    %130 = vmatprep.mubr.f32.mxu0 0.0
    %131 = vmatmul.mubr.f32.gmra.mrb[0].mxu0 %v59
    %v132 = vpop.f32.mrb[0].mxu0
    %v133 = vadd.f32 %v52, %v132
    %v134 = vpop.f32.mrb[0].mxu0
    %135 = vdwg.mxu0
    %s136 = scalar_lea.vmem %s2, 128
    %v137 = vld [vmem:[%s136] sm:$0xff]
    %v138 = vld [vmem:[%s136 + $0x8] sm:$0xff]
    %v139 = vld [vmem:[%s136 + $0x10] sm:$0xff]
    %v140 = vld [vmem:[%s136 + $0x18] sm:$0xff]
    %s141 = scalar_lea.vmem %s4, 4
    %v142 = vld [vmem:[%s141] sm:$0x1]
    %v144 = vlaneseq
    %v145 = vshrl.u32 %v144, 7
    %v146 = vsub.s32 0, %v145
    %v147 = vrot.slane %v142, %v146
    %v150 = vsel %vm54, %v26, 0
    %v153 = vsel %vm54, %v27, 0
    %v156 = vsel %vm54, %v28, 0
    %v159 = vsel %vm54, %v29, 0
    %v162 = vsel %vm54, %v30, 0
    %v165 = vsel %vm54, %v31, 0
    %v168 = vsel %vm54, %v32, 0
    %v171 = vsel %vm54, %v33, 0
    %v174 = vsel %vm54, %v34, 0
    %v177 = vsel %vm54, %v35, 0
    %v180 = vsel %vm54, %v36, 0
    %v183 = vsel %vm54, %v37, 0
    %v186 = vsel %vm54, %v38, 0
    %v189 = vsel %vm54, %v39, 0
    %v192 = vsel %vm54, %v40, 0
    %v195 = vsel %vm54, %v41, 0
    %197 = vmatprep.subr.mxu0 0.0
    %198 = vmatpush1.msra.mxu0 %v137
    %199 = vmatprep.subr.mxu0 0.0
    %200 = vmatpush1.msra.mxu0 %v138
    %201 = vmatprep.subr.mxu0 0.0
    %202 = vmatpush1.msra.mxu0 %v139
    %203 = vmatprep.subr.mxu0 0.0
    %204 = vmatpush1.msra.mxu0 %v140
    %205 = vmatprep.subr.mxu0 0.0
    %206 = vmatpush1.msra.mxu0 0.0
    %207 = vmatprep.subr.mxu0 0.0
    %208 = vmatpush1.msra.mxu0 0.0
    %209 = vmatprep.subr.mxu0 0.0
    %210 = vmatpush1.msra.mxu0 0.0
    %211 = vmatprep.subr.mxu0 0.0
    %212 = vmatpush1.msra.mxu0 0.0
    %213 = vmatprep.subr.mxu0 0.0
    %214 = vmatpush1.msra.mxu0 0.0
    %215 = vmatprep.subr.mxu0 0.0
    %216 = vmatpush1.msra.mxu0 0.0
    %217 = vmatprep.subr.mxu0 0.0
    %218 = vmatpush1.msra.mxu0 0.0
    %219 = vmatprep.subr.mxu0 0.0
    %220 = vmatpush1.msra.mxu0 0.0
    %221 = vmatprep.subr.mxu0 0.0
    %222 = vmatpush1.msra.mxu0 0.0
    %223 = vmatprep.subr.mxu0 0.0
    %224 = vmatpush1.msra.mxu0 0.0
    %225 = vmatprep.subr.mxu0 0.0
    %226 = vmatpush1.msra.mxu0 0.0
    %227 = vmatprep.subr.mxu0 0.0
    %228 = vmatpush1.msra.mxu0 0.0
    %229 = vmatprep.subr.mxu0 0.0
    %230 = vmatpush1.msra.mxu0 0.0
    %231 = vmatprep.subr.mxu0 0.0
    %232 = vmatpush1.msra.mxu0 0.0
    %233 = vmatprep.subr.mxu0 0.0
    %234 = vmatpush1.msra.mxu0 0.0
    %235 = vmatprep.subr.mxu0 0.0
    %236 = vmatpush1.msra.mxu0 0.0
    %237 = vmatprep.subr.mxu0 0.0
    %238 = vmatpush1.msra.mxu0 0.0
    %239 = vmatprep.subr.mxu0 0.0
    %240 = vmatpush1.msra.mxu0 0.0
    %241 = vmatprep.subr.mxu0 0.0
    %242 = vmatpush1.msra.mxu0 0.0
    %243 = vmatprep.subr.mxu0 0.0
    %244 = vmatpush1.msra.mxu0 0.0
    %245 = vmatprep.subr.mxu0 0.0
    %246 = vmatpush1.msra.mxu0 0.0
    %247 = vmatprep.subr.mxu0 0.0
    %248 = vmatpush1.msra.mxu0 0.0
    %249 = vmatprep.subr.mxu0 0.0
    %250 = vmatpush1.msra.mxu0 0.0
    %251 = vmatprep.subr.mxu0 0.0
    %252 = vmatpush1.msra.mxu0 0.0
    %253 = vmatprep.subr.mxu0 0.0
    %254 = vmatpush1.msra.mxu0 0.0
    %255 = vmatprep.subr.mxu0 0.0
    %256 = vmatpush1.msra.mxu0 0.0
    %257 = vmatprep.subr.mxu0 0.0
    %258 = vmatpush1.msra.mxu0 0.0
    %259 = vmatprep.subr.mxu0 0.0
    %260 = vmatpush1.msra.mxu0 0.0
    %261 = vmatprep.mubr.f32.mxu0 0.0
    %262 = vmatmul.mubr.f32.gmra.mrb[0].mxu0 %v150
    %v263 = vpop.f32.mrb[0].mxu0
    %v264 = vadd.f32 %v147, %v263
    %v265 = vpop.f32.mrb[0].mxu0
    %266 = vmatprep.mubr.f32.mxu0 0.0
    %267 = vmatmul.mubr.f32.gmra.mrb[0].mxu0 %v153
    %v268 = vpop.f32.mrb[0].mxu0
    %v269 = vadd.f32 %v147, %v268
    %v270 = vpop.f32.mrb[0].mxu0
    %271 = vmatprep.mubr.f32.mxu0 0.0
    %272 = vmatmul.mubr.f32.gmra.mrb[0].mxu0 %v156
    %v273 = vpop.f32.mrb[0].mxu0
    %v274 = vadd.f32 %v147, %v273
    %v275 = vpop.f32.mrb[0].mxu0
    %276 = vmatprep.mubr.f32.mxu0 0.0
    %277 = vmatmul.mubr.f32.gmra.mrb[0].mxu0 %v159
    %v278 = vpop.f32.mrb[0].mxu0
    %v279 = vadd.f32 %v147, %v278
    %v280 = vpop.f32.mrb[0].mxu0
    %281 = vmatprep.mubr.f32.mxu0 0.0
    %282 = vmatmul.mubr.f32.gmra.mrb[0].mxu0 %v162
    %v283 = vpop.f32.mrb[0].mxu0
    %v284 = vadd.f32 %v147, %v283
    %v285 = vpop.f32.mrb[0].mxu0
    %286 = vmatprep.mubr.f32.mxu0 0.0
    %287 = vmatmul.mubr.f32.gmra.mrb[0].mxu0 %v165
    %v288 = vpop.f32.mrb[0].mxu0
    %v289 = vadd.f32 %v147, %v288
    %v290 = vpop.f32.mrb[0].mxu0
    %291 = vmatprep.mubr.f32.mxu0 0.0
    %292 = vmatmul.mubr.f32.gmra.mrb[0].mxu0 %v168
    %v293 = vpop.f32.mrb[0].mxu0
    %v294 = vadd.f32 %v147, %v293
    %v295 = vpop.f32.mrb[0].mxu0
    %296 = vmatprep.mubr.f32.mxu0 0.0
    %297 = vmatmul.mubr.f32.gmra.mrb[0].mxu0 %v171
    %v298 = vpop.f32.mrb[0].mxu0
    %v299 = vadd.f32 %v147, %v298
    %v300 = vpop.f32.mrb[0].mxu0
    %301 = vmatprep.mubr.f32.mxu0 0.0
    %302 = vmatmul.mubr.f32.gmra.mrb[0].mxu0 %v174
    %v303 = vpop.f32.mrb[0].mxu0
    %v304 = vadd.f32 %v147, %v303
    %v305 = vpop.f32.mrb[0].mxu0
    %306 = vmatprep.mubr.f32.mxu0 0.0
    %307 = vmatmul.mubr.f32.gmra.mrb[0].mxu0 %v177
    %v308 = vpop.f32.mrb[0].mxu0
    %v309 = vadd.f32 %v147, %v308
    %v310 = vpop.f32.mrb[0].mxu0
    %311 = vmatprep.mubr.f32.mxu0 0.0
    %312 = vmatmul.mubr.f32.gmra.mrb[0].mxu0 %v180
    %v313 = vpop.f32.mrb[0].mxu0
    %v314 = vadd.f32 %v147, %v313
    %v315 = vpop.f32.mrb[0].mxu0
    %316 = vmatprep.mubr.f32.mxu0 0.0
    %317 = vmatmul.mubr.f32.gmra.mrb[0].mxu0 %v183
    %v318 = vpop.f32.mrb[0].mxu0
    %v319 = vadd.f32 %v147, %v318
    %v320 = vpop.f32.mrb[0].mxu0
    %321 = vmatprep.mubr.f32.mxu0 0.0
    %322 = vmatmul.mubr.f32.gmra.mrb[0].mxu0 %v186
    %v323 = vpop.f32.mrb[0].mxu0
    %v324 = vadd.f32 %v147, %v323
    %v325 = vpop.f32.mrb[0].mxu0
    %326 = vmatprep.mubr.f32.mxu0 0.0
    %327 = vmatmul.mubr.f32.gmra.mrb[0].mxu0 %v189
    %v328 = vpop.f32.mrb[0].mxu0
    %v329 = vadd.f32 %v147, %v328
    %v330 = vpop.f32.mrb[0].mxu0
    %331 = vmatprep.mubr.f32.mxu0 0.0
    %332 = vmatmul.mubr.f32.gmra.mrb[0].mxu0 %v192
    %v333 = vpop.f32.mrb[0].mxu0
    %v334 = vadd.f32 %v147, %v333
    %v335 = vpop.f32.mrb[0].mxu0
    %336 = vmatprep.mubr.f32.mxu0 0.0
    %337 = vmatmul.mubr.f32.gmra.mrb[0].mxu0 %v195
    %v338 = vpop.f32.mrb[0].mxu0
    %v339 = vadd.f32 %v147, %v338
    %v340 = vpop.f32.mrb[0].mxu0
    %341 = vdwg.mxu0
    %s342 = scalar_lea.vmem %s2, 256
    %v343 = vld [vmem:[%s342] sm:$0xff]
    %v344 = vld [vmem:[%s342 + $0x8] sm:$0xff]
    %v345 = vld [vmem:[%s342 + $0x10] sm:$0xff]
    %v346 = vld [vmem:[%s342 + $0x18] sm:$0xff]
    %s347 = scalar_lea.vmem %s4, 8
    %v348 = vld [vmem:[%s347] sm:$0x1]
    %v350 = vlaneseq
    %v351 = vshrl.u32 %v350, 7
    %v352 = vsub.s32 0, %v351
    %v353 = vrot.slane %v348, %v352
    %355 = vmatprep.subr.mxu0 0.0
    %356 = vmatpush1.msra.mxu0 %v343
    %357 = vmatprep.subr.mxu0 0.0
    %358 = vmatpush1.msra.mxu0 %v344
    %359 = vmatprep.subr.mxu0 0.0
    %360 = vmatpush1.msra.mxu0 %v345
    %361 = vmatprep.subr.mxu0 0.0
    %362 = vmatpush1.msra.mxu0 %v346
    %363 = vmatprep.subr.mxu0 0.0
    %364 = vmatpush1.msra.mxu0 0.0
    %365 = vmatprep.subr.mxu0 0.0
    %366 = vmatpush1.msra.mxu0 0.0
    %367 = vmatprep.subr.mxu0 0.0
    %368 = vmatpush1.msra.mxu0 0.0
    %369 = vmatprep.subr.mxu0 0.0
    %370 = vmatpush1.msra.mxu0 0.0
    %371 = vmatprep.subr.mxu0 0.0
    %372 = vmatpush1.msra.mxu0 0.0
    %373 = vmatprep.subr.mxu0 0.0
    %374 = vmatpush1.msra.mxu0 0.0
    %375 = vmatprep.subr.mxu0 0.0
    %376 = vmatpush1.msra.mxu0 0.0
    %377 = vmatprep.subr.mxu0 0.0
    %378 = vmatpush1.msra.mxu0 0.0
    %379 = vmatprep.subr.mxu0 0.0
    %380 = vmatpush1.msra.mxu0 0.0
    %381 = vmatprep.subr.mxu0 0.0
    %382 = vmatpush1.msra.mxu0 0.0
    %383 = vmatprep.subr.mxu0 0.0
    %384 = vmatpush1.msra.mxu0 0.0
    %385 = vmatprep.subr.mxu0 0.0
    %386 = vmatpush1.msra.mxu0 0.0
    %387 = vmatprep.subr.mxu0 0.0
    %388 = vmatpush1.msra.mxu0 0.0
    %389 = vmatprep.subr.mxu0 0.0
    %390 = vmatpush1.msra.mxu0 0.0
    %391 = vmatprep.subr.mxu0 0.0
    %392 = vmatpush1.msra.mxu0 0.0
    %393 = vmatprep.subr.mxu0 0.0
    %394 = vmatpush1.msra.mxu0 0.0
    %395 = vmatprep.subr.mxu0 0.0
    %396 = vmatpush1.msra.mxu0 0.0
    %397 = vmatprep.subr.mxu0 0.0
    %398 = vmatpush1.msra.mxu0 0.0
    %399 = vmatprep.subr.mxu0 0.0
    %400 = vmatpush1.msra.mxu0 0.0
    %401 = vmatprep.subr.mxu0 0.0
    %402 = vmatpush1.msra.mxu0 0.0
    %403 = vmatprep.subr.mxu0 0.0
    %404 = vmatpush1.msra.mxu0 0.0
    %405 = vmatprep.subr.mxu0 0.0
    %406 = vmatpush1.msra.mxu0 0.0
    %407 = vmatprep.subr.mxu0 0.0
    %408 = vmatpush1.msra.mxu0 0.0
    %409 = vmatprep.subr.mxu0 0.0
    %410 = vmatpush1.msra.mxu0 0.0
    %411 = vmatprep.subr.mxu0 0.0
    %412 = vmatpush1.msra.mxu0 0.0
    %413 = vmatprep.subr.mxu0 0.0
    %414 = vmatpush1.msra.mxu0 0.0
    %415 = vmatprep.subr.mxu0 0.0
    %416 = vmatpush1.msra.mxu0 0.0
    %417 = vmatprep.subr.mxu0 0.0
    %418 = vmatpush1.msra.mxu0 0.0
    %419 = vmatprep.mubr.f32.mxu0 0.0
    %420 = vmatmul.mubr.f32.gmra.mrb[0].mxu0 %v150
    %v421 = vpop.f32.mrb[0].mxu0
    %v422 = vadd.f32 %v353, %v421
    %v423 = vpop.f32.mrb[0].mxu0
    %424 = vmatprep.mubr.f32.mxu0 0.0
    %425 = vmatmul.mubr.f32.gmra.mrb[0].mxu0 %v153
    %v426 = vpop.f32.mrb[0].mxu0
    %v427 = vadd.f32 %v353, %v426
    %v428 = vpop.f32.mrb[0].mxu0
    %429 = vmatprep.mubr.f32.mxu0 0.0
    %430 = vmatmul.mubr.f32.gmra.mrb[0].mxu0 %v156
    %v431 = vpop.f32.mrb[0].mxu0
    %v432 = vadd.f32 %v353, %v431
    %v433 = vpop.f32.mrb[0].mxu0
    %434 = vmatprep.mubr.f32.mxu0 0.0
    %435 = vmatmul.mubr.f32.gmra.mrb[0].mxu0 %v159
    %v436 = vpop.f32.mrb[0].mxu0
    %v437 = vadd.f32 %v353, %v436
    %v438 = vpop.f32.mrb[0].mxu0
    %439 = vmatprep.mubr.f32.mxu0 0.0
    %440 = vmatmul.mubr.f32.gmra.mrb[0].mxu0 %v162
    %v441 = vpop.f32.mrb[0].mxu0
    %v442 = vadd.f32 %v353, %v441
    %v443 = vpop.f32.mrb[0].mxu0
    %444 = vmatprep.mubr.f32.mxu0 0.0
    %445 = vmatmul.mubr.f32.gmra.mrb[0].mxu0 %v165
    %v446 = vpop.f32.mrb[0].mxu0
    %v447 = vadd.f32 %v353, %v446
    %v448 = vpop.f32.mrb[0].mxu0
    %449 = vmatprep.mubr.f32.mxu0 0.0
    %450 = vmatmul.mubr.f32.gmra.mrb[0].mxu0 %v168
    %v451 = vpop.f32.mrb[0].mxu0
    %v452 = vadd.f32 %v353, %v451
    %v453 = vpop.f32.mrb[0].mxu0
    %454 = vmatprep.mubr.f32.mxu0 0.0
    %455 = vmatmul.mubr.f32.gmra.mrb[0].mxu0 %v171
    %v456 = vpop.f32.mrb[0].mxu0
    %v457 = vadd.f32 %v353, %v456
    %v458 = vpop.f32.mrb[0].mxu0
    %459 = vmatprep.mubr.f32.mxu0 0.0
    %460 = vmatmul.mubr.f32.gmra.mrb[0].mxu0 %v174
    %v461 = vpop.f32.mrb[0].mxu0
    %v462 = vadd.f32 %v353, %v461
    %v463 = vpop.f32.mrb[0].mxu0
    %464 = vmatprep.mubr.f32.mxu0 0.0
    %465 = vmatmul.mubr.f32.gmra.mrb[0].mxu0 %v177
    %v466 = vpop.f32.mrb[0].mxu0
    %v467 = vadd.f32 %v353, %v466
    %v468 = vpop.f32.mrb[0].mxu0
    %469 = vmatprep.mubr.f32.mxu0 0.0
    %470 = vmatmul.mubr.f32.gmra.mrb[0].mxu0 %v180
    %v471 = vpop.f32.mrb[0].mxu0
    %v472 = vadd.f32 %v353, %v471
    %v473 = vpop.f32.mrb[0].mxu0
    %474 = vmatprep.mubr.f32.mxu0 0.0
    %475 = vmatmul.mubr.f32.gmra.mrb[0].mxu0 %v183
    %v476 = vpop.f32.mrb[0].mxu0
    %v477 = vadd.f32 %v353, %v476
    %v478 = vpop.f32.mrb[0].mxu0
    %479 = vmatprep.mubr.f32.mxu0 0.0
    %480 = vmatmul.mubr.f32.gmra.mrb[0].mxu0 %v186
    %v481 = vpop.f32.mrb[0].mxu0
    %v482 = vadd.f32 %v353, %v481
    %v483 = vpop.f32.mrb[0].mxu0
    %484 = vmatprep.mubr.f32.mxu0 0.0
    %485 = vmatmul.mubr.f32.gmra.mrb[0].mxu0 %v189
    %v486 = vpop.f32.mrb[0].mxu0
    %v487 = vadd.f32 %v353, %v486
    %v488 = vpop.f32.mrb[0].mxu0
    %489 = vmatprep.mubr.f32.mxu0 0.0
    %490 = vmatmul.mubr.f32.gmra.mrb[0].mxu0 %v192
    %v491 = vpop.f32.mrb[0].mxu0
    %v492 = vadd.f32 %v353, %v491
    %v493 = vpop.f32.mrb[0].mxu0
    %494 = vmatprep.mubr.f32.mxu0 0.0
    %495 = vmatmul.mubr.f32.gmra.mrb[0].mxu0 %v195
    %v496 = vpop.f32.mrb[0].mxu0
    %v497 = vadd.f32 %v353, %v496
    %v498 = vpop.f32.mrb[0].mxu0
    %499 = vdwg.mxu0
    %vm500 = vcmask 64512
    %v502 = vsel %vm500, %v128, 0
    %v505 = vsel %vm500, %v264, 0
    %v508 = vsel %vm500, %v269, 0
    %v511 = vsel %vm500, %v274, 0
    %v514 = vsel %vm500, %v279, 0
    %v517 = vsel %vm500, %v284, 0
    %v520 = vsel %vm500, %v289, 0
    %v523 = vsel %vm500, %v294, 0
    %v526 = vsel %vm500, %v299, 0
    %528 = vmatprep.subr.mxu0 0.0
    %529 = vmatpush1.xpose.msra.mxu0 %v505
    %530 = vmatprep.subr.mxu0 0.0
    %531 = vmatpush1.xpose.msra.mxu0 %v508
    %532 = vmatprep.subr.mxu0 0.0
    %533 = vmatpush1.xpose.msra.mxu0 %v511
    %534 = vmatprep.subr.mxu0 0.0
    %535 = vmatpush1.xpose.msra.mxu0 %v514
    %536 = vmatprep.subr.mxu0 0.0
    %537 = vmatpush1.xpose.msra.mxu0 %v517
    %538 = vmatprep.subr.mxu0 0.0
    %539 = vmatpush1.xpose.msra.mxu0 %v520
    %540 = vmatprep.subr.mxu0 0.0
    %541 = vmatpush1.xpose.msra.mxu0 %v523
    %542 = vmatprep.subr.mxu0 0.0
    %543 = vmatpush1.xpose.msra.mxu0 %v526
    %544 = vmatprep.subr.mxu0 0.0
    %545 = vmatpush1.xpose.msra.mxu0 0.0
    %546 = vmatprep.subr.mxu0 0.0
    %547 = vmatpush1.xpose.msra.mxu0 0.0
    %548 = vmatprep.subr.mxu0 0.0
    %549 = vmatpush1.xpose.msra.mxu0 0.0
    %550 = vmatprep.subr.mxu0 0.0
    %551 = vmatpush1.xpose.msra.mxu0 0.0
    %552 = vmatprep.subr.mxu0 0.0
    %553 = vmatpush1.xpose.msra.mxu0 0.0
    %554 = vmatprep.subr.mxu0 0.0
    %555 = vmatpush1.xpose.msra.mxu0 0.0
    %556 = vmatprep.subr.mxu0 0.0
    %557 = vmatpush1.xpose.msra.mxu0 0.0
    %558 = vmatprep.subr.mxu0 0.0
    %559 = vmatpush1.xpose.msra.mxu0 0.0
    %560 = vmatprep.subr.mxu0 0.0
    %561 = vmatpush1.xpose.msra.mxu0 0.0
    %562 = vmatprep.subr.mxu0 0.0
    %563 = vmatpush1.xpose.msra.mxu0 0.0
    %564 = vmatprep.subr.mxu0 0.0
    %565 = vmatpush1.xpose.msra.mxu0 0.0
    %566 = vmatprep.subr.mxu0 0.0
    %567 = vmatpush1.xpose.msra.mxu0 0.0
    %568 = vmatprep.subr.mxu0 0.0
    %569 = vmatpush1.xpose.msra.mxu0 0.0
    %570 = vmatprep.subr.mxu0 0.0
    %571 = vmatpush1.xpose.msra.mxu0 0.0
    %572 = vmatprep.subr.mxu0 0.0
    %573 = vmatpush1.xpose.msra.mxu0 0.0
    %574 = vmatprep.subr.mxu0 0.0
    %575 = vmatpush1.xpose.msra.mxu0 0.0
    %576 = vmatprep.subr.mxu0 0.0
    %577 = vmatpush1.xpose.msra.mxu0 0.0
    %578 = vmatprep.subr.mxu0 0.0
    %579 = vmatpush1.xpose.msra.mxu0 0.0
    %580 = vmatprep.subr.mxu0 0.0
    %581 = vmatpush1.xpose.msra.mxu0 0.0
    %582 = vmatprep.subr.mxu0 0.0
    %583 = vmatpush1.xpose.msra.mxu0 0.0
    %584 = vmatprep.subr.mxu0 0.0
    %585 = vmatpush1.xpose.msra.mxu0 0.0
    %586 = vmatprep.subr.mxu0 0.0
    %587 = vmatpush1.xpose.msra.mxu0 0.0
    %588 = vmatprep.subr.mxu0 0.0
    %589 = vmatpush1.xpose.msra.mxu0 0.0
    %590 = vmatprep.subr.mxu0 0.0
    %591 = vmatpush1.xpose.msra.mxu0 0.0
    %592 = vmatprep.mubr.f32.mxu0 0.0
    %593 = vmatmul.mubr.f32.gmra.mrb[0].mxu0 %v502
    %v594 = vpop.f32.mrb[0].mxu0
    %v595 = vadd.f32 0.0, %v594
    %v596 = vpop.f32.mrb[0].mxu0
    %597 = vdwg.mxu0
    %v599 = vsel %vm500, %v133, 0
    %v602 = vsel %vm500, %v304, 0
    %v605 = vsel %vm500, %v309, 0
    %v608 = vsel %vm500, %v314, 0
    %v611 = vsel %vm500, %v319, 0
    %v614 = vsel %vm500, %v324, 0
    %v617 = vsel %vm500, %v329, 0
    %v620 = vsel %vm500, %v334, 0
    %v623 = vsel %vm500, %v339, 0
    %625 = vmatprep.subr.mxu0 0.0
    %626 = vmatpush1.xpose.msra.mxu0 %v602
    %627 = vmatprep.subr.mxu0 0.0
    %628 = vmatpush1.xpose.msra.mxu0 %v605
    %629 = vmatprep.subr.mxu0 0.0
    %630 = vmatpush1.xpose.msra.mxu0 %v608
    %631 = vmatprep.subr.mxu0 0.0
    %632 = vmatpush1.xpose.msra.mxu0 %v611
    %633 = vmatprep.subr.mxu0 0.0
    %634 = vmatpush1.xpose.msra.mxu0 %v614
    %635 = vmatprep.subr.mxu0 0.0
    %636 = vmatpush1.xpose.msra.mxu0 %v617
    %637 = vmatprep.subr.mxu0 0.0
    %638 = vmatpush1.xpose.msra.mxu0 %v620
    %639 = vmatprep.subr.mxu0 0.0
    %640 = vmatpush1.xpose.msra.mxu0 %v623
    %641 = vmatprep.subr.mxu0 0.0
    %642 = vmatpush1.xpose.msra.mxu0 0.0
    %643 = vmatprep.subr.mxu0 0.0
    %644 = vmatpush1.xpose.msra.mxu0 0.0
    %645 = vmatprep.subr.mxu0 0.0
    %646 = vmatpush1.xpose.msra.mxu0 0.0
    %647 = vmatprep.subr.mxu0 0.0
    %648 = vmatpush1.xpose.msra.mxu0 0.0
    %649 = vmatprep.subr.mxu0 0.0
    %650 = vmatpush1.xpose.msra.mxu0 0.0
    %651 = vmatprep.subr.mxu0 0.0
    %652 = vmatpush1.xpose.msra.mxu0 0.0
    %653 = vmatprep.subr.mxu0 0.0
    %654 = vmatpush1.xpose.msra.mxu0 0.0
    %655 = vmatprep.subr.mxu0 0.0
    %656 = vmatpush1.xpose.msra.mxu0 0.0
    %657 = vmatprep.subr.mxu0 0.0
    %658 = vmatpush1.xpose.msra.mxu0 0.0
    %659 = vmatprep.subr.mxu0 0.0
    %660 = vmatpush1.xpose.msra.mxu0 0.0
    %661 = vmatprep.subr.mxu0 0.0
    %662 = vmatpush1.xpose.msra.mxu0 0.0
    %663 = vmatprep.subr.mxu0 0.0
    %664 = vmatpush1.xpose.msra.mxu0 0.0
    %665 = vmatprep.subr.mxu0 0.0
    %666 = vmatpush1.xpose.msra.mxu0 0.0
    %667 = vmatprep.subr.mxu0 0.0
    %668 = vmatpush1.xpose.msra.mxu0 0.0
    %669 = vmatprep.subr.mxu0 0.0
    %670 = vmatpush1.xpose.msra.mxu0 0.0
    %671 = vmatprep.subr.mxu0 0.0
    %672 = vmatpush1.xpose.msra.mxu0 0.0
    %673 = vmatprep.subr.mxu0 0.0
    %674 = vmatpush1.xpose.msra.mxu0 0.0
    %675 = vmatprep.subr.mxu0 0.0
    %676 = vmatpush1.xpose.msra.mxu0 0.0
    %677 = vmatprep.subr.mxu0 0.0
    %678 = vmatpush1.xpose.msra.mxu0 0.0
    %679 = vmatprep.subr.mxu0 0.0
    %680 = vmatpush1.xpose.msra.mxu0 0.0
    %681 = vmatprep.subr.mxu0 0.0
    %682 = vmatpush1.xpose.msra.mxu0 0.0
    %683 = vmatprep.subr.mxu0 0.0
    %684 = vmatpush1.xpose.msra.mxu0 0.0
    %685 = vmatprep.subr.mxu0 0.0
    %686 = vmatpush1.xpose.msra.mxu0 0.0
    %687 = vmatprep.subr.mxu0 0.0
    %688 = vmatpush1.xpose.msra.mxu0 0.0
    %689 = vmatprep.mubr.f32.mxu0 0.0
    %690 = vmatmul.mubr.f32.gmra.mrb[0].mxu0 %v599
    %v691 = vpop.f32.mrb[0].mxu0
    %v692 = vadd.f32 0.0, %v691
    %v693 = vpop.f32.mrb[0].mxu0
    %694 = vdwg.mxu0
    %vm695 = vcmask 523264
    %v696 = vsel %vm695, %v595, -inf
    %697 = vmax.xlane.f32.xlu0 %v696
    %v698 = vpop.xlane.xlu0 %697
    %v699 = vsel %vm695, %v692, -inf
    %700 = vmax.xlane.f32.xlu0 %v699
    %v701 = vpop.xlane.xlu0 %700
    %v702 = vsub.f32 %v595, %v698
    %v703 = vsub.f32 %v692, %v701
    %v704 = vmul.f32 %v702, 1.442695
    %v705 = vpow.pop %v704
    %v706 = vmul.f32 %v703, 1.442695
    %v707 = vpow.pop %v706
    %v708 = vsel %vm695, %v705, 0.0
    %709 = vadd.xlane.f32.xlu0 %v708
    %v710 = vpop.xlane.xlu0 %709
    %v711 = vsel %vm695, %v707, 0.0
    %712 = vadd.xlane.f32.xlu0 %v711
    %v713 = vpop.xlane.xlu0 %712
    %v715 = vsel %vm695, %v705, 0
    %717 = vmatprep.subr.mxu0 0.0
    %718 = vmatpush1.msra.mxu0 %v422
    %719 = vmatprep.subr.mxu0 0.0
    %720 = vmatpush1.msra.mxu0 %v427
    %721 = vmatprep.subr.mxu0 0.0
    %722 = vmatpush1.msra.mxu0 %v432
    %723 = vmatprep.subr.mxu0 0.0
    %724 = vmatpush1.msra.mxu0 %v437
    %725 = vmatprep.subr.mxu0 0.0
    %726 = vmatpush1.msra.mxu0 %v442
    %727 = vmatprep.subr.mxu0 0.0
    %728 = vmatpush1.msra.mxu0 %v447
    %729 = vmatprep.subr.mxu0 0.0
    %730 = vmatpush1.msra.mxu0 %v452
    %731 = vmatprep.subr.mxu0 0.0
    %732 = vmatpush1.msra.mxu0 %v457
    %733 = vmatprep.subr.mxu0 0.0
    %734 = vmatpush1.msra.mxu0 0.0
    %735 = vmatprep.subr.mxu0 0.0
    %736 = vmatpush1.msra.mxu0 0.0
    %737 = vmatprep.subr.mxu0 0.0
    %738 = vmatpush1.msra.mxu0 0.0
    %739 = vmatprep.subr.mxu0 0.0
    %740 = vmatpush1.msra.mxu0 0.0
    %741 = vmatprep.subr.mxu0 0.0
    %742 = vmatpush1.msra.mxu0 0.0
    %743 = vmatprep.subr.mxu0 0.0
    %744 = vmatpush1.msra.mxu0 0.0
    %745 = vmatprep.subr.mxu0 0.0
    %746 = vmatpush1.msra.mxu0 0.0
    %747 = vmatprep.subr.mxu0 0.0
    %748 = vmatpush1.msra.mxu0 0.0
    %749 = vmatprep.subr.mxu0 0.0
    %750 = vmatpush1.msra.mxu0 0.0
    %751 = vmatprep.subr.mxu0 0.0
    %752 = vmatpush1.msra.mxu0 0.0
    %753 = vmatprep.subr.mxu0 0.0
    %754 = vmatpush1.msra.mxu0 0.0
    %755 = vmatprep.subr.mxu0 0.0
    %756 = vmatpush1.msra.mxu0 0.0
    %757 = vmatprep.subr.mxu0 0.0
    %758 = vmatpush1.msra.mxu0 0.0
    %759 = vmatprep.subr.mxu0 0.0
    %760 = vmatpush1.msra.mxu0 0.0
    %761 = vmatprep.subr.mxu0 0.0
    %762 = vmatpush1.msra.mxu0 0.0
    %763 = vmatprep.subr.mxu0 0.0
    %764 = vmatpush1.msra.mxu0 0.0
    %765 = vmatprep.subr.mxu0 0.0
    %766 = vmatpush1.msra.mxu0 0.0
    %767 = vmatprep.subr.mxu0 0.0
    %768 = vmatpush1.msra.mxu0 0.0
    %769 = vmatprep.subr.mxu0 0.0
    %770 = vmatpush1.msra.mxu0 0.0
    %771 = vmatprep.subr.mxu0 0.0
    %772 = vmatpush1.msra.mxu0 0.0
    %773 = vmatprep.subr.mxu0 0.0
    %774 = vmatpush1.msra.mxu0 0.0
    %775 = vmatprep.subr.mxu0 0.0
    %776 = vmatpush1.msra.mxu0 0.0
    %777 = vmatprep.subr.mxu0 0.0
    %778 = vmatpush1.msra.mxu0 0.0
    %779 = vmatprep.subr.mxu0 0.0
    %780 = vmatpush1.msra.mxu0 0.0
    %781 = vmatprep.mubr.f32.mxu0 0.0
    %782 = vmatmul.mubr.f32.gmra.mrb[0].mxu0 %v715
    %v783 = vpop.f32.mrb[0].mxu0
    %v784 = vadd.f32 0.0, %v783
    %v785 = vpop.f32.mrb[0].mxu0
    %786 = vdwg.mxu0
    %v788 = vsel %vm695, %v707, 0
    %790 = vmatprep.subr.mxu0 0.0
    %791 = vmatpush1.msra.mxu0 %v462
    %792 = vmatprep.subr.mxu0 0.0
    %793 = vmatpush1.msra.mxu0 %v467
    %794 = vmatprep.subr.mxu0 0.0
    %795 = vmatpush1.msra.mxu0 %v472
    %796 = vmatprep.subr.mxu0 0.0
    %797 = vmatpush1.msra.mxu0 %v477
    %798 = vmatprep.subr.mxu0 0.0
    %799 = vmatpush1.msra.mxu0 %v482
    %800 = vmatprep.subr.mxu0 0.0
    %801 = vmatpush1.msra.mxu0 %v487
    %802 = vmatprep.subr.mxu0 0.0
    %803 = vmatpush1.msra.mxu0 %v492
    %804 = vmatprep.subr.mxu0 0.0
    %805 = vmatpush1.msra.mxu0 %v497
    %806 = vmatprep.subr.mxu0 0.0
    %807 = vmatpush1.msra.mxu0 0.0
    %808 = vmatprep.subr.mxu0 0.0
    %809 = vmatpush1.msra.mxu0 0.0
    %810 = vmatprep.subr.mxu0 0.0
    %811 = vmatpush1.msra.mxu0 0.0
    %812 = vmatprep.subr.mxu0 0.0
    %813 = vmatpush1.msra.mxu0 0.0
    %814 = vmatprep.subr.mxu0 0.0
    %815 = vmatpush1.msra.mxu0 0.0
    %816 = vmatprep.subr.mxu0 0.0
    %817 = vmatpush1.msra.mxu0 0.0
    %818 = vmatprep.subr.mxu0 0.0
    %819 = vmatpush1.msra.mxu0 0.0
    %820 = vmatprep.subr.mxu0 0.0
    %821 = vmatpush1.msra.mxu0 0.0
    %822 = vmatprep.subr.mxu0 0.0
    %823 = vmatpush1.msra.mxu0 0.0
    %824 = vmatprep.subr.mxu0 0.0
    %825 = vmatpush1.msra.mxu0 0.0
    %826 = vmatprep.subr.mxu0 0.0
    %827 = vmatpush1.msra.mxu0 0.0
    %828 = vmatprep.subr.mxu0 0.0
    %829 = vmatpush1.msra.mxu0 0.0
    %830 = vmatprep.subr.mxu0 0.0
    %831 = vmatpush1.msra.mxu0 0.0
    %832 = vmatprep.subr.mxu0 0.0
    %833 = vmatpush1.msra.mxu0 0.0
    %834 = vmatprep.subr.mxu0 0.0
    %835 = vmatpush1.msra.mxu0 0.0
    %836 = vmatprep.subr.mxu0 0.0
    %837 = vmatpush1.msra.mxu0 0.0
    %838 = vmatprep.subr.mxu0 0.0
    %839 = vmatpush1.msra.mxu0 0.0
    %840 = vmatprep.subr.mxu0 0.0
    %841 = vmatpush1.msra.mxu0 0.0
    %842 = vmatprep.subr.mxu0 0.0
    %843 = vmatpush1.msra.mxu0 0.0
    %844 = vmatprep.subr.mxu0 0.0
    %845 = vmatpush1.msra.mxu0 0.0
    %846 = vmatprep.subr.mxu0 0.0
    %847 = vmatpush1.msra.mxu0 0.0
    %848 = vmatprep.subr.mxu0 0.0
    %849 = vmatpush1.msra.mxu0 0.0
    %850 = vmatprep.subr.mxu0 0.0
    %851 = vmatpush1.msra.mxu0 0.0
    %852 = vmatprep.subr.mxu0 0.0
    %853 = vmatpush1.msra.mxu0 0.0
    %854 = vmatprep.mubr.f32.mxu0 0.0
    %855 = vmatmul.mubr.f32.gmra.mrb[0].mxu0 %v788
    %v856 = vpop.f32.mrb[0].mxu0
    %v857 = vadd.f32 0.0, %v856
    %v858 = vpop.f32.mrb[0].mxu0
    %859 = vdwg.mxu0
    %v860 = vrcp.pop %v710
    %v861 = vrcp.pop %v713
    %v862 = vmul.f32 %v784, %v860
    %v863 = vmul.f32 %v857, %v861
    %v864 = vld [vmem:[%s3] sm:$0xff]
    %s865 = scalar_lea.vmem %s2, 32
    %v866 = vld [vmem:[%s865] sm:$0xff]
    %v867 = vld [vmem:[%s865 + $0x8] sm:$0xff]
    %v868 = vld [vmem:[%s865 + $0x10] sm:$0xff]
    %v869 = vld [vmem:[%s865 + $0x18] sm:$0xff]
    %s870 = scalar_lea.vmem %s4, 1
    %v871 = vld [vmem:[%s870] sm:$0x1]
    %v873 = vlaneseq
    %v874 = vshrl.u32 %v873, 7
    %v875 = vsub.s32 0, %v874
    %v876 = vrot.slane %v871, %v875
    %878 = vmatprep.subr.mxu0 0.0
    %879 = vmatpush1.msra.mxu0 %v866
    %880 = vmatprep.subr.mxu0 0.0
    %881 = vmatpush1.msra.mxu0 %v867
    %882 = vmatprep.subr.mxu0 0.0
    %883 = vmatpush1.msra.mxu0 %v868
    %884 = vmatprep.subr.mxu0 0.0
    %885 = vmatpush1.msra.mxu0 %v869
    %886 = vmatprep.subr.mxu0 0.0
    %887 = vmatpush1.msra.mxu0 0.0
    %888 = vmatprep.subr.mxu0 0.0
    %889 = vmatpush1.msra.mxu0 0.0
    %890 = vmatprep.subr.mxu0 0.0
    %891 = vmatpush1.msra.mxu0 0.0
    %892 = vmatprep.subr.mxu0 0.0
    %893 = vmatpush1.msra.mxu0 0.0
    %894 = vmatprep.subr.mxu0 0.0
    %895 = vmatpush1.msra.mxu0 0.0
    %896 = vmatprep.subr.mxu0 0.0
    %897 = vmatpush1.msra.mxu0 0.0
    %898 = vmatprep.subr.mxu0 0.0
    %899 = vmatpush1.msra.mxu0 0.0
    %900 = vmatprep.subr.mxu0 0.0
    %901 = vmatpush1.msra.mxu0 0.0
    %902 = vmatprep.subr.mxu0 0.0
    %903 = vmatpush1.msra.mxu0 0.0
    %904 = vmatprep.subr.mxu0 0.0
    %905 = vmatpush1.msra.mxu0 0.0
    %906 = vmatprep.subr.mxu0 0.0
    %907 = vmatpush1.msra.mxu0 0.0
    %908 = vmatprep.subr.mxu0 0.0
    %909 = vmatpush1.msra.mxu0 0.0
    %910 = vmatprep.subr.mxu0 0.0
    %911 = vmatpush1.msra.mxu0 0.0
    %912 = vmatprep.subr.mxu0 0.0
    %913 = vmatpush1.msra.mxu0 0.0
    %914 = vmatprep.subr.mxu0 0.0
    %915 = vmatpush1.msra.mxu0 0.0
    %916 = vmatprep.subr.mxu0 0.0
    %917 = vmatpush1.msra.mxu0 0.0
    %918 = vmatprep.subr.mxu0 0.0
    %919 = vmatpush1.msra.mxu0 0.0
    %920 = vmatprep.subr.mxu0 0.0
    %921 = vmatpush1.msra.mxu0 0.0
    %922 = vmatprep.subr.mxu0 0.0
    %923 = vmatpush1.msra.mxu0 0.0
    %924 = vmatprep.subr.mxu0 0.0
    %925 = vmatpush1.msra.mxu0 0.0
    %926 = vmatprep.subr.mxu0 0.0
    %927 = vmatpush1.msra.mxu0 0.0
    %928 = vmatprep.subr.mxu0 0.0
    %929 = vmatpush1.msra.mxu0 0.0
    %930 = vmatprep.subr.mxu0 0.0
    %931 = vmatpush1.msra.mxu0 0.0
    %932 = vmatprep.subr.mxu0 0.0
    %933 = vmatpush1.msra.mxu0 0.0
    %934 = vmatprep.subr.mxu0 0.0
    %935 = vmatpush1.msra.mxu0 0.0
    %936 = vmatprep.subr.mxu0 0.0
    %937 = vmatpush1.msra.mxu0 0.0
    %938 = vmatprep.subr.mxu0 0.0
    %939 = vmatpush1.msra.mxu0 0.0
    %940 = vmatprep.subr.mxu0 0.0
    %941 = vmatpush1.msra.mxu0 0.0
    %942 = vmatprep.mubr.f32.mxu0 0.0
    %943 = vmatmul.mubr.f32.gmra.mrb[0].mxu0 %v56
    %v944 = vpop.f32.mrb[0].mxu0
    %v945 = vadd.f32 %v876, %v944
    %v946 = vpop.f32.mrb[0].mxu0
    %947 = vmatprep.mubr.f32.mxu0 0.0
    %948 = vmatmul.mubr.f32.gmra.mrb[0].mxu0 %v59
    %v949 = vpop.f32.mrb[0].mxu0
    %v950 = vadd.f32 %v876, %v949
    %v951 = vpop.f32.mrb[0].mxu0
    %952 = vdwg.mxu0
    %s953 = scalar_lea.vmem %s2, 160
    %v954 = vld [vmem:[%s953] sm:$0xff]
    %v955 = vld [vmem:[%s953 + $0x8] sm:$0xff]
    %v956 = vld [vmem:[%s953 + $0x10] sm:$0xff]
    %v957 = vld [vmem:[%s953 + $0x18] sm:$0xff]
    %s958 = scalar_lea.vmem %s4, 5
    %v959 = vld [vmem:[%s958] sm:$0x1]
    %v961 = vlaneseq
    %v962 = vshrl.u32 %v961, 7
    %v963 = vsub.s32 0, %v962
    %v964 = vrot.slane %v959, %v963
    %966 = vmatprep.subr.mxu0 0.0
    %967 = vmatpush1.msra.mxu0 %v954
    %968 = vmatprep.subr.mxu0 0.0
    %969 = vmatpush1.msra.mxu0 %v955
    %970 = vmatprep.subr.mxu0 0.0
    %971 = vmatpush1.msra.mxu0 %v956
    %972 = vmatprep.subr.mxu0 0.0
    %973 = vmatpush1.msra.mxu0 %v957
    %974 = vmatprep.subr.mxu0 0.0
    %975 = vmatpush1.msra.mxu0 0.0
    %976 = vmatprep.subr.mxu0 0.0
    %977 = vmatpush1.msra.mxu0 0.0
    %978 = vmatprep.subr.mxu0 0.0
    %979 = vmatpush1.msra.mxu0 0.0
    %980 = vmatprep.subr.mxu0 0.0
    %981 = vmatpush1.msra.mxu0 0.0
    %982 = vmatprep.subr.mxu0 0.0
    %983 = vmatpush1.msra.mxu0 0.0
    %984 = vmatprep.subr.mxu0 0.0
    %985 = vmatpush1.msra.mxu0 0.0
    %986 = vmatprep.subr.mxu0 0.0
    %987 = vmatpush1.msra.mxu0 0.0
    %988 = vmatprep.subr.mxu0 0.0
    %989 = vmatpush1.msra.mxu0 0.0
    %990 = vmatprep.subr.mxu0 0.0
    %991 = vmatpush1.msra.mxu0 0.0
    %992 = vmatprep.subr.mxu0 0.0
    %993 = vmatpush1.msra.mxu0 0.0
    %994 = vmatprep.subr.mxu0 0.0
    %995 = vmatpush1.msra.mxu0 0.0
    %996 = vmatprep.subr.mxu0 0.0
    %997 = vmatpush1.msra.mxu0 0.0
    %998 = vmatprep.subr.mxu0 0.0
    %999 = vmatpush1.msra.mxu0 0.0
    %1000 = vmatprep.subr.mxu0 0.0
    %1001 = vmatpush1.msra.mxu0 0.0
    %1002 = vmatprep.subr.mxu0 0.0
    %1003 = vmatpush1.msra.mxu0 0.0
    %1004 = vmatprep.subr.mxu0 0.0
    %1005 = vmatpush1.msra.mxu0 0.0
    %1006 = vmatprep.subr.mxu0 0.0
    %1007 = vmatpush1.msra.mxu0 0.0
    %1008 = vmatprep.subr.mxu0 0.0
    %1009 = vmatpush1.msra.mxu0 0.0
    %1010 = vmatprep.subr.mxu0 0.0
    %1011 = vmatpush1.msra.mxu0 0.0
    %1012 = vmatprep.subr.mxu0 0.0
    %1013 = vmatpush1.msra.mxu0 0.0
    %1014 = vmatprep.subr.mxu0 0.0
    %1015 = vmatpush1.msra.mxu0 0.0
    %1016 = vmatprep.subr.mxu0 0.0
    %1017 = vmatpush1.msra.mxu0 0.0
    %1018 = vmatprep.subr.mxu0 0.0
    %1019 = vmatpush1.msra.mxu0 0.0
    %1020 = vmatprep.subr.mxu0 0.0
    %1021 = vmatpush1.msra.mxu0 0.0
    %1022 = vmatprep.subr.mxu0 0.0
    %1023 = vmatpush1.msra.mxu0 0.0
    %1024 = vmatprep.subr.mxu0 0.0
    %1025 = vmatpush1.msra.mxu0 0.0
    %1026 = vmatprep.subr.mxu0 0.0
    %1027 = vmatpush1.msra.mxu0 0.0
    %1028 = vmatprep.subr.mxu0 0.0
    %1029 = vmatpush1.msra.mxu0 0.0
    %1030 = vmatprep.mubr.f32.mxu0 0.0
    %1031 = vmatmul.mubr.f32.gmra.mrb[0].mxu0 %v150
    %v1032 = vpop.f32.mrb[0].mxu0
    %v1033 = vadd.f32 %v964, %v1032
    %v1034 = vpop.f32.mrb[0].mxu0
    %1035 = vmatprep.mubr.f32.mxu0 0.0
    %1036 = vmatmul.mubr.f32.gmra.mrb[0].mxu0 %v153
    %v1037 = vpop.f32.mrb[0].mxu0
    %v1038 = vadd.f32 %v964, %v1037
    %v1039 = vpop.f32.mrb[0].mxu0
    %1040 = vmatprep.mubr.f32.mxu0 0.0
    %1041 = vmatmul.mubr.f32.gmra.mrb[0].mxu0 %v156
    %v1042 = vpop.f32.mrb[0].mxu0
    %v1043 = vadd.f32 %v964, %v1042
    %v1044 = vpop.f32.mrb[0].mxu0
    %1045 = vmatprep.mubr.f32.mxu0 0.0
    %1046 = vmatmul.mubr.f32.gmra.mrb[0].mxu0 %v159
    %v1047 = vpop.f32.mrb[0].mxu0
    %v1048 = vadd.f32 %v964, %v1047
    %v1049 = vpop.f32.mrb[0].mxu0
    %1050 = vmatprep.mubr.f32.mxu0 0.0
    %1051 = vmatmul.mubr.f32.gmra.mrb[0].mxu0 %v162
    %v1052 = vpop.f32.mrb[0].mxu0
    %v1053 = vadd.f32 %v964, %v1052
    %v1054 = vpop.f32.mrb[0].mxu0
    %1055 = vmatprep.mubr.f32.mxu0 0.0
    %1056 = vmatmul.mubr.f32.gmra.mrb[0].mxu0 %v165
    %v1057 = vpop.f32.mrb[0].mxu0
    %v1058 = vadd.f32 %v964, %v1057
    %v1059 = vpop.f32.mrb[0].mxu0
    %1060 = vmatprep.mubr.f32.mxu0 0.0
    %1061 = vmatmul.mubr.f32.gmra.mrb[0].mxu0 %v168
    %v1062 = vpop.f32.mrb[0].mxu0
    %v1063 = vadd.f32 %v964, %v1062
    %v1064 = vpop.f32.mrb[0].mxu0
    %1065 = vmatprep.mubr.f32.mxu0 0.0
    %1066 = vmatmul.mubr.f32.gmra.mrb[0].mxu0 %v171
    %v1067 = vpop.f32.mrb[0].mxu0
    %v1068 = vadd.f32 %v964, %v1067
    %v1069 = vpop.f32.mrb[0].mxu0
    %1070 = vmatprep.mubr.f32.mxu0 0.0
    %1071 = vmatmul.mubr.f32.gmra.mrb[0].mxu0 %v174
    %v1072 = vpop.f32.mrb[0].mxu0
    %v1073 = vadd.f32 %v964, %v1072
    %v1074 = vpop.f32.mrb[0].mxu0
    %1075 = vmatprep.mubr.f32.mxu0 0.0
    %1076 = vmatmul.mubr.f32.gmra.mrb[0].mxu0 %v177
    %v1077 = vpop.f32.mrb[0].mxu0
    %v1078 = vadd.f32 %v964, %v1077
    %v1079 = vpop.f32.mrb[0].mxu0
    %1080 = vmatprep.mubr.f32.mxu0 0.0
    %1081 = vmatmul.mubr.f32.gmra.mrb[0].mxu0 %v180
    %v1082 = vpop.f32.mrb[0].mxu0
    %v1083 = vadd.f32 %v964, %v1082
    %v1084 = vpop.f32.mrb[0].mxu0
    %1085 = vmatprep.mubr.f32.mxu0 0.0
    %1086 = vmatmul.mubr.f32.gmra.mrb[0].mxu0 %v183
    %v1087 = vpop.f32.mrb[0].mxu0
    %v1088 = vadd.f32 %v964, %v1087
    %v1089 = vpop.f32.mrb[0].mxu0
    %1090 = vmatprep.mubr.f32.mxu0 0.0
    %1091 = vmatmul.mubr.f32.gmra.mrb[0].mxu0 %v186
    %v1092 = vpop.f32.mrb[0].mxu0
    %v1093 = vadd.f32 %v964, %v1092
    %v1094 = vpop.f32.mrb[0].mxu0
    %1095 = vmatprep.mubr.f32.mxu0 0.0
    %1096 = vmatmul.mubr.f32.gmra.mrb[0].mxu0 %v189
    %v1097 = vpop.f32.mrb[0].mxu0
    %v1098 = vadd.f32 %v964, %v1097
    %v1099 = vpop.f32.mrb[0].mxu0
    %1100 = vmatprep.mubr.f32.mxu0 0.0
    %1101 = vmatmul.mubr.f32.gmra.mrb[0].mxu0 %v192
    %v1102 = vpop.f32.mrb[0].mxu0
    %v1103 = vadd.f32 %v964, %v1102
    %v1104 = vpop.f32.mrb[0].mxu0
    %1105 = vmatprep.mubr.f32.mxu0 0.0
    %1106 = vmatmul.mubr.f32.gmra.mrb[0].mxu0 %v195
    %v1107 = vpop.f32.mrb[0].mxu0
    %v1108 = vadd.f32 %v964, %v1107
    %v1109 = vpop.f32.mrb[0].mxu0
    %1110 = vdwg.mxu0
    %s1111 = scalar_lea.vmem %s2, 288
    %v1112 = vld [vmem:[%s1111] sm:$0xff]
    %v1113 = vld [vmem:[%s1111 + $0x8] sm:$0xff]
    %v1114 = vld [vmem:[%s1111 + $0x10] sm:$0xff]
    %v1115 = vld [vmem:[%s1111 + $0x18] sm:$0xff]
    %s1116 = scalar_lea.vmem %s4, 9
    %v1117 = vld [vmem:[%s1116] sm:$0x1]
    %v1119 = vlaneseq
    %v1120 = vshrl.u32 %v1119, 7
    %v1121 = vsub.s32 0, %v1120
    %v1122 = vrot.slane %v1117, %v1121
    %1124 = vmatprep.subr.mxu0 0.0
    %1125 = vmatpush1.msra.mxu0 %v1112
    %1126 = vmatprep.subr.mxu0 0.0
    %1127 = vmatpush1.msra.mxu0 %v1113
    %1128 = vmatprep.subr.mxu0 0.0
    %1129 = vmatpush1.msra.mxu0 %v1114
    %1130 = vmatprep.subr.mxu0 0.0
    %1131 = vmatpush1.msra.mxu0 %v1115
    %1132 = vmatprep.subr.mxu0 0.0
    %1133 = vmatpush1.msra.mxu0 0.0
    %1134 = vmatprep.subr.mxu0 0.0
    %1135 = vmatpush1.msra.mxu0 0.0
    %1136 = vmatprep.subr.mxu0 0.0
    %1137 = vmatpush1.msra.mxu0 0.0
    %1138 = vmatprep.subr.mxu0 0.0
    %1139 = vmatpush1.msra.mxu0 0.0
    %1140 = vmatprep.subr.mxu0 0.0
    %1141 = vmatpush1.msra.mxu0 0.0
    %1142 = vmatprep.subr.mxu0 0.0
    %1143 = vmatpush1.msra.mxu0 0.0
    %1144 = vmatprep.subr.mxu0 0.0
    %1145 = vmatpush1.msra.mxu0 0.0
    %1146 = vmatprep.subr.mxu0 0.0
    %1147 = vmatpush1.msra.mxu0 0.0
    %1148 = vmatprep.subr.mxu0 0.0
    %1149 = vmatpush1.msra.mxu0 0.0
    %1150 = vmatprep.subr.mxu0 0.0
    %1151 = vmatpush1.msra.mxu0 0.0
    %1152 = vmatprep.subr.mxu0 0.0
    %1153 = vmatpush1.msra.mxu0 0.0
    %1154 = vmatprep.subr.mxu0 0.0
    %1155 = vmatpush1.msra.mxu0 0.0
    %1156 = vmatprep.subr.mxu0 0.0
    %1157 = vmatpush1.msra.mxu0 0.0
    %1158 = vmatprep.subr.mxu0 0.0
    %1159 = vmatpush1.msra.mxu0 0.0
    %1160 = vmatprep.subr.mxu0 0.0
    %1161 = vmatpush1.msra.mxu0 0.0
    %1162 = vmatprep.subr.mxu0 0.0
    %1163 = vmatpush1.msra.mxu0 0.0
    %1164 = vmatprep.subr.mxu0 0.0
    %1165 = vmatpush1.msra.mxu0 0.0
    %1166 = vmatprep.subr.mxu0 0.0
    %1167 = vmatpush1.msra.mxu0 0.0
    %1168 = vmatprep.subr.mxu0 0.0
    %1169 = vmatpush1.msra.mxu0 0.0
    %1170 = vmatprep.subr.mxu0 0.0
    %1171 = vmatpush1.msra.mxu0 0.0
    %1172 = vmatprep.subr.mxu0 0.0
    %1173 = vmatpush1.msra.mxu0 0.0
    %1174 = vmatprep.subr.mxu0 0.0
    %1175 = vmatpush1.msra.mxu0 0.0
    %1176 = vmatprep.subr.mxu0 0.0
    %1177 = vmatpush1.msra.mxu0 0.0
    %1178 = vmatprep.subr.mxu0 0.0
    %1179 = vmatpush1.msra.mxu0 0.0
    %1180 = vmatprep.subr.mxu0 0.0
    %1181 = vmatpush1.msra.mxu0 0.0
    %1182 = vmatprep.subr.mxu0 0.0
    %1183 = vmatpush1.msra.mxu0 0.0
    %1184 = vmatprep.subr.mxu0 0.0
    %1185 = vmatpush1.msra.mxu0 0.0
    %1186 = vmatprep.subr.mxu0 0.0
    %1187 = vmatpush1.msra.mxu0 0.0
    %1188 = vmatprep.mubr.f32.mxu0 0.0
    %1189 = vmatmul.mubr.f32.gmra.mrb[0].mxu0 %v150
    %v1190 = vpop.f32.mrb[0].mxu0
    %v1191 = vadd.f32 %v1122, %v1190
    %v1192 = vpop.f32.mrb[0].mxu0
    %1193 = vmatprep.mubr.f32.mxu0 0.0
    %1194 = vmatmul.mubr.f32.gmra.mrb[0].mxu0 %v153
    %v1195 = vpop.f32.mrb[0].mxu0
    %v1196 = vadd.f32 %v1122, %v1195
    %v1197 = vpop.f32.mrb[0].mxu0
    %1198 = vmatprep.mubr.f32.mxu0 0.0
    %1199 = vmatmul.mubr.f32.gmra.mrb[0].mxu0 %v156
    %v1200 = vpop.f32.mrb[0].mxu0
    %v1201 = vadd.f32 %v1122, %v1200
    %v1202 = vpop.f32.mrb[0].mxu0
    %1203 = vmatprep.mubr.f32.mxu0 0.0
    %1204 = vmatmul.mubr.f32.gmra.mrb[0].mxu0 %v159
    %v1205 = vpop.f32.mrb[0].mxu0
    %v1206 = vadd.f32 %v1122, %v1205
    %v1207 = vpop.f32.mrb[0].mxu0
    %1208 = vmatprep.mubr.f32.mxu0 0.0
    %1209 = vmatmul.mubr.f32.gmra.mrb[0].mxu0 %v162
    %v1210 = vpop.f32.mrb[0].mxu0
    %v1211 = vadd.f32 %v1122, %v1210
    %v1212 = vpop.f32.mrb[0].mxu0
    %1213 = vmatprep.mubr.f32.mxu0 0.0
    %1214 = vmatmul.mubr.f32.gmra.mrb[0].mxu0 %v165
    %v1215 = vpop.f32.mrb[0].mxu0
    %v1216 = vadd.f32 %v1122, %v1215
    %v1217 = vpop.f32.mrb[0].mxu0
    %1218 = vmatprep.mubr.f32.mxu0 0.0
    %1219 = vmatmul.mubr.f32.gmra.mrb[0].mxu0 %v168
    %v1220 = vpop.f32.mrb[0].mxu0
    %v1221 = vadd.f32 %v1122, %v1220
    %v1222 = vpop.f32.mrb[0].mxu0
    %1223 = vmatprep.mubr.f32.mxu0 0.0
    %1224 = vmatmul.mubr.f32.gmra.mrb[0].mxu0 %v171
    %v1225 = vpop.f32.mrb[0].mxu0
    %v1226 = vadd.f32 %v1122, %v1225
    %v1227 = vpop.f32.mrb[0].mxu0
    %1228 = vmatprep.mubr.f32.mxu0 0.0
    %1229 = vmatmul.mubr.f32.gmra.mrb[0].mxu0 %v174
    %v1230 = vpop.f32.mrb[0].mxu0
    %v1231 = vadd.f32 %v1122, %v1230
    %v1232 = vpop.f32.mrb[0].mxu0
    %1233 = vmatprep.mubr.f32.mxu0 0.0
    %1234 = vmatmul.mubr.f32.gmra.mrb[0].mxu0 %v177
    %v1235 = vpop.f32.mrb[0].mxu0
    %v1236 = vadd.f32 %v1122, %v1235
    %v1237 = vpop.f32.mrb[0].mxu0
    %1238 = vmatprep.mubr.f32.mxu0 0.0
    %1239 = vmatmul.mubr.f32.gmra.mrb[0].mxu0 %v180
    %v1240 = vpop.f32.mrb[0].mxu0
    %v1241 = vadd.f32 %v1122, %v1240
    %v1242 = vpop.f32.mrb[0].mxu0
    %1243 = vmatprep.mubr.f32.mxu0 0.0
    %1244 = vmatmul.mubr.f32.gmra.mrb[0].mxu0 %v183
    %v1245 = vpop.f32.mrb[0].mxu0
    %v1246 = vadd.f32 %v1122, %v1245
    %v1247 = vpop.f32.mrb[0].mxu0
    %1248 = vmatprep.mubr.f32.mxu0 0.0
    %1249 = vmatmul.mubr.f32.gmra.mrb[0].mxu0 %v186
    %v1250 = vpop.f32.mrb[0].mxu0
    %v1251 = vadd.f32 %v1122, %v1250
    %v1252 = vpop.f32.mrb[0].mxu0
    %1253 = vmatprep.mubr.f32.mxu0 0.0
    %1254 = vmatmul.mubr.f32.gmra.mrb[0].mxu0 %v189
    %v1255 = vpop.f32.mrb[0].mxu0
    %v1256 = vadd.f32 %v1122, %v1255
    %v1257 = vpop.f32.mrb[0].mxu0
    %1258 = vmatprep.mubr.f32.mxu0 0.0
    %1259 = vmatmul.mubr.f32.gmra.mrb[0].mxu0 %v192
    %v1260 = vpop.f32.mrb[0].mxu0
    %v1261 = vadd.f32 %v1122, %v1260
    %v1262 = vpop.f32.mrb[0].mxu0
    %1263 = vmatprep.mubr.f32.mxu0 0.0
    %1264 = vmatmul.mubr.f32.gmra.mrb[0].mxu0 %v195
    %v1265 = vpop.f32.mrb[0].mxu0
    %v1266 = vadd.f32 %v1122, %v1265
    %v1267 = vpop.f32.mrb[0].mxu0
    %1268 = vdwg.mxu0
    %v1270 = vsel %vm500, %v945, 0
    %v1273 = vsel %vm500, %v1033, 0
    %v1276 = vsel %vm500, %v1038, 0
    %v1279 = vsel %vm500, %v1043, 0
    %v1282 = vsel %vm500, %v1048, 0
    %v1285 = vsel %vm500, %v1053, 0
    %v1288 = vsel %vm500, %v1058, 0
    %v1291 = vsel %vm500, %v1063, 0
    %v1294 = vsel %vm500, %v1068, 0
    %1296 = vmatprep.subr.mxu0 0.0
    %1297 = vmatpush1.xpose.msra.mxu0 %v1273
    %1298 = vmatprep.subr.mxu0 0.0
    %1299 = vmatpush1.xpose.msra.mxu0 %v1276
    %1300 = vmatprep.subr.mxu0 0.0
    %1301 = vmatpush1.xpose.msra.mxu0 %v1279
    %1302 = vmatprep.subr.mxu0 0.0
    %1303 = vmatpush1.xpose.msra.mxu0 %v1282
    %1304 = vmatprep.subr.mxu0 0.0
    %1305 = vmatpush1.xpose.msra.mxu0 %v1285
    %1306 = vmatprep.subr.mxu0 0.0
    %1307 = vmatpush1.xpose.msra.mxu0 %v1288
    %1308 = vmatprep.subr.mxu0 0.0
    %1309 = vmatpush1.xpose.msra.mxu0 %v1291
    %1310 = vmatprep.subr.mxu0 0.0
    %1311 = vmatpush1.xpose.msra.mxu0 %v1294
    %1312 = vmatprep.subr.mxu0 0.0
    %1313 = vmatpush1.xpose.msra.mxu0 0.0
    %1314 = vmatprep.subr.mxu0 0.0
    %1315 = vmatpush1.xpose.msra.mxu0 0.0
    %1316 = vmatprep.subr.mxu0 0.0
    %1317 = vmatpush1.xpose.msra.mxu0 0.0
    %1318 = vmatprep.subr.mxu0 0.0
    %1319 = vmatpush1.xpose.msra.mxu0 0.0
    %1320 = vmatprep.subr.mxu0 0.0
    %1321 = vmatpush1.xpose.msra.mxu0 0.0
    %1322 = vmatprep.subr.mxu0 0.0
    %1323 = vmatpush1.xpose.msra.mxu0 0.0
    %1324 = vmatprep.subr.mxu0 0.0
    %1325 = vmatpush1.xpose.msra.mxu0 0.0
    %1326 = vmatprep.subr.mxu0 0.0
    %1327 = vmatpush1.xpose.msra.mxu0 0.0
    %1328 = vmatprep.subr.mxu0 0.0
    %1329 = vmatpush1.xpose.msra.mxu0 0.0
    %1330 = vmatprep.subr.mxu0 0.0
    %1331 = vmatpush1.xpose.msra.mxu0 0.0
    %1332 = vmatprep.subr.mxu0 0.0
    %1333 = vmatpush1.xpose.msra.mxu0 0.0
    %1334 = vmatprep.subr.mxu0 0.0
    %1335 = vmatpush1.xpose.msra.mxu0 0.0
    %1336 = vmatprep.subr.mxu0 0.0
    %1337 = vmatpush1.xpose.msra.mxu0 0.0
    %1338 = vmatprep.subr.mxu0 0.0
    %1339 = vmatpush1.xpose.msra.mxu0 0.0
    %1340 = vmatprep.subr.mxu0 0.0
    %1341 = vmatpush1.xpose.msra.mxu0 0.0
    %1342 = vmatprep.subr.mxu0 0.0
    %1343 = vmatpush1.xpose.msra.mxu0 0.0
    %1344 = vmatprep.subr.mxu0 0.0
    %1345 = vmatpush1.xpose.msra.mxu0 0.0
    %1346 = vmatprep.subr.mxu0 0.0
    %1347 = vmatpush1.xpose.msra.mxu0 0.0
    %1348 = vmatprep.subr.mxu0 0.0
    %1349 = vmatpush1.xpose.msra.mxu0 0.0
    %1350 = vmatprep.subr.mxu0 0.0
    %1351 = vmatpush1.xpose.msra.mxu0 0.0
    %1352 = vmatprep.subr.mxu0 0.0
    %1353 = vmatpush1.xpose.msra.mxu0 0.0
    %1354 = vmatprep.subr.mxu0 0.0
    %1355 = vmatpush1.xpose.msra.mxu0 0.0
    %1356 = vmatprep.subr.mxu0 0.0
    %1357 = vmatpush1.xpose.msra.mxu0 0.0
    %1358 = vmatprep.subr.mxu0 0.0
    %1359 = vmatpush1.xpose.msra.mxu0 0.0
    %1360 = vmatprep.mubr.f32.mxu0 0.0
    %1361 = vmatmul.mubr.f32.gmra.mrb[0].mxu0 %v1270
    %v1362 = vpop.f32.mrb[0].mxu0
    %v1363 = vadd.f32 0.0, %v1362
    %v1364 = vpop.f32.mrb[0].mxu0
    %1365 = vdwg.mxu0
    %v1367 = vsel %vm500, %v950, 0
    %v1370 = vsel %vm500, %v1073, 0
    %v1373 = vsel %vm500, %v1078, 0
    %v1376 = vsel %vm500, %v1083, 0
    %v1379 = vsel %vm500, %v1088, 0
    %v1382 = vsel %vm500, %v1093, 0
    %v1385 = vsel %vm500, %v1098, 0
    %v1388 = vsel %vm500, %v1103, 0
    %v1391 = vsel %vm500, %v1108, 0
    %1393 = vmatprep.subr.mxu0 0.0
    %1394 = vmatpush1.xpose.msra.mxu0 %v1370
    %1395 = vmatprep.subr.mxu0 0.0
    %1396 = vmatpush1.xpose.msra.mxu0 %v1373
    %1397 = vmatprep.subr.mxu0 0.0
    %1398 = vmatpush1.xpose.msra.mxu0 %v1376
    %1399 = vmatprep.subr.mxu0 0.0
    %1400 = vmatpush1.xpose.msra.mxu0 %v1379
    %1401 = vmatprep.subr.mxu0 0.0
    %1402 = vmatpush1.xpose.msra.mxu0 %v1382
    %1403 = vmatprep.subr.mxu0 0.0
    %1404 = vmatpush1.xpose.msra.mxu0 %v1385
    %1405 = vmatprep.subr.mxu0 0.0
    %1406 = vmatpush1.xpose.msra.mxu0 %v1388
    %1407 = vmatprep.subr.mxu0 0.0
    %1408 = vmatpush1.xpose.msra.mxu0 %v1391
    %1409 = vmatprep.subr.mxu0 0.0
    %1410 = vmatpush1.xpose.msra.mxu0 0.0
    %1411 = vmatprep.subr.mxu0 0.0
    %1412 = vmatpush1.xpose.msra.mxu0 0.0
    %1413 = vmatprep.subr.mxu0 0.0
    %1414 = vmatpush1.xpose.msra.mxu0 0.0
    %1415 = vmatprep.subr.mxu0 0.0
    %1416 = vmatpush1.xpose.msra.mxu0 0.0
    %1417 = vmatprep.subr.mxu0 0.0
    %1418 = vmatpush1.xpose.msra.mxu0 0.0
    %1419 = vmatprep.subr.mxu0 0.0
    %1420 = vmatpush1.xpose.msra.mxu0 0.0
    %1421 = vmatprep.subr.mxu0 0.0
    %1422 = vmatpush1.xpose.msra.mxu0 0.0
    %1423 = vmatprep.subr.mxu0 0.0
    %1424 = vmatpush1.xpose.msra.mxu0 0.0
    %1425 = vmatprep.subr.mxu0 0.0
    %1426 = vmatpush1.xpose.msra.mxu0 0.0
    %1427 = vmatprep.subr.mxu0 0.0
    %1428 = vmatpush1.xpose.msra.mxu0 0.0
    %1429 = vmatprep.subr.mxu0 0.0
    %1430 = vmatpush1.xpose.msra.mxu0 0.0
    %1431 = vmatprep.subr.mxu0 0.0
    %1432 = vmatpush1.xpose.msra.mxu0 0.0
    %1433 = vmatprep.subr.mxu0 0.0
    %1434 = vmatpush1.xpose.msra.mxu0 0.0
    %1435 = vmatprep.subr.mxu0 0.0
    %1436 = vmatpush1.xpose.msra.mxu0 0.0
    %1437 = vmatprep.subr.mxu0 0.0
    %1438 = vmatpush1.xpose.msra.mxu0 0.0
    %1439 = vmatprep.subr.mxu0 0.0
    %1440 = vmatpush1.xpose.msra.mxu0 0.0
    %1441 = vmatprep.subr.mxu0 0.0
    %1442 = vmatpush1.xpose.msra.mxu0 0.0
    %1443 = vmatprep.subr.mxu0 0.0
    %1444 = vmatpush1.xpose.msra.mxu0 0.0
    %1445 = vmatprep.subr.mxu0 0.0
    %1446 = vmatpush1.xpose.msra.mxu0 0.0
    %1447 = vmatprep.subr.mxu0 0.0
    %1448 = vmatpush1.xpose.msra.mxu0 0.0
    %1449 = vmatprep.subr.mxu0 0.0
    %1450 = vmatpush1.xpose.msra.mxu0 0.0
    %1451 = vmatprep.subr.mxu0 0.0
    %1452 = vmatpush1.xpose.msra.mxu0 0.0
    %1453 = vmatprep.subr.mxu0 0.0
    %1454 = vmatpush1.xpose.msra.mxu0 0.0
    %1455 = vmatprep.subr.mxu0 0.0
    %1456 = vmatpush1.xpose.msra.mxu0 0.0
    %1457 = vmatprep.mubr.f32.mxu0 0.0
    %1458 = vmatmul.mubr.f32.gmra.mrb[0].mxu0 %v1367
    %v1459 = vpop.f32.mrb[0].mxu0
    %v1460 = vadd.f32 0.0, %v1459
    %v1461 = vpop.f32.mrb[0].mxu0
    %1462 = vdwg.mxu0
    %v1463 = vsel %vm695, %v1363, -inf
    %1464 = vmax.xlane.f32.xlu0 %v1463
    %v1465 = vpop.xlane.xlu0 %1464
    %v1466 = vsel %vm695, %v1460, -inf
    %1467 = vmax.xlane.f32.xlu0 %v1466
    %v1468 = vpop.xlane.xlu0 %1467
    %v1469 = vsub.f32 %v1363, %v1465
    %v1470 = vsub.f32 %v1460, %v1468
    %v1471 = vmul.f32 %v1469, 1.442695
    %v1472 = vpow.pop %v1471
    %v1473 = vmul.f32 %v1470, 1.442695
    %v1474 = vpow.pop %v1473
    %v1475 = vsel %vm695, %v1472, 0.0
    %1476 = vadd.xlane.f32.xlu0 %v1475
    %v1477 = vpop.xlane.xlu0 %1476
    %v1478 = vsel %vm695, %v1474, 0.0
    %1479 = vadd.xlane.f32.xlu0 %v1478
    %v1480 = vpop.xlane.xlu0 %1479
    %v1482 = vsel %vm695, %v1472, 0
    %1484 = vmatprep.subr.mxu0 0.0
    %1485 = vmatpush1.msra.mxu0 %v1191
    %1486 = vmatprep.subr.mxu0 0.0
    %1487 = vmatpush1.msra.mxu0 %v1196
    %1488 = vmatprep.subr.mxu0 0.0
    %1489 = vmatpush1.msra.mxu0 %v1201
    %1490 = vmatprep.subr.mxu0 0.0
    %1491 = vmatpush1.msra.mxu0 %v1206
    %1492 = vmatprep.subr.mxu0 0.0
    %1493 = vmatpush1.msra.mxu0 %v1211
    %1494 = vmatprep.subr.mxu0 0.0
    %1495 = vmatpush1.msra.mxu0 %v1216
    %1496 = vmatprep.subr.mxu0 0.0
    %1497 = vmatpush1.msra.mxu0 %v1221
    %1498 = vmatprep.subr.mxu0 0.0
    %1499 = vmatpush1.msra.mxu0 %v1226
    %1500 = vmatprep.subr.mxu0 0.0
    %1501 = vmatpush1.msra.mxu0 0.0
    %1502 = vmatprep.subr.mxu0 0.0
    %1503 = vmatpush1.msra.mxu0 0.0
    %1504 = vmatprep.subr.mxu0 0.0
    %1505 = vmatpush1.msra.mxu0 0.0
    %1506 = vmatprep.subr.mxu0 0.0
    %1507 = vmatpush1.msra.mxu0 0.0
    %1508 = vmatprep.subr.mxu0 0.0
    %1509 = vmatpush1.msra.mxu0 0.0
    %1510 = vmatprep.subr.mxu0 0.0
    %1511 = vmatpush1.msra.mxu0 0.0
    %1512 = vmatprep.subr.mxu0 0.0
    %1513 = vmatpush1.msra.mxu0 0.0
    %1514 = vmatprep.subr.mxu0 0.0
    %1515 = vmatpush1.msra.mxu0 0.0
    %1516 = vmatprep.subr.mxu0 0.0
    %1517 = vmatpush1.msra.mxu0 0.0
    %1518 = vmatprep.subr.mxu0 0.0
    %1519 = vmatpush1.msra.mxu0 0.0
    %1520 = vmatprep.subr.mxu0 0.0
    %1521 = vmatpush1.msra.mxu0 0.0
    %1522 = vmatprep.subr.mxu0 0.0
    %1523 = vmatpush1.msra.mxu0 0.0
    %1524 = vmatprep.subr.mxu0 0.0
    %1525 = vmatpush1.msra.mxu0 0.0
    %1526 = vmatprep.subr.mxu0 0.0
    %1527 = vmatpush1.msra.mxu0 0.0
    %1528 = vmatprep.subr.mxu0 0.0
    %1529 = vmatpush1.msra.mxu0 0.0
    %1530 = vmatprep.subr.mxu0 0.0
    %1531 = vmatpush1.msra.mxu0 0.0
    %1532 = vmatprep.subr.mxu0 0.0
    %1533 = vmatpush1.msra.mxu0 0.0
    %1534 = vmatprep.subr.mxu0 0.0
    %1535 = vmatpush1.msra.mxu0 0.0
    %1536 = vmatprep.subr.mxu0 0.0
    %1537 = vmatpush1.msra.mxu0 0.0
    %1538 = vmatprep.subr.mxu0 0.0
    %1539 = vmatpush1.msra.mxu0 0.0
    %1540 = vmatprep.subr.mxu0 0.0
    %1541 = vmatpush1.msra.mxu0 0.0
    %1542 = vmatprep.subr.mxu0 0.0
    %1543 = vmatpush1.msra.mxu0 0.0
    %1544 = vmatprep.subr.mxu0 0.0
    %1545 = vmatpush1.msra.mxu0 0.0
    %1546 = vmatprep.subr.mxu0 0.0
    %1547 = vmatpush1.msra.mxu0 0.0
    %1548 = vmatprep.mubr.f32.mxu0 0.0
    %1549 = vmatmul.mubr.f32.gmra.mrb[0].mxu0 %v1482
    %v1550 = vpop.f32.mrb[0].mxu0
    %v1551 = vadd.f32 0.0, %v1550
    %v1552 = vpop.f32.mrb[0].mxu0
    %1553 = vdwg.mxu0
    %v1555 = vsel %vm695, %v1474, 0
    %1557 = vmatprep.subr.mxu0 0.0
    %1558 = vmatpush1.msra.mxu0 %v1231
    %1559 = vmatprep.subr.mxu0 0.0
    %1560 = vmatpush1.msra.mxu0 %v1236
    %1561 = vmatprep.subr.mxu0 0.0
    %1562 = vmatpush1.msra.mxu0 %v1241
    %1563 = vmatprep.subr.mxu0 0.0
    %1564 = vmatpush1.msra.mxu0 %v1246
    %1565 = vmatprep.subr.mxu0 0.0
    %1566 = vmatpush1.msra.mxu0 %v1251
    %1567 = vmatprep.subr.mxu0 0.0
    %1568 = vmatpush1.msra.mxu0 %v1256
    %1569 = vmatprep.subr.mxu0 0.0
    %1570 = vmatpush1.msra.mxu0 %v1261
    %1571 = vmatprep.subr.mxu0 0.0
    %1572 = vmatpush1.msra.mxu0 %v1266
    %1573 = vmatprep.subr.mxu0 0.0
    %1574 = vmatpush1.msra.mxu0 0.0
    %1575 = vmatprep.subr.mxu0 0.0
    %1576 = vmatpush1.msra.mxu0 0.0
    %1577 = vmatprep.subr.mxu0 0.0
    %1578 = vmatpush1.msra.mxu0 0.0
    %1579 = vmatprep.subr.mxu0 0.0
    %1580 = vmatpush1.msra.mxu0 0.0
    %1581 = vmatprep.subr.mxu0 0.0
    %1582 = vmatpush1.msra.mxu0 0.0
    %1583 = vmatprep.subr.mxu0 0.0
    %1584 = vmatpush1.msra.mxu0 0.0
    %1585 = vmatprep.subr.mxu0 0.0
    %1586 = vmatpush1.msra.mxu0 0.0
    %1587 = vmatprep.subr.mxu0 0.0
    %1588 = vmatpush1.msra.mxu0 0.0
    %1589 = vmatprep.subr.mxu0 0.0
    %1590 = vmatpush1.msra.mxu0 0.0
    %1591 = vmatprep.subr.mxu0 0.0
    %1592 = vmatpush1.msra.mxu0 0.0
    %1593 = vmatprep.subr.mxu0 0.0
    %1594 = vmatpush1.msra.mxu0 0.0
    %1595 = vmatprep.subr.mxu0 0.0
    %1596 = vmatpush1.msra.mxu0 0.0
    %1597 = vmatprep.subr.mxu0 0.0
    %1598 = vmatpush1.msra.mxu0 0.0
    %1599 = vmatprep.subr.mxu0 0.0
    %1600 = vmatpush1.msra.mxu0 0.0
    %1601 = vmatprep.subr.mxu0 0.0
    %1602 = vmatpush1.msra.mxu0 0.0
    %1603 = vmatprep.subr.mxu0 0.0
    %1604 = vmatpush1.msra.mxu0 0.0
    %1605 = vmatprep.subr.mxu0 0.0
    %1606 = vmatpush1.msra.mxu0 0.0
    %1607 = vmatprep.subr.mxu0 0.0
    %1608 = vmatpush1.msra.mxu0 0.0
    %1609 = vmatprep.subr.mxu0 0.0
    %1610 = vmatpush1.msra.mxu0 0.0
    %1611 = vmatprep.subr.mxu0 0.0
    %1612 = vmatpush1.msra.mxu0 0.0
    %1613 = vmatprep.subr.mxu0 0.0
    %1614 = vmatpush1.msra.mxu0 0.0
    %1615 = vmatprep.subr.mxu0 0.0
    %1616 = vmatpush1.msra.mxu0 0.0
    %1617 = vmatprep.subr.mxu0 0.0
    %1618 = vmatpush1.msra.mxu0 0.0
    %1619 = vmatprep.subr.mxu0 0.0
    %1620 = vmatpush1.msra.mxu0 0.0
    %1621 = vmatprep.mubr.f32.mxu0 0.0
    %1622 = vmatmul.mubr.f32.gmra.mrb[0].mxu0 %v1555
    %v1623 = vpop.f32.mrb[0].mxu0
    %v1624 = vadd.f32 0.0, %v1623
    %v1625 = vpop.f32.mrb[0].mxu0
    %1626 = vdwg.mxu0
    %v1627 = vrcp.pop %v1477
    %v1628 = vrcp.pop %v1480
    %v1629 = vmul.f32 %v1551, %v1627
    %v1630 = vmul.f32 %v1624, %v1628
    %s1631 = scalar_lea.vmem %s3, 8
    %v1632 = vld [vmem:[%s1631] sm:$0xff]
    %v1634 = vsel %vm500, %v1629, 0
    %v1637 = vsel %vm500, %v1630, 0
    %1639 = vmatprep.subr.mxu0 0.0
    %1640 = vmatpush1.msra.mxu0 %v1632
    %1641 = vmatprep.subr.mxu0 0.0
    %1642 = vmatpush1.msra.mxu0 0.0
    %1643 = vmatprep.subr.mxu0 0.0
    %1644 = vmatpush1.msra.mxu0 0.0
    %1645 = vmatprep.subr.mxu0 0.0
    %1646 = vmatpush1.msra.mxu0 0.0
    %1647 = vmatprep.subr.mxu0 0.0
    %1648 = vmatpush1.msra.mxu0 0.0
    %1649 = vmatprep.subr.mxu0 0.0
    %1650 = vmatpush1.msra.mxu0 0.0
    %1651 = vmatprep.subr.mxu0 0.0
    %1652 = vmatpush1.msra.mxu0 0.0
    %1653 = vmatprep.subr.mxu0 0.0
    %1654 = vmatpush1.msra.mxu0 0.0
    %1655 = vmatprep.subr.mxu0 0.0
    %1656 = vmatpush1.msra.mxu0 0.0
    %1657 = vmatprep.subr.mxu0 0.0
    %1658 = vmatpush1.msra.mxu0 0.0
    %1659 = vmatprep.subr.mxu0 0.0
    %1660 = vmatpush1.msra.mxu0 0.0
    %1661 = vmatprep.subr.mxu0 0.0
    %1662 = vmatpush1.msra.mxu0 0.0
    %1663 = vmatprep.subr.mxu0 0.0
    %1664 = vmatpush1.msra.mxu0 0.0
    %1665 = vmatprep.subr.mxu0 0.0
    %1666 = vmatpush1.msra.mxu0 0.0
    %1667 = vmatprep.subr.mxu0 0.0
    %1668 = vmatpush1.msra.mxu0 0.0
    %1669 = vmatprep.subr.mxu0 0.0
    %1670 = vmatpush1.msra.mxu0 0.0
    %1671 = vmatprep.subr.mxu0 0.0
    %1672 = vmatpush1.msra.mxu0 0.0
    %1673 = vmatprep.subr.mxu0 0.0
    %1674 = vmatpush1.msra.mxu0 0.0
    %1675 = vmatprep.subr.mxu0 0.0
    %1676 = vmatpush1.msra.mxu0 0.0
    %1677 = vmatprep.subr.mxu0 0.0
    %1678 = vmatpush1.msra.mxu0 0.0
    %1679 = vmatprep.subr.mxu0 0.0
    %1680 = vmatpush1.msra.mxu0 0.0
    %1681 = vmatprep.subr.mxu0 0.0
    %1682 = vmatpush1.msra.mxu0 0.0
    %1683 = vmatprep.subr.mxu0 0.0
    %1684 = vmatpush1.msra.mxu0 0.0
    %1685 = vmatprep.subr.mxu0 0.0
    %1686 = vmatpush1.msra.mxu0 0.0
    %1687 = vmatprep.subr.mxu0 0.0
    %1688 = vmatpush1.msra.mxu0 0.0
    %1689 = vmatprep.subr.mxu0 0.0
    %1690 = vmatpush1.msra.mxu0 0.0
    %1691 = vmatprep.subr.mxu0 0.0
    %1692 = vmatpush1.msra.mxu0 0.0
    %1693 = vmatprep.subr.mxu0 0.0
    %1694 = vmatpush1.msra.mxu0 0.0
    %1695 = vmatprep.subr.mxu0 0.0
    %1696 = vmatpush1.msra.mxu0 0.0
    %1697 = vmatprep.subr.mxu0 0.0
    %1698 = vmatpush1.msra.mxu0 0.0
    %1699 = vmatprep.subr.mxu0 0.0
    %1700 = vmatpush1.msra.mxu0 0.0
    %1701 = vmatprep.subr.mxu0 0.0
    %1702 = vmatpush1.msra.mxu0 0.0
    %1703 = vmatprep.mubr.f32.mxu0 0.0
    %1704 = vmatmul.mubr.f32.gmra.mrb[0].mxu0 %v1634
    %v1705 = vpop.f32.mrb[0].mxu0
    %v1706 = vadd.f32 0.0, %v1705
    %v1707 = vpop.f32.mrb[0].mxu0
    %1708 = vmatprep.mubr.f32.mxu0 0.0
    %1709 = vmatmul.mubr.f32.gmra.mrb[0].mxu0 %v1637
    %v1710 = vpop.f32.mrb[0].mxu0
    %v1711 = vadd.f32 0.0, %v1710
    %v1712 = vpop.f32.mrb[0].mxu0
    %1713 = vdwg.mxu0
    %v1715 = vsel %vm500, %v862, 0
    %v1718 = vsel %vm500, %v863, 0
    %1720 = vmatprep.subr.mxu0 0.0
    %1721 = vmatpush1.msra.mxu0 %v864
    %1722 = vmatprep.subr.mxu0 0.0
    %1723 = vmatpush1.msra.mxu0 0.0
    %1724 = vmatprep.subr.mxu0 0.0
    %1725 = vmatpush1.msra.mxu0 0.0
    %1726 = vmatprep.subr.mxu0 0.0
    %1727 = vmatpush1.msra.mxu0 0.0
    %1728 = vmatprep.subr.mxu0 0.0
    %1729 = vmatpush1.msra.mxu0 0.0
    %1730 = vmatprep.subr.mxu0 0.0
    %1731 = vmatpush1.msra.mxu0 0.0
    %1732 = vmatprep.subr.mxu0 0.0
    %1733 = vmatpush1.msra.mxu0 0.0
    %1734 = vmatprep.subr.mxu0 0.0
    %1735 = vmatpush1.msra.mxu0 0.0
    %1736 = vmatprep.subr.mxu0 0.0
    %1737 = vmatpush1.msra.mxu0 0.0
    %1738 = vmatprep.subr.mxu0 0.0
    %1739 = vmatpush1.msra.mxu0 0.0
    %1740 = vmatprep.subr.mxu0 0.0
    %1741 = vmatpush1.msra.mxu0 0.0
    %1742 = vmatprep.subr.mxu0 0.0
    %1743 = vmatpush1.msra.mxu0 0.0
    %1744 = vmatprep.subr.mxu0 0.0
    %1745 = vmatpush1.msra.mxu0 0.0
    %1746 = vmatprep.subr.mxu0 0.0
    %1747 = vmatpush1.msra.mxu0 0.0
    %1748 = vmatprep.subr.mxu0 0.0
    %1749 = vmatpush1.msra.mxu0 0.0
    %1750 = vmatprep.subr.mxu0 0.0
    %1751 = vmatpush1.msra.mxu0 0.0
    %1752 = vmatprep.subr.mxu0 0.0
    %1753 = vmatpush1.msra.mxu0 0.0
    %1754 = vmatprep.subr.mxu0 0.0
    %1755 = vmatpush1.msra.mxu0 0.0
    %1756 = vmatprep.subr.mxu0 0.0
    %1757 = vmatpush1.msra.mxu0 0.0
    %1758 = vmatprep.subr.mxu0 0.0
    %1759 = vmatpush1.msra.mxu0 0.0
    %1760 = vmatprep.subr.mxu0 0.0
    %1761 = vmatpush1.msra.mxu0 0.0
    %1762 = vmatprep.subr.mxu0 0.0
    %1763 = vmatpush1.msra.mxu0 0.0
    %1764 = vmatprep.subr.mxu0 0.0
    %1765 = vmatpush1.msra.mxu0 0.0
    %1766 = vmatprep.subr.mxu0 0.0
    %1767 = vmatpush1.msra.mxu0 0.0
    %1768 = vmatprep.subr.mxu0 0.0
    %1769 = vmatpush1.msra.mxu0 0.0
    %1770 = vmatprep.subr.mxu0 0.0
    %1771 = vmatpush1.msra.mxu0 0.0
    %1772 = vmatprep.subr.mxu0 0.0
    %1773 = vmatpush1.msra.mxu0 0.0
    %1774 = vmatprep.subr.mxu0 0.0
    %1775 = vmatpush1.msra.mxu0 0.0
    %1776 = vmatprep.subr.mxu0 0.0
    %1777 = vmatpush1.msra.mxu0 0.0
    %1778 = vmatprep.subr.mxu0 0.0
    %1779 = vmatpush1.msra.mxu0 0.0
    %1780 = vmatprep.subr.mxu0 0.0
    %1781 = vmatpush1.msra.mxu0 0.0
    %1782 = vmatprep.subr.mxu0 0.0
    %1783 = vmatpush1.msra.mxu0 0.0
    %1784 = vmatprep.mubr.f32.mxu0 0.0
    %1785 = vmatmul.mubr.f32.gmra.mrb[0].mxu0 %v1715
    %v1786 = vpop.f32.mrb[0].mxu0
    %v1787 = vadd.f32 %v1706, %v1786
    %v1788 = vpop.f32.mrb[0].mxu0
    %1789 = vmatprep.mubr.f32.mxu0 0.0
    %1790 = vmatmul.mubr.f32.gmra.mrb[0].mxu0 %v1718
    %v1791 = vpop.f32.mrb[0].mxu0
    %v1792 = vadd.f32 %v1711, %v1791
    %v1793 = vpop.f32.mrb[0].mxu0
    %1794 = vdwg.mxu0
    %s1795 = scalar_lea.vmem %s2, 64
    %v1796 = vld [vmem:[%s1795] sm:$0xff]
    %v1797 = vld [vmem:[%s1795 + $0x8] sm:$0xff]
    %v1798 = vld [vmem:[%s1795 + $0x10] sm:$0xff]
    %v1799 = vld [vmem:[%s1795 + $0x18] sm:$0xff]
    %s1800 = scalar_lea.vmem %s4, 2
    %v1801 = vld [vmem:[%s1800] sm:$0x1]
    %v1803 = vlaneseq
    %v1804 = vshrl.u32 %v1803, 7
    %v1805 = vsub.s32 0, %v1804
    %v1806 = vrot.slane %v1801, %v1805
    %1808 = vmatprep.subr.mxu0 0.0
    %1809 = vmatpush1.msra.mxu0 %v1796
    %1810 = vmatprep.subr.mxu0 0.0
    %1811 = vmatpush1.msra.mxu0 %v1797
    %1812 = vmatprep.subr.mxu0 0.0
    %1813 = vmatpush1.msra.mxu0 %v1798
    %1814 = vmatprep.subr.mxu0 0.0
    %1815 = vmatpush1.msra.mxu0 %v1799
    %1816 = vmatprep.subr.mxu0 0.0
    %1817 = vmatpush1.msra.mxu0 0.0
    %1818 = vmatprep.subr.mxu0 0.0
    %1819 = vmatpush1.msra.mxu0 0.0
    %1820 = vmatprep.subr.mxu0 0.0
    %1821 = vmatpush1.msra.mxu0 0.0
    %1822 = vmatprep.subr.mxu0 0.0
    %1823 = vmatpush1.msra.mxu0 0.0
    %1824 = vmatprep.subr.mxu0 0.0
    %1825 = vmatpush1.msra.mxu0 0.0
    %1826 = vmatprep.subr.mxu0 0.0
    %1827 = vmatpush1.msra.mxu0 0.0
    %1828 = vmatprep.subr.mxu0 0.0
    %1829 = vmatpush1.msra.mxu0 0.0
    %1830 = vmatprep.subr.mxu0 0.0
    %1831 = vmatpush1.msra.mxu0 0.0
    %1832 = vmatprep.subr.mxu0 0.0
    %1833 = vmatpush1.msra.mxu0 0.0
    %1834 = vmatprep.subr.mxu0 0.0
    %1835 = vmatpush1.msra.mxu0 0.0
    %1836 = vmatprep.subr.mxu0 0.0
    %1837 = vmatpush1.msra.mxu0 0.0
    %1838 = vmatprep.subr.mxu0 0.0
    %1839 = vmatpush1.msra.mxu0 0.0
    %1840 = vmatprep.subr.mxu0 0.0
    %1841 = vmatpush1.msra.mxu0 0.0
    %1842 = vmatprep.subr.mxu0 0.0
    %1843 = vmatpush1.msra.mxu0 0.0
    %1844 = vmatprep.subr.mxu0 0.0
    %1845 = vmatpush1.msra.mxu0 0.0
    %1846 = vmatprep.subr.mxu0 0.0
    %1847 = vmatpush1.msra.mxu0 0.0
    %1848 = vmatprep.subr.mxu0 0.0
    %1849 = vmatpush1.msra.mxu0 0.0
    %1850 = vmatprep.subr.mxu0 0.0
    %1851 = vmatpush1.msra.mxu0 0.0
    %1852 = vmatprep.subr.mxu0 0.0
    %1853 = vmatpush1.msra.mxu0 0.0
    %1854 = vmatprep.subr.mxu0 0.0
    %1855 = vmatpush1.msra.mxu0 0.0
    %1856 = vmatprep.subr.mxu0 0.0
    %1857 = vmatpush1.msra.mxu0 0.0
    %1858 = vmatprep.subr.mxu0 0.0
    %1859 = vmatpush1.msra.mxu0 0.0
    %1860 = vmatprep.subr.mxu0 0.0
    %1861 = vmatpush1.msra.mxu0 0.0
    %1862 = vmatprep.subr.mxu0 0.0
    %1863 = vmatpush1.msra.mxu0 0.0
    %1864 = vmatprep.subr.mxu0 0.0
    %1865 = vmatpush1.msra.mxu0 0.0
    %1866 = vmatprep.subr.mxu0 0.0
    %1867 = vmatpush1.msra.mxu0 0.0
    %1868 = vmatprep.subr.mxu0 0.0
    %1869 = vmatpush1.msra.mxu0 0.0
    %1870 = vmatprep.subr.mxu0 0.0
    %1871 = vmatpush1.msra.mxu0 0.0
    %1872 = vmatprep.mubr.f32.mxu0 0.0
    %1873 = vmatmul.mubr.f32.gmra.mrb[0].mxu0 %v56
    %v1874 = vpop.f32.mrb[0].mxu0
    %v1875 = vadd.f32 %v1806, %v1874
    %v1876 = vpop.f32.mrb[0].mxu0
    %1877 = vmatprep.mubr.f32.mxu0 0.0
    %1878 = vmatmul.mubr.f32.gmra.mrb[0].mxu0 %v59
    %v1879 = vpop.f32.mrb[0].mxu0
    %v1880 = vadd.f32 %v1806, %v1879
    %v1881 = vpop.f32.mrb[0].mxu0
    %1882 = vdwg.mxu0
    %s1883 = scalar_lea.vmem %s2, 192
    %v1884 = vld [vmem:[%s1883] sm:$0xff]
    %v1885 = vld [vmem:[%s1883 + $0x8] sm:$0xff]
    %v1886 = vld [vmem:[%s1883 + $0x10] sm:$0xff]
    %v1887 = vld [vmem:[%s1883 + $0x18] sm:$0xff]
    %s1888 = scalar_lea.vmem %s4, 6
    %v1889 = vld [vmem:[%s1888] sm:$0x1]
    %v1891 = vlaneseq
    %v1892 = vshrl.u32 %v1891, 7
    %v1893 = vsub.s32 0, %v1892
    %v1894 = vrot.slane %v1889, %v1893
    %1896 = vmatprep.subr.mxu0 0.0
    %1897 = vmatpush1.msra.mxu0 %v1884
    %1898 = vmatprep.subr.mxu0 0.0
    %1899 = vmatpush1.msra.mxu0 %v1885
    %1900 = vmatprep.subr.mxu0 0.0
    %1901 = vmatpush1.msra.mxu0 %v1886
    %1902 = vmatprep.subr.mxu0 0.0
    %1903 = vmatpush1.msra.mxu0 %v1887
    %1904 = vmatprep.subr.mxu0 0.0
    %1905 = vmatpush1.msra.mxu0 0.0
    %1906 = vmatprep.subr.mxu0 0.0
    %1907 = vmatpush1.msra.mxu0 0.0
    %1908 = vmatprep.subr.mxu0 0.0
    %1909 = vmatpush1.msra.mxu0 0.0
    %1910 = vmatprep.subr.mxu0 0.0
    %1911 = vmatpush1.msra.mxu0 0.0
    %1912 = vmatprep.subr.mxu0 0.0
    %1913 = vmatpush1.msra.mxu0 0.0
    %1914 = vmatprep.subr.mxu0 0.0
    %1915 = vmatpush1.msra.mxu0 0.0
    %1916 = vmatprep.subr.mxu0 0.0
    %1917 = vmatpush1.msra.mxu0 0.0
    %1918 = vmatprep.subr.mxu0 0.0
    %1919 = vmatpush1.msra.mxu0 0.0
    %1920 = vmatprep.subr.mxu0 0.0
    %1921 = vmatpush1.msra.mxu0 0.0
    %1922 = vmatprep.subr.mxu0 0.0
    %1923 = vmatpush1.msra.mxu0 0.0
    %1924 = vmatprep.subr.mxu0 0.0
    %1925 = vmatpush1.msra.mxu0 0.0
    %1926 = vmatprep.subr.mxu0 0.0
    %1927 = vmatpush1.msra.mxu0 0.0
    %1928 = vmatprep.subr.mxu0 0.0
    %1929 = vmatpush1.msra.mxu0 0.0
    %1930 = vmatprep.subr.mxu0 0.0
    %1931 = vmatpush1.msra.mxu0 0.0
    %1932 = vmatprep.subr.mxu0 0.0
    %1933 = vmatpush1.msra.mxu0 0.0
    %1934 = vmatprep.subr.mxu0 0.0
    %1935 = vmatpush1.msra.mxu0 0.0
    %1936 = vmatprep.subr.mxu0 0.0
    %1937 = vmatpush1.msra.mxu0 0.0
    %1938 = vmatprep.subr.mxu0 0.0
    %1939 = vmatpush1.msra.mxu0 0.0
    %1940 = vmatprep.subr.mxu0 0.0
    %1941 = vmatpush1.msra.mxu0 0.0
    %1942 = vmatprep.subr.mxu0 0.0
    %1943 = vmatpush1.msra.mxu0 0.0
    %1944 = vmatprep.subr.mxu0 0.0
    %1945 = vmatpush1.msra.mxu0 0.0
    %1946 = vmatprep.subr.mxu0 0.0
    %1947 = vmatpush1.msra.mxu0 0.0
    %1948 = vmatprep.subr.mxu0 0.0
    %1949 = vmatpush1.msra.mxu0 0.0
    %1950 = vmatprep.subr.mxu0 0.0
    %1951 = vmatpush1.msra.mxu0 0.0
    %1952 = vmatprep.subr.mxu0 0.0
    %1953 = vmatpush1.msra.mxu0 0.0
    %1954 = vmatprep.subr.mxu0 0.0
    %1955 = vmatpush1.msra.mxu0 0.0
    %1956 = vmatprep.subr.mxu0 0.0
    %1957 = vmatpush1.msra.mxu0 0.0
    %1958 = vmatprep.subr.mxu0 0.0
    %1959 = vmatpush1.msra.mxu0 0.0
    %1960 = vmatprep.mubr.f32.mxu0 0.0
    %1961 = vmatmul.mubr.f32.gmra.mrb[0].mxu0 %v150
    %v1962 = vpop.f32.mrb[0].mxu0
    %v1963 = vadd.f32 %v1894, %v1962
    %v1964 = vpop.f32.mrb[0].mxu0
    %1965 = vmatprep.mubr.f32.mxu0 0.0
    %1966 = vmatmul.mubr.f32.gmra.mrb[0].mxu0 %v153
    %v1967 = vpop.f32.mrb[0].mxu0
    %v1968 = vadd.f32 %v1894, %v1967
    %v1969 = vpop.f32.mrb[0].mxu0
    %1970 = vmatprep.mubr.f32.mxu0 0.0
    %1971 = vmatmul.mubr.f32.gmra.mrb[0].mxu0 %v156
    %v1972 = vpop.f32.mrb[0].mxu0
    %v1973 = vadd.f32 %v1894, %v1972
    %v1974 = vpop.f32.mrb[0].mxu0
    %1975 = vmatprep.mubr.f32.mxu0 0.0
    %1976 = vmatmul.mubr.f32.gmra.mrb[0].mxu0 %v159
    %v1977 = vpop.f32.mrb[0].mxu0
    %v1978 = vadd.f32 %v1894, %v1977
    %v1979 = vpop.f32.mrb[0].mxu0
    %1980 = vmatprep.mubr.f32.mxu0 0.0
    %1981 = vmatmul.mubr.f32.gmra.mrb[0].mxu0 %v162
    %v1982 = vpop.f32.mrb[0].mxu0
    %v1983 = vadd.f32 %v1894, %v1982
    %v1984 = vpop.f32.mrb[0].mxu0
    %1985 = vmatprep.mubr.f32.mxu0 0.0
    %1986 = vmatmul.mubr.f32.gmra.mrb[0].mxu0 %v165
    %v1987 = vpop.f32.mrb[0].mxu0
    %v1988 = vadd.f32 %v1894, %v1987
    %v1989 = vpop.f32.mrb[0].mxu0
    %1990 = vmatprep.mubr.f32.mxu0 0.0
    %1991 = vmatmul.mubr.f32.gmra.mrb[0].mxu0 %v168
    %v1992 = vpop.f32.mrb[0].mxu0
    %v1993 = vadd.f32 %v1894, %v1992
    %v1994 = vpop.f32.mrb[0].mxu0
    %1995 = vmatprep.mubr.f32.mxu0 0.0
    %1996 = vmatmul.mubr.f32.gmra.mrb[0].mxu0 %v171
    %v1997 = vpop.f32.mrb[0].mxu0
    %v1998 = vadd.f32 %v1894, %v1997
    %v1999 = vpop.f32.mrb[0].mxu0
    %2000 = vmatprep.mubr.f32.mxu0 0.0
    %2001 = vmatmul.mubr.f32.gmra.mrb[0].mxu0 %v174
    %v2002 = vpop.f32.mrb[0].mxu0
    %v2003 = vadd.f32 %v1894, %v2002
    %v2004 = vpop.f32.mrb[0].mxu0
    %2005 = vmatprep.mubr.f32.mxu0 0.0
    %2006 = vmatmul.mubr.f32.gmra.mrb[0].mxu0 %v177
    %v2007 = vpop.f32.mrb[0].mxu0
    %v2008 = vadd.f32 %v1894, %v2007
    %v2009 = vpop.f32.mrb[0].mxu0
    %2010 = vmatprep.mubr.f32.mxu0 0.0
    %2011 = vmatmul.mubr.f32.gmra.mrb[0].mxu0 %v180
    %v2012 = vpop.f32.mrb[0].mxu0
    %v2013 = vadd.f32 %v1894, %v2012
    %v2014 = vpop.f32.mrb[0].mxu0
    %2015 = vmatprep.mubr.f32.mxu0 0.0
    %2016 = vmatmul.mubr.f32.gmra.mrb[0].mxu0 %v183
    %v2017 = vpop.f32.mrb[0].mxu0
    %v2018 = vadd.f32 %v1894, %v2017
    %v2019 = vpop.f32.mrb[0].mxu0
    %2020 = vmatprep.mubr.f32.mxu0 0.0
    %2021 = vmatmul.mubr.f32.gmra.mrb[0].mxu0 %v186
    %v2022 = vpop.f32.mrb[0].mxu0
    %v2023 = vadd.f32 %v1894, %v2022
    %v2024 = vpop.f32.mrb[0].mxu0
    %2025 = vmatprep.mubr.f32.mxu0 0.0
    %2026 = vmatmul.mubr.f32.gmra.mrb[0].mxu0 %v189
    %v2027 = vpop.f32.mrb[0].mxu0
    %v2028 = vadd.f32 %v1894, %v2027
    %v2029 = vpop.f32.mrb[0].mxu0
    %2030 = vmatprep.mubr.f32.mxu0 0.0
    %2031 = vmatmul.mubr.f32.gmra.mrb[0].mxu0 %v192
    %v2032 = vpop.f32.mrb[0].mxu0
    %v2033 = vadd.f32 %v1894, %v2032
    %v2034 = vpop.f32.mrb[0].mxu0
    %2035 = vmatprep.mubr.f32.mxu0 0.0
    %2036 = vmatmul.mubr.f32.gmra.mrb[0].mxu0 %v195
    %v2037 = vpop.f32.mrb[0].mxu0
    %v2038 = vadd.f32 %v1894, %v2037
    %v2039 = vpop.f32.mrb[0].mxu0
    %2040 = vdwg.mxu0
    %s2041 = scalar_lea.vmem %s2, 320
    %v2042 = vld [vmem:[%s2041] sm:$0xff]
    %v2043 = vld [vmem:[%s2041 + $0x8] sm:$0xff]
    %v2044 = vld [vmem:[%s2041 + $0x10] sm:$0xff]
    %v2045 = vld [vmem:[%s2041 + $0x18] sm:$0xff]
    %s2046 = scalar_lea.vmem %s4, 10
    %v2047 = vld [vmem:[%s2046] sm:$0x1]
    %v2049 = vlaneseq
    %v2050 = vshrl.u32 %v2049, 7
    %v2051 = vsub.s32 0, %v2050
    %v2052 = vrot.slane %v2047, %v2051
    %2054 = vmatprep.subr.mxu0 0.0
    %2055 = vmatpush1.msra.mxu0 %v2042
    %2056 = vmatprep.subr.mxu0 0.0
    %2057 = vmatpush1.msra.mxu0 %v2043
    %2058 = vmatprep.subr.mxu0 0.0
    %2059 = vmatpush1.msra.mxu0 %v2044
    %2060 = vmatprep.subr.mxu0 0.0
    %2061 = vmatpush1.msra.mxu0 %v2045
    %2062 = vmatprep.subr.mxu0 0.0
    %2063 = vmatpush1.msra.mxu0 0.0
    %2064 = vmatprep.subr.mxu0 0.0
    %2065 = vmatpush1.msra.mxu0 0.0
    %2066 = vmatprep.subr.mxu0 0.0
    %2067 = vmatpush1.msra.mxu0 0.0
    %2068 = vmatprep.subr.mxu0 0.0
    %2069 = vmatpush1.msra.mxu0 0.0
    %2070 = vmatprep.subr.mxu0 0.0
    %2071 = vmatpush1.msra.mxu0 0.0
    %2072 = vmatprep.subr.mxu0 0.0
    %2073 = vmatpush1.msra.mxu0 0.0
    %2074 = vmatprep.subr.mxu0 0.0
    %2075 = vmatpush1.msra.mxu0 0.0
    %2076 = vmatprep.subr.mxu0 0.0
    %2077 = vmatpush1.msra.mxu0 0.0
    %2078 = vmatprep.subr.mxu0 0.0
    %2079 = vmatpush1.msra.mxu0 0.0
    %2080 = vmatprep.subr.mxu0 0.0
    %2081 = vmatpush1.msra.mxu0 0.0
    %2082 = vmatprep.subr.mxu0 0.0
    %2083 = vmatpush1.msra.mxu0 0.0
    %2084 = vmatprep.subr.mxu0 0.0
    %2085 = vmatpush1.msra.mxu0 0.0
    %2086 = vmatprep.subr.mxu0 0.0
    %2087 = vmatpush1.msra.mxu0 0.0
    %2088 = vmatprep.subr.mxu0 0.0
    %2089 = vmatpush1.msra.mxu0 0.0
    %2090 = vmatprep.subr.mxu0 0.0
    %2091 = vmatpush1.msra.mxu0 0.0
    %2092 = vmatprep.subr.mxu0 0.0
    %2093 = vmatpush1.msra.mxu0 0.0
    %2094 = vmatprep.subr.mxu0 0.0
    %2095 = vmatpush1.msra.mxu0 0.0
    %2096 = vmatprep.subr.mxu0 0.0
    %2097 = vmatpush1.msra.mxu0 0.0
    %2098 = vmatprep.subr.mxu0 0.0
    %2099 = vmatpush1.msra.mxu0 0.0
    %2100 = vmatprep.subr.mxu0 0.0
    %2101 = vmatpush1.msra.mxu0 0.0
    %2102 = vmatprep.subr.mxu0 0.0
    %2103 = vmatpush1.msra.mxu0 0.0
    %2104 = vmatprep.subr.mxu0 0.0
    %2105 = vmatpush1.msra.mxu0 0.0
    %2106 = vmatprep.subr.mxu0 0.0
    %2107 = vmatpush1.msra.mxu0 0.0
    %2108 = vmatprep.subr.mxu0 0.0
    %2109 = vmatpush1.msra.mxu0 0.0
    %2110 = vmatprep.subr.mxu0 0.0
    %2111 = vmatpush1.msra.mxu0 0.0
    %2112 = vmatprep.subr.mxu0 0.0
    %2113 = vmatpush1.msra.mxu0 0.0
    %2114 = vmatprep.subr.mxu0 0.0
    %2115 = vmatpush1.msra.mxu0 0.0
    %2116 = vmatprep.subr.mxu0 0.0
    %2117 = vmatpush1.msra.mxu0 0.0
    %2118 = vmatprep.mubr.f32.mxu0 0.0
    %2119 = vmatmul.mubr.f32.gmra.mrb[0].mxu0 %v150
    %v2120 = vpop.f32.mrb[0].mxu0
    %v2121 = vadd.f32 %v2052, %v2120
    %v2122 = vpop.f32.mrb[0].mxu0
    %2123 = vmatprep.mubr.f32.mxu0 0.0
    %2124 = vmatmul.mubr.f32.gmra.mrb[0].mxu0 %v153
    %v2125 = vpop.f32.mrb[0].mxu0
    %v2126 = vadd.f32 %v2052, %v2125
    %v2127 = vpop.f32.mrb[0].mxu0
    %2128 = vmatprep.mubr.f32.mxu0 0.0
    %2129 = vmatmul.mubr.f32.gmra.mrb[0].mxu0 %v156
    %v2130 = vpop.f32.mrb[0].mxu0
    %v2131 = vadd.f32 %v2052, %v2130
    %v2132 = vpop.f32.mrb[0].mxu0
    %2133 = vmatprep.mubr.f32.mxu0 0.0
    %2134 = vmatmul.mubr.f32.gmra.mrb[0].mxu0 %v159
    %v2135 = vpop.f32.mrb[0].mxu0
    %v2136 = vadd.f32 %v2052, %v2135
    %v2137 = vpop.f32.mrb[0].mxu0
    %2138 = vmatprep.mubr.f32.mxu0 0.0
    %2139 = vmatmul.mubr.f32.gmra.mrb[0].mxu0 %v162
    %v2140 = vpop.f32.mrb[0].mxu0
    %v2141 = vadd.f32 %v2052, %v2140
    %v2142 = vpop.f32.mrb[0].mxu0
    %2143 = vmatprep.mubr.f32.mxu0 0.0
    %2144 = vmatmul.mubr.f32.gmra.mrb[0].mxu0 %v165
    %v2145 = vpop.f32.mrb[0].mxu0
    %v2146 = vadd.f32 %v2052, %v2145
    %v2147 = vpop.f32.mrb[0].mxu0
    %2148 = vmatprep.mubr.f32.mxu0 0.0
    %2149 = vmatmul.mubr.f32.gmra.mrb[0].mxu0 %v168
    %v2150 = vpop.f32.mrb[0].mxu0
    %v2151 = vadd.f32 %v2052, %v2150
    %v2152 = vpop.f32.mrb[0].mxu0
    %2153 = vmatprep.mubr.f32.mxu0 0.0
    %2154 = vmatmul.mubr.f32.gmra.mrb[0].mxu0 %v171
    %v2155 = vpop.f32.mrb[0].mxu0
    %v2156 = vadd.f32 %v2052, %v2155
    %v2157 = vpop.f32.mrb[0].mxu0
    %2158 = vmatprep.mubr.f32.mxu0 0.0
    %2159 = vmatmul.mubr.f32.gmra.mrb[0].mxu0 %v174
    %v2160 = vpop.f32.mrb[0].mxu0
    %v2161 = vadd.f32 %v2052, %v2160
    %v2162 = vpop.f32.mrb[0].mxu0
    %2163 = vmatprep.mubr.f32.mxu0 0.0
    %2164 = vmatmul.mubr.f32.gmra.mrb[0].mxu0 %v177
    %v2165 = vpop.f32.mrb[0].mxu0
    %v2166 = vadd.f32 %v2052, %v2165
    %v2167 = vpop.f32.mrb[0].mxu0
    %2168 = vmatprep.mubr.f32.mxu0 0.0
    %2169 = vmatmul.mubr.f32.gmra.mrb[0].mxu0 %v180
    %v2170 = vpop.f32.mrb[0].mxu0
    %v2171 = vadd.f32 %v2052, %v2170
    %v2172 = vpop.f32.mrb[0].mxu0
    %2173 = vmatprep.mubr.f32.mxu0 0.0
    %2174 = vmatmul.mubr.f32.gmra.mrb[0].mxu0 %v183
    %v2175 = vpop.f32.mrb[0].mxu0
    %v2176 = vadd.f32 %v2052, %v2175
    %v2177 = vpop.f32.mrb[0].mxu0
    %2178 = vmatprep.mubr.f32.mxu0 0.0
    %2179 = vmatmul.mubr.f32.gmra.mrb[0].mxu0 %v186
    %v2180 = vpop.f32.mrb[0].mxu0
    %v2181 = vadd.f32 %v2052, %v2180
    %v2182 = vpop.f32.mrb[0].mxu0
    %2183 = vmatprep.mubr.f32.mxu0 0.0
    %2184 = vmatmul.mubr.f32.gmra.mrb[0].mxu0 %v189
    %v2185 = vpop.f32.mrb[0].mxu0
    %v2186 = vadd.f32 %v2052, %v2185
    %v2187 = vpop.f32.mrb[0].mxu0
    %2188 = vmatprep.mubr.f32.mxu0 0.0
    %2189 = vmatmul.mubr.f32.gmra.mrb[0].mxu0 %v192
    %v2190 = vpop.f32.mrb[0].mxu0
    %v2191 = vadd.f32 %v2052, %v2190
    %v2192 = vpop.f32.mrb[0].mxu0
    %2193 = vmatprep.mubr.f32.mxu0 0.0
    %2194 = vmatmul.mubr.f32.gmra.mrb[0].mxu0 %v195
    %v2195 = vpop.f32.mrb[0].mxu0
    %v2196 = vadd.f32 %v2052, %v2195
    %v2197 = vpop.f32.mrb[0].mxu0
    %2198 = vdwg.mxu0
    %v2200 = vsel %vm500, %v1875, 0
    %v2203 = vsel %vm500, %v1963, 0
    %v2206 = vsel %vm500, %v1968, 0
    %v2209 = vsel %vm500, %v1973, 0
    %v2212 = vsel %vm500, %v1978, 0
    %v2215 = vsel %vm500, %v1983, 0
    %v2218 = vsel %vm500, %v1988, 0
    %v2221 = vsel %vm500, %v1993, 0
    %v2224 = vsel %vm500, %v1998, 0
    %2226 = vmatprep.subr.mxu0 0.0
    %2227 = vmatpush1.xpose.msra.mxu0 %v2203
    %2228 = vmatprep.subr.mxu0 0.0
    %2229 = vmatpush1.xpose.msra.mxu0 %v2206
    %2230 = vmatprep.subr.mxu0 0.0
    %2231 = vmatpush1.xpose.msra.mxu0 %v2209
    %2232 = vmatprep.subr.mxu0 0.0
    %2233 = vmatpush1.xpose.msra.mxu0 %v2212
    %2234 = vmatprep.subr.mxu0 0.0
    %2235 = vmatpush1.xpose.msra.mxu0 %v2215
    %2236 = vmatprep.subr.mxu0 0.0
    %2237 = vmatpush1.xpose.msra.mxu0 %v2218
    %2238 = vmatprep.subr.mxu0 0.0
    %2239 = vmatpush1.xpose.msra.mxu0 %v2221
    %2240 = vmatprep.subr.mxu0 0.0
    %2241 = vmatpush1.xpose.msra.mxu0 %v2224
    %2242 = vmatprep.subr.mxu0 0.0
    %2243 = vmatpush1.xpose.msra.mxu0 0.0
    %2244 = vmatprep.subr.mxu0 0.0
    %2245 = vmatpush1.xpose.msra.mxu0 0.0
    %2246 = vmatprep.subr.mxu0 0.0
    %2247 = vmatpush1.xpose.msra.mxu0 0.0
    %2248 = vmatprep.subr.mxu0 0.0
    %2249 = vmatpush1.xpose.msra.mxu0 0.0
    %2250 = vmatprep.subr.mxu0 0.0
    %2251 = vmatpush1.xpose.msra.mxu0 0.0
    %2252 = vmatprep.subr.mxu0 0.0
    %2253 = vmatpush1.xpose.msra.mxu0 0.0
    %2254 = vmatprep.subr.mxu0 0.0
    %2255 = vmatpush1.xpose.msra.mxu0 0.0
    %2256 = vmatprep.subr.mxu0 0.0
    %2257 = vmatpush1.xpose.msra.mxu0 0.0
    %2258 = vmatprep.subr.mxu0 0.0
    %2259 = vmatpush1.xpose.msra.mxu0 0.0
    %2260 = vmatprep.subr.mxu0 0.0
    %2261 = vmatpush1.xpose.msra.mxu0 0.0
    %2262 = vmatprep.subr.mxu0 0.0
    %2263 = vmatpush1.xpose.msra.mxu0 0.0
    %2264 = vmatprep.subr.mxu0 0.0
    %2265 = vmatpush1.xpose.msra.mxu0 0.0
    %2266 = vmatprep.subr.mxu0 0.0
    %2267 = vmatpush1.xpose.msra.mxu0 0.0
    %2268 = vmatprep.subr.mxu0 0.0
    %2269 = vmatpush1.xpose.msra.mxu0 0.0
    %2270 = vmatprep.subr.mxu0 0.0
    %2271 = vmatpush1.xpose.msra.mxu0 0.0
    %2272 = vmatprep.subr.mxu0 0.0
    %2273 = vmatpush1.xpose.msra.mxu0 0.0
    %2274 = vmatprep.subr.mxu0 0.0
    %2275 = vmatpush1.xpose.msra.mxu0 0.0
    %2276 = vmatprep.subr.mxu0 0.0
    %2277 = vmatpush1.xpose.msra.mxu0 0.0
    %2278 = vmatprep.subr.mxu0 0.0
    %2279 = vmatpush1.xpose.msra.mxu0 0.0
    %2280 = vmatprep.subr.mxu0 0.0
    %2281 = vmatpush1.xpose.msra.mxu0 0.0
    %2282 = vmatprep.subr.mxu0 0.0
    %2283 = vmatpush1.xpose.msra.mxu0 0.0
    %2284 = vmatprep.subr.mxu0 0.0
    %2285 = vmatpush1.xpose.msra.mxu0 0.0
    %2286 = vmatprep.subr.mxu0 0.0
    %2287 = vmatpush1.xpose.msra.mxu0 0.0
    %2288 = vmatprep.subr.mxu0 0.0
    %2289 = vmatpush1.xpose.msra.mxu0 0.0
    %2290 = vmatprep.mubr.f32.mxu0 0.0
    %2291 = vmatmul.mubr.f32.gmra.mrb[0].mxu0 %v2200
    %v2292 = vpop.f32.mrb[0].mxu0
    %v2293 = vadd.f32 0.0, %v2292
    %v2294 = vpop.f32.mrb[0].mxu0
    %2295 = vdwg.mxu0
    %v2297 = vsel %vm500, %v1880, 0
    %v2300 = vsel %vm500, %v2003, 0
    %v2303 = vsel %vm500, %v2008, 0
    %v2306 = vsel %vm500, %v2013, 0
    %v2309 = vsel %vm500, %v2018, 0
    %v2312 = vsel %vm500, %v2023, 0
    %v2315 = vsel %vm500, %v2028, 0
    %v2318 = vsel %vm500, %v2033, 0
    %v2321 = vsel %vm500, %v2038, 0
    %2323 = vmatprep.subr.mxu0 0.0
    %2324 = vmatpush1.xpose.msra.mxu0 %v2300
    %2325 = vmatprep.subr.mxu0 0.0
    %2326 = vmatpush1.xpose.msra.mxu0 %v2303
    %2327 = vmatprep.subr.mxu0 0.0
    %2328 = vmatpush1.xpose.msra.mxu0 %v2306
    %2329 = vmatprep.subr.mxu0 0.0
    %2330 = vmatpush1.xpose.msra.mxu0 %v2309
    %2331 = vmatprep.subr.mxu0 0.0
    %2332 = vmatpush1.xpose.msra.mxu0 %v2312
    %2333 = vmatprep.subr.mxu0 0.0
    %2334 = vmatpush1.xpose.msra.mxu0 %v2315
    %2335 = vmatprep.subr.mxu0 0.0
    %2336 = vmatpush1.xpose.msra.mxu0 %v2318
    %2337 = vmatprep.subr.mxu0 0.0
    %2338 = vmatpush1.xpose.msra.mxu0 %v2321
    %2339 = vmatprep.subr.mxu0 0.0
    %2340 = vmatpush1.xpose.msra.mxu0 0.0
    %2341 = vmatprep.subr.mxu0 0.0
    %2342 = vmatpush1.xpose.msra.mxu0 0.0
    %2343 = vmatprep.subr.mxu0 0.0
    %2344 = vmatpush1.xpose.msra.mxu0 0.0
    %2345 = vmatprep.subr.mxu0 0.0
    %2346 = vmatpush1.xpose.msra.mxu0 0.0
    %2347 = vmatprep.subr.mxu0 0.0
    %2348 = vmatpush1.xpose.msra.mxu0 0.0
    %2349 = vmatprep.subr.mxu0 0.0
    %2350 = vmatpush1.xpose.msra.mxu0 0.0
    %2351 = vmatprep.subr.mxu0 0.0
    %2352 = vmatpush1.xpose.msra.mxu0 0.0
    %2353 = vmatprep.subr.mxu0 0.0
    %2354 = vmatpush1.xpose.msra.mxu0 0.0
    %2355 = vmatprep.subr.mxu0 0.0
    %2356 = vmatpush1.xpose.msra.mxu0 0.0
    %2357 = vmatprep.subr.mxu0 0.0
    %2358 = vmatpush1.xpose.msra.mxu0 0.0
    %2359 = vmatprep.subr.mxu0 0.0
    %2360 = vmatpush1.xpose.msra.mxu0 0.0
    %2361 = vmatprep.subr.mxu0 0.0
    %2362 = vmatpush1.xpose.msra.mxu0 0.0
    %2363 = vmatprep.subr.mxu0 0.0
    %2364 = vmatpush1.xpose.msra.mxu0 0.0
    %2365 = vmatprep.subr.mxu0 0.0
    %2366 = vmatpush1.xpose.msra.mxu0 0.0
    %2367 = vmatprep.subr.mxu0 0.0
    %2368 = vmatpush1.xpose.msra.mxu0 0.0
    %2369 = vmatprep.subr.mxu0 0.0
    %2370 = vmatpush1.xpose.msra.mxu0 0.0
    %2371 = vmatprep.subr.mxu0 0.0
    %2372 = vmatpush1.xpose.msra.mxu0 0.0
    %2373 = vmatprep.subr.mxu0 0.0
    %2374 = vmatpush1.xpose.msra.mxu0 0.0
    %2375 = vmatprep.subr.mxu0 0.0
    %2376 = vmatpush1.xpose.msra.mxu0 0.0
    %2377 = vmatprep.subr.mxu0 0.0
    %2378 = vmatpush1.xpose.msra.mxu0 0.0
    %2379 = vmatprep.subr.mxu0 0.0
    %2380 = vmatpush1.xpose.msra.mxu0 0.0
    %2381 = vmatprep.subr.mxu0 0.0
    %2382 = vmatpush1.xpose.msra.mxu0 0.0
    %2383 = vmatprep.subr.mxu0 0.0
    %2384 = vmatpush1.xpose.msra.mxu0 0.0
    %2385 = vmatprep.subr.mxu0 0.0
    %2386 = vmatpush1.xpose.msra.mxu0 0.0
    %2387 = vmatprep.mubr.f32.mxu0 0.0
    %2388 = vmatmul.mubr.f32.gmra.mrb[0].mxu0 %v2297
    %v2389 = vpop.f32.mrb[0].mxu0
    %v2390 = vadd.f32 0.0, %v2389
    %v2391 = vpop.f32.mrb[0].mxu0
    %2392 = vdwg.mxu0
    %v2393 = vsel %vm695, %v2293, -inf
    %2394 = vmax.xlane.f32.xlu0 %v2393
    %v2395 = vpop.xlane.xlu0 %2394
    %v2396 = vsel %vm695, %v2390, -inf
    %2397 = vmax.xlane.f32.xlu0 %v2396
    %v2398 = vpop.xlane.xlu0 %2397
    %v2399 = vsub.f32 %v2293, %v2395
    %v2400 = vsub.f32 %v2390, %v2398
    %v2401 = vmul.f32 %v2399, 1.442695
    %v2402 = vpow.pop %v2401
    %v2403 = vmul.f32 %v2400, 1.442695
    %v2404 = vpow.pop %v2403
    %v2405 = vsel %vm695, %v2402, 0.0
    %2406 = vadd.xlane.f32.xlu0 %v2405
    %v2407 = vpop.xlane.xlu0 %2406
    %v2408 = vsel %vm695, %v2404, 0.0
    %2409 = vadd.xlane.f32.xlu0 %v2408
    %v2410 = vpop.xlane.xlu0 %2409
    %v2412 = vsel %vm695, %v2402, 0
    %2414 = vmatprep.subr.mxu0 0.0
    %2415 = vmatpush1.msra.mxu0 %v2121
    %2416 = vmatprep.subr.mxu0 0.0
    %2417 = vmatpush1.msra.mxu0 %v2126
    %2418 = vmatprep.subr.mxu0 0.0
    %2419 = vmatpush1.msra.mxu0 %v2131
    %2420 = vmatprep.subr.mxu0 0.0
    %2421 = vmatpush1.msra.mxu0 %v2136
    %2422 = vmatprep.subr.mxu0 0.0
    %2423 = vmatpush1.msra.mxu0 %v2141
    %2424 = vmatprep.subr.mxu0 0.0
    %2425 = vmatpush1.msra.mxu0 %v2146
    %2426 = vmatprep.subr.mxu0 0.0
    %2427 = vmatpush1.msra.mxu0 %v2151
    %2428 = vmatprep.subr.mxu0 0.0
    %2429 = vmatpush1.msra.mxu0 %v2156
    %2430 = vmatprep.subr.mxu0 0.0
    %2431 = vmatpush1.msra.mxu0 0.0
    %2432 = vmatprep.subr.mxu0 0.0
    %2433 = vmatpush1.msra.mxu0 0.0
    %2434 = vmatprep.subr.mxu0 0.0
    %2435 = vmatpush1.msra.mxu0 0.0
    %2436 = vmatprep.subr.mxu0 0.0
    %2437 = vmatpush1.msra.mxu0 0.0
    %2438 = vmatprep.subr.mxu0 0.0
    %2439 = vmatpush1.msra.mxu0 0.0
    %2440 = vmatprep.subr.mxu0 0.0
    %2441 = vmatpush1.msra.mxu0 0.0
    %2442 = vmatprep.subr.mxu0 0.0
    %2443 = vmatpush1.msra.mxu0 0.0
    %2444 = vmatprep.subr.mxu0 0.0
    %2445 = vmatpush1.msra.mxu0 0.0
    %2446 = vmatprep.subr.mxu0 0.0
    %2447 = vmatpush1.msra.mxu0 0.0
    %2448 = vmatprep.subr.mxu0 0.0
    %2449 = vmatpush1.msra.mxu0 0.0
    %2450 = vmatprep.subr.mxu0 0.0
    %2451 = vmatpush1.msra.mxu0 0.0
    %2452 = vmatprep.subr.mxu0 0.0
    %2453 = vmatpush1.msra.mxu0 0.0
    %2454 = vmatprep.subr.mxu0 0.0
    %2455 = vmatpush1.msra.mxu0 0.0
    %2456 = vmatprep.subr.mxu0 0.0
    %2457 = vmatpush1.msra.mxu0 0.0
    %2458 = vmatprep.subr.mxu0 0.0
    %2459 = vmatpush1.msra.mxu0 0.0
    %2460 = vmatprep.subr.mxu0 0.0
    %2461 = vmatpush1.msra.mxu0 0.0
    %2462 = vmatprep.subr.mxu0 0.0
    %2463 = vmatpush1.msra.mxu0 0.0
    %2464 = vmatprep.subr.mxu0 0.0
    %2465 = vmatpush1.msra.mxu0 0.0
    %2466 = vmatprep.subr.mxu0 0.0
    %2467 = vmatpush1.msra.mxu0 0.0
    %2468 = vmatprep.subr.mxu0 0.0
    %2469 = vmatpush1.msra.mxu0 0.0
    %2470 = vmatprep.subr.mxu0 0.0
    %2471 = vmatpush1.msra.mxu0 0.0
    %2472 = vmatprep.subr.mxu0 0.0
    %2473 = vmatpush1.msra.mxu0 0.0
    %2474 = vmatprep.subr.mxu0 0.0
    %2475 = vmatpush1.msra.mxu0 0.0
    %2476 = vmatprep.subr.mxu0 0.0
    %2477 = vmatpush1.msra.mxu0 0.0
    %2478 = vmatprep.mubr.f32.mxu0 0.0
    %2479 = vmatmul.mubr.f32.gmra.mrb[0].mxu0 %v2412
    %v2480 = vpop.f32.mrb[0].mxu0
    %v2481 = vadd.f32 0.0, %v2480
    %v2482 = vpop.f32.mrb[0].mxu0
    %2483 = vdwg.mxu0
    %v2485 = vsel %vm695, %v2404, 0
    %2487 = vmatprep.subr.mxu0 0.0
    %2488 = vmatpush1.msra.mxu0 %v2161
    %2489 = vmatprep.subr.mxu0 0.0
    %2490 = vmatpush1.msra.mxu0 %v2166
    %2491 = vmatprep.subr.mxu0 0.0
    %2492 = vmatpush1.msra.mxu0 %v2171
    %2493 = vmatprep.subr.mxu0 0.0
    %2494 = vmatpush1.msra.mxu0 %v2176
    %2495 = vmatprep.subr.mxu0 0.0
    %2496 = vmatpush1.msra.mxu0 %v2181
    %2497 = vmatprep.subr.mxu0 0.0
    %2498 = vmatpush1.msra.mxu0 %v2186
    %2499 = vmatprep.subr.mxu0 0.0
    %2500 = vmatpush1.msra.mxu0 %v2191
    %2501 = vmatprep.subr.mxu0 0.0
    %2502 = vmatpush1.msra.mxu0 %v2196
    %2503 = vmatprep.subr.mxu0 0.0
    %2504 = vmatpush1.msra.mxu0 0.0
    %2505 = vmatprep.subr.mxu0 0.0
    %2506 = vmatpush1.msra.mxu0 0.0
    %2507 = vmatprep.subr.mxu0 0.0
    %2508 = vmatpush1.msra.mxu0 0.0
    %2509 = vmatprep.subr.mxu0 0.0
    %2510 = vmatpush1.msra.mxu0 0.0
    %2511 = vmatprep.subr.mxu0 0.0
    %2512 = vmatpush1.msra.mxu0 0.0
    %2513 = vmatprep.subr.mxu0 0.0
    %2514 = vmatpush1.msra.mxu0 0.0
    %2515 = vmatprep.subr.mxu0 0.0
    %2516 = vmatpush1.msra.mxu0 0.0
    %2517 = vmatprep.subr.mxu0 0.0
    %2518 = vmatpush1.msra.mxu0 0.0
    %2519 = vmatprep.subr.mxu0 0.0
    %2520 = vmatpush1.msra.mxu0 0.0
    %2521 = vmatprep.subr.mxu0 0.0
    %2522 = vmatpush1.msra.mxu0 0.0
    %2523 = vmatprep.subr.mxu0 0.0
    %2524 = vmatpush1.msra.mxu0 0.0
    %2525 = vmatprep.subr.mxu0 0.0
    %2526 = vmatpush1.msra.mxu0 0.0
    %2527 = vmatprep.subr.mxu0 0.0
    %2528 = vmatpush1.msra.mxu0 0.0
    %2529 = vmatprep.subr.mxu0 0.0
    %2530 = vmatpush1.msra.mxu0 0.0
    %2531 = vmatprep.subr.mxu0 0.0
    %2532 = vmatpush1.msra.mxu0 0.0
    %2533 = vmatprep.subr.mxu0 0.0
    %2534 = vmatpush1.msra.mxu0 0.0
    %2535 = vmatprep.subr.mxu0 0.0
    %2536 = vmatpush1.msra.mxu0 0.0
    %2537 = vmatprep.subr.mxu0 0.0
    %2538 = vmatpush1.msra.mxu0 0.0
    %2539 = vmatprep.subr.mxu0 0.0
    %2540 = vmatpush1.msra.mxu0 0.0
    %2541 = vmatprep.subr.mxu0 0.0
    %2542 = vmatpush1.msra.mxu0 0.0
    %2543 = vmatprep.subr.mxu0 0.0
    %2544 = vmatpush1.msra.mxu0 0.0
    %2545 = vmatprep.subr.mxu0 0.0
    %2546 = vmatpush1.msra.mxu0 0.0
    %2547 = vmatprep.subr.mxu0 0.0
    %2548 = vmatpush1.msra.mxu0 0.0
    %2549 = vmatprep.subr.mxu0 0.0
    %2550 = vmatpush1.msra.mxu0 0.0
    %2551 = vmatprep.mubr.f32.mxu0 0.0
    %2552 = vmatmul.mubr.f32.gmra.mrb[0].mxu0 %v2485
    %v2553 = vpop.f32.mrb[0].mxu0
    %v2554 = vadd.f32 0.0, %v2553
    %v2555 = vpop.f32.mrb[0].mxu0
    %2556 = vdwg.mxu0
    %v2557 = vrcp.pop %v2407
    %v2558 = vrcp.pop %v2410
    %v2559 = vmul.f32 %v2481, %v2557
    %v2560 = vmul.f32 %v2554, %v2558
    %s2561 = scalar_lea.vmem %s3, 16
    %v2562 = vld [vmem:[%s2561] sm:$0xff]
    %v2564 = vsel %vm500, %v2559, 0
    %v2567 = vsel %vm500, %v2560, 0
    %2569 = vmatprep.subr.mxu0 0.0
    %2570 = vmatpush1.msra.mxu0 %v2562
    %2571 = vmatprep.subr.mxu0 0.0
    %2572 = vmatpush1.msra.mxu0 0.0
    %2573 = vmatprep.subr.mxu0 0.0
    %2574 = vmatpush1.msra.mxu0 0.0
    %2575 = vmatprep.subr.mxu0 0.0
    %2576 = vmatpush1.msra.mxu0 0.0
    %2577 = vmatprep.subr.mxu0 0.0
    %2578 = vmatpush1.msra.mxu0 0.0
    %2579 = vmatprep.subr.mxu0 0.0
    %2580 = vmatpush1.msra.mxu0 0.0
    %2581 = vmatprep.subr.mxu0 0.0
    %2582 = vmatpush1.msra.mxu0 0.0
    %2583 = vmatprep.subr.mxu0 0.0
    %2584 = vmatpush1.msra.mxu0 0.0
    %2585 = vmatprep.subr.mxu0 0.0
    %2586 = vmatpush1.msra.mxu0 0.0
    %2587 = vmatprep.subr.mxu0 0.0
    %2588 = vmatpush1.msra.mxu0 0.0
    %2589 = vmatprep.subr.mxu0 0.0
    %2590 = vmatpush1.msra.mxu0 0.0
    %2591 = vmatprep.subr.mxu0 0.0
    %2592 = vmatpush1.msra.mxu0 0.0
    %2593 = vmatprep.subr.mxu0 0.0
    %2594 = vmatpush1.msra.mxu0 0.0
    %2595 = vmatprep.subr.mxu0 0.0
    %2596 = vmatpush1.msra.mxu0 0.0
    %2597 = vmatprep.subr.mxu0 0.0
    %2598 = vmatpush1.msra.mxu0 0.0
    %2599 = vmatprep.subr.mxu0 0.0
    %2600 = vmatpush1.msra.mxu0 0.0
    %2601 = vmatprep.subr.mxu0 0.0
    %2602 = vmatpush1.msra.mxu0 0.0
    %2603 = vmatprep.subr.mxu0 0.0
    %2604 = vmatpush1.msra.mxu0 0.0
    %2605 = vmatprep.subr.mxu0 0.0
    %2606 = vmatpush1.msra.mxu0 0.0
    %2607 = vmatprep.subr.mxu0 0.0
    %2608 = vmatpush1.msra.mxu0 0.0
    %2609 = vmatprep.subr.mxu0 0.0
    %2610 = vmatpush1.msra.mxu0 0.0
    %2611 = vmatprep.subr.mxu0 0.0
    %2612 = vmatpush1.msra.mxu0 0.0
    %2613 = vmatprep.subr.mxu0 0.0
    %2614 = vmatpush1.msra.mxu0 0.0
    %2615 = vmatprep.subr.mxu0 0.0
    %2616 = vmatpush1.msra.mxu0 0.0
    %2617 = vmatprep.subr.mxu0 0.0
    %2618 = vmatpush1.msra.mxu0 0.0
    %2619 = vmatprep.subr.mxu0 0.0
    %2620 = vmatpush1.msra.mxu0 0.0
    %2621 = vmatprep.subr.mxu0 0.0
    %2622 = vmatpush1.msra.mxu0 0.0
    %2623 = vmatprep.subr.mxu0 0.0
    %2624 = vmatpush1.msra.mxu0 0.0
    %2625 = vmatprep.subr.mxu0 0.0
    %2626 = vmatpush1.msra.mxu0 0.0
    %2627 = vmatprep.subr.mxu0 0.0
    %2628 = vmatpush1.msra.mxu0 0.0
    %2629 = vmatprep.subr.mxu0 0.0
    %2630 = vmatpush1.msra.mxu0 0.0
    %2631 = vmatprep.subr.mxu0 0.0
    %2632 = vmatpush1.msra.mxu0 0.0
    %2633 = vmatprep.mubr.f32.mxu0 0.0
    %2634 = vmatmul.mubr.f32.gmra.mrb[0].mxu0 %v2564
    %v2635 = vpop.f32.mrb[0].mxu0
    %v2636 = vadd.f32 0.0, %v2635
    %v2637 = vpop.f32.mrb[0].mxu0
    %2638 = vmatprep.mubr.f32.mxu0 0.0
    %2639 = vmatmul.mubr.f32.gmra.mrb[0].mxu0 %v2567
    %v2640 = vpop.f32.mrb[0].mxu0
    %v2641 = vadd.f32 0.0, %v2640
    %v2642 = vpop.f32.mrb[0].mxu0
    %2643 = vdwg.mxu0
    %v2644 = vadd.f32 %v1787, %v2636
    %v2645 = vadd.f32 %v1792, %v2641
    %s2646 = scalar_lea.vmem %s2, 96
    %v2647 = vld [vmem:[%s2646] sm:$0xff]
    %v2648 = vld [vmem:[%s2646 + $0x8] sm:$0xff]
    %v2649 = vld [vmem:[%s2646 + $0x10] sm:$0xff]
    %v2650 = vld [vmem:[%s2646 + $0x18] sm:$0xff]
    %s2651 = scalar_lea.vmem %s4, 3
    %v2652 = vld [vmem:[%s2651] sm:$0x1]
    %v2654 = vlaneseq
    %v2655 = vshrl.u32 %v2654, 7
    %v2656 = vsub.s32 0, %v2655
    %v2657 = vrot.slane %v2652, %v2656
    %2659 = vmatprep.subr.mxu0 0.0
    %2660 = vmatpush1.msra.mxu0 %v2647
    %2661 = vmatprep.subr.mxu0 0.0
    %2662 = vmatpush1.msra.mxu0 %v2648
    %2663 = vmatprep.subr.mxu0 0.0
    %2664 = vmatpush1.msra.mxu0 %v2649
    %2665 = vmatprep.subr.mxu0 0.0
    %2666 = vmatpush1.msra.mxu0 %v2650
    %2667 = vmatprep.subr.mxu0 0.0
    %2668 = vmatpush1.msra.mxu0 0.0
    %2669 = vmatprep.subr.mxu0 0.0
    %2670 = vmatpush1.msra.mxu0 0.0
    %2671 = vmatprep.subr.mxu0 0.0
    %2672 = vmatpush1.msra.mxu0 0.0
    %2673 = vmatprep.subr.mxu0 0.0
    %2674 = vmatpush1.msra.mxu0 0.0
    %2675 = vmatprep.subr.mxu0 0.0
    %2676 = vmatpush1.msra.mxu0 0.0
    %2677 = vmatprep.subr.mxu0 0.0
    %2678 = vmatpush1.msra.mxu0 0.0
    %2679 = vmatprep.subr.mxu0 0.0
    %2680 = vmatpush1.msra.mxu0 0.0
    %2681 = vmatprep.subr.mxu0 0.0
    %2682 = vmatpush1.msra.mxu0 0.0
    %2683 = vmatprep.subr.mxu0 0.0
    %2684 = vmatpush1.msra.mxu0 0.0
    %2685 = vmatprep.subr.mxu0 0.0
    %2686 = vmatpush1.msra.mxu0 0.0
    %2687 = vmatprep.subr.mxu0 0.0
    %2688 = vmatpush1.msra.mxu0 0.0
    %2689 = vmatprep.subr.mxu0 0.0
    %2690 = vmatpush1.msra.mxu0 0.0
    %2691 = vmatprep.subr.mxu0 0.0
    %2692 = vmatpush1.msra.mxu0 0.0
    %2693 = vmatprep.subr.mxu0 0.0
    %2694 = vmatpush1.msra.mxu0 0.0
    %2695 = vmatprep.subr.mxu0 0.0
    %2696 = vmatpush1.msra.mxu0 0.0
    %2697 = vmatprep.subr.mxu0 0.0
    %2698 = vmatpush1.msra.mxu0 0.0
    %2699 = vmatprep.subr.mxu0 0.0
    %2700 = vmatpush1.msra.mxu0 0.0
    %2701 = vmatprep.subr.mxu0 0.0
    %2702 = vmatpush1.msra.mxu0 0.0
    %2703 = vmatprep.subr.mxu0 0.0
    %2704 = vmatpush1.msra.mxu0 0.0
    %2705 = vmatprep.subr.mxu0 0.0
    %2706 = vmatpush1.msra.mxu0 0.0
    %2707 = vmatprep.subr.mxu0 0.0
    %2708 = vmatpush1.msra.mxu0 0.0
    %2709 = vmatprep.subr.mxu0 0.0
    %2710 = vmatpush1.msra.mxu0 0.0
    %2711 = vmatprep.subr.mxu0 0.0
    %2712 = vmatpush1.msra.mxu0 0.0
    %2713 = vmatprep.subr.mxu0 0.0
    %2714 = vmatpush1.msra.mxu0 0.0
    %2715 = vmatprep.subr.mxu0 0.0
    %2716 = vmatpush1.msra.mxu0 0.0
    %2717 = vmatprep.subr.mxu0 0.0
    %2718 = vmatpush1.msra.mxu0 0.0
    %2719 = vmatprep.subr.mxu0 0.0
    %2720 = vmatpush1.msra.mxu0 0.0
    %2721 = vmatprep.subr.mxu0 0.0
    %2722 = vmatpush1.msra.mxu0 0.0
    %2723 = vmatprep.mubr.f32.mxu0 0.0
    %2724 = vmatmul.mubr.f32.gmra.mrb[0].mxu0 %v56
    %v2725 = vpop.f32.mrb[0].mxu0
    %v2726 = vadd.f32 %v2657, %v2725
    %v2727 = vpop.f32.mrb[0].mxu0
    %2728 = vmatprep.mubr.f32.mxu0 0.0
    %2729 = vmatmul.mubr.f32.gmra.mrb[0].mxu0 %v59
    %v2730 = vpop.f32.mrb[0].mxu0
    %v2731 = vadd.f32 %v2657, %v2730
    %v2732 = vpop.f32.mrb[0].mxu0
    %2733 = vdwg.mxu0
    %s2734 = scalar_lea.vmem %s2, 224
    %v2735 = vld [vmem:[%s2734] sm:$0xff]
    %v2736 = vld [vmem:[%s2734 + $0x8] sm:$0xff]
    %v2737 = vld [vmem:[%s2734 + $0x10] sm:$0xff]
    %v2738 = vld [vmem:[%s2734 + $0x18] sm:$0xff]
    %s2739 = scalar_lea.vmem %s4, 7
    %v2740 = vld [vmem:[%s2739] sm:$0x1]
    %v2742 = vlaneseq
    %v2743 = vshrl.u32 %v2742, 7
    %v2744 = vsub.s32 0, %v2743
    %v2745 = vrot.slane %v2740, %v2744
    %2747 = vmatprep.subr.mxu0 0.0
    %2748 = vmatpush1.msra.mxu0 %v2735
    %2749 = vmatprep.subr.mxu0 0.0
    %2750 = vmatpush1.msra.mxu0 %v2736
    %2751 = vmatprep.subr.mxu0 0.0
    %2752 = vmatpush1.msra.mxu0 %v2737
    %2753 = vmatprep.subr.mxu0 0.0
    %2754 = vmatpush1.msra.mxu0 %v2738
    %2755 = vmatprep.subr.mxu0 0.0
    %2756 = vmatpush1.msra.mxu0 0.0
    %2757 = vmatprep.subr.mxu0 0.0
    %2758 = vmatpush1.msra.mxu0 0.0
    %2759 = vmatprep.subr.mxu0 0.0
    %2760 = vmatpush1.msra.mxu0 0.0
    %2761 = vmatprep.subr.mxu0 0.0
    %2762 = vmatpush1.msra.mxu0 0.0
    %2763 = vmatprep.subr.mxu0 0.0
    %2764 = vmatpush1.msra.mxu0 0.0
    %2765 = vmatprep.subr.mxu0 0.0
    %2766 = vmatpush1.msra.mxu0 0.0
    %2767 = vmatprep.subr.mxu0 0.0
    %2768 = vmatpush1.msra.mxu0 0.0
    %2769 = vmatprep.subr.mxu0 0.0
    %2770 = vmatpush1.msra.mxu0 0.0
    %2771 = vmatprep.subr.mxu0 0.0
    %2772 = vmatpush1.msra.mxu0 0.0
    %2773 = vmatprep.subr.mxu0 0.0
    %2774 = vmatpush1.msra.mxu0 0.0
    %2775 = vmatprep.subr.mxu0 0.0
    %2776 = vmatpush1.msra.mxu0 0.0
    %2777 = vmatprep.subr.mxu0 0.0
    %2778 = vmatpush1.msra.mxu0 0.0
    %2779 = vmatprep.subr.mxu0 0.0
    %2780 = vmatpush1.msra.mxu0 0.0
    %2781 = vmatprep.subr.mxu0 0.0
    %2782 = vmatpush1.msra.mxu0 0.0
    %2783 = vmatprep.subr.mxu0 0.0
    %2784 = vmatpush1.msra.mxu0 0.0
    %2785 = vmatprep.subr.mxu0 0.0
    %2786 = vmatpush1.msra.mxu0 0.0
    %2787 = vmatprep.subr.mxu0 0.0
    %2788 = vmatpush1.msra.mxu0 0.0
    %2789 = vmatprep.subr.mxu0 0.0
    %2790 = vmatpush1.msra.mxu0 0.0
    %2791 = vmatprep.subr.mxu0 0.0
    %2792 = vmatpush1.msra.mxu0 0.0
    %2793 = vmatprep.subr.mxu0 0.0
    %2794 = vmatpush1.msra.mxu0 0.0
    %2795 = vmatprep.subr.mxu0 0.0
    %2796 = vmatpush1.msra.mxu0 0.0
    %2797 = vmatprep.subr.mxu0 0.0
    %2798 = vmatpush1.msra.mxu0 0.0
    %2799 = vmatprep.subr.mxu0 0.0
    %2800 = vmatpush1.msra.mxu0 0.0
    %2801 = vmatprep.subr.mxu0 0.0
    %2802 = vmatpush1.msra.mxu0 0.0
    %2803 = vmatprep.subr.mxu0 0.0
    %2804 = vmatpush1.msra.mxu0 0.0
    %2805 = vmatprep.subr.mxu0 0.0
    %2806 = vmatpush1.msra.mxu0 0.0
    %2807 = vmatprep.subr.mxu0 0.0
    %2808 = vmatpush1.msra.mxu0 0.0
    %2809 = vmatprep.subr.mxu0 0.0
    %2810 = vmatpush1.msra.mxu0 0.0
    %2811 = vmatprep.mubr.f32.mxu0 0.0
    %2812 = vmatmul.mubr.f32.gmra.mrb[0].mxu0 %v150
    %v2813 = vpop.f32.mrb[0].mxu0
    %v2814 = vadd.f32 %v2745, %v2813
    %v2815 = vpop.f32.mrb[0].mxu0
    %2816 = vmatprep.mubr.f32.mxu0 0.0
    %2817 = vmatmul.mubr.f32.gmra.mrb[0].mxu0 %v153
    %v2818 = vpop.f32.mrb[0].mxu0
    %v2819 = vadd.f32 %v2745, %v2818
    %v2820 = vpop.f32.mrb[0].mxu0
    %2821 = vmatprep.mubr.f32.mxu0 0.0
    %2822 = vmatmul.mubr.f32.gmra.mrb[0].mxu0 %v156
    %v2823 = vpop.f32.mrb[0].mxu0
    %v2824 = vadd.f32 %v2745, %v2823
    %v2825 = vpop.f32.mrb[0].mxu0
    %2826 = vmatprep.mubr.f32.mxu0 0.0
    %2827 = vmatmul.mubr.f32.gmra.mrb[0].mxu0 %v159
    %v2828 = vpop.f32.mrb[0].mxu0
    %v2829 = vadd.f32 %v2745, %v2828
    %v2830 = vpop.f32.mrb[0].mxu0
    %2831 = vmatprep.mubr.f32.mxu0 0.0
    %2832 = vmatmul.mubr.f32.gmra.mrb[0].mxu0 %v162
    %v2833 = vpop.f32.mrb[0].mxu0
    %v2834 = vadd.f32 %v2745, %v2833
    %v2835 = vpop.f32.mrb[0].mxu0
    %2836 = vmatprep.mubr.f32.mxu0 0.0
    %2837 = vmatmul.mubr.f32.gmra.mrb[0].mxu0 %v165
    %v2838 = vpop.f32.mrb[0].mxu0
    %v2839 = vadd.f32 %v2745, %v2838
    %v2840 = vpop.f32.mrb[0].mxu0
    %2841 = vmatprep.mubr.f32.mxu0 0.0
    %2842 = vmatmul.mubr.f32.gmra.mrb[0].mxu0 %v168
    %v2843 = vpop.f32.mrb[0].mxu0
    %v2844 = vadd.f32 %v2745, %v2843
    %v2845 = vpop.f32.mrb[0].mxu0
    %2846 = vmatprep.mubr.f32.mxu0 0.0
    %2847 = vmatmul.mubr.f32.gmra.mrb[0].mxu0 %v171
    %v2848 = vpop.f32.mrb[0].mxu0
    %v2849 = vadd.f32 %v2745, %v2848
    %v2850 = vpop.f32.mrb[0].mxu0
    %2851 = vmatprep.mubr.f32.mxu0 0.0
    %2852 = vmatmul.mubr.f32.gmra.mrb[0].mxu0 %v174
    %v2853 = vpop.f32.mrb[0].mxu0
    %v2854 = vadd.f32 %v2745, %v2853
    %v2855 = vpop.f32.mrb[0].mxu0
    %2856 = vmatprep.mubr.f32.mxu0 0.0
    %2857 = vmatmul.mubr.f32.gmra.mrb[0].mxu0 %v177
    %v2858 = vpop.f32.mrb[0].mxu0
    %v2859 = vadd.f32 %v2745, %v2858
    %v2860 = vpop.f32.mrb[0].mxu0
    %2861 = vmatprep.mubr.f32.mxu0 0.0
    %2862 = vmatmul.mubr.f32.gmra.mrb[0].mxu0 %v180
    %v2863 = vpop.f32.mrb[0].mxu0
    %v2864 = vadd.f32 %v2745, %v2863
    %v2865 = vpop.f32.mrb[0].mxu0
    %2866 = vmatprep.mubr.f32.mxu0 0.0
    %2867 = vmatmul.mubr.f32.gmra.mrb[0].mxu0 %v183
    %v2868 = vpop.f32.mrb[0].mxu0
    %v2869 = vadd.f32 %v2745, %v2868
    %v2870 = vpop.f32.mrb[0].mxu0
    %2871 = vmatprep.mubr.f32.mxu0 0.0
    %2872 = vmatmul.mubr.f32.gmra.mrb[0].mxu0 %v186
    %v2873 = vpop.f32.mrb[0].mxu0
    %v2874 = vadd.f32 %v2745, %v2873
    %v2875 = vpop.f32.mrb[0].mxu0
    %2876 = vmatprep.mubr.f32.mxu0 0.0
    %2877 = vmatmul.mubr.f32.gmra.mrb[0].mxu0 %v189
    %v2878 = vpop.f32.mrb[0].mxu0
    %v2879 = vadd.f32 %v2745, %v2878
    %v2880 = vpop.f32.mrb[0].mxu0
    %2881 = vmatprep.mubr.f32.mxu0 0.0
    %2882 = vmatmul.mubr.f32.gmra.mrb[0].mxu0 %v192
    %v2883 = vpop.f32.mrb[0].mxu0
    %v2884 = vadd.f32 %v2745, %v2883
    %v2885 = vpop.f32.mrb[0].mxu0
    %2886 = vmatprep.mubr.f32.mxu0 0.0
    %2887 = vmatmul.mubr.f32.gmra.mrb[0].mxu0 %v195
    %v2888 = vpop.f32.mrb[0].mxu0
    %v2889 = vadd.f32 %v2745, %v2888
    %v2890 = vpop.f32.mrb[0].mxu0
    %2891 = vdwg.mxu0
    %s2892 = scalar_lea.vmem %s2, 352
    %v2893 = vld [vmem:[%s2892] sm:$0xff]
    %v2894 = vld [vmem:[%s2892 + $0x8] sm:$0xff]
    %v2895 = vld [vmem:[%s2892 + $0x10] sm:$0xff]
    %v2896 = vld [vmem:[%s2892 + $0x18] sm:$0xff]
    %s2897 = scalar_lea.vmem %s4, 11
    %v2898 = vld [vmem:[%s2897] sm:$0x1]
    %v2900 = vlaneseq
    %v2901 = vshrl.u32 %v2900, 7
    %v2902 = vsub.s32 0, %v2901
    %v2903 = vrot.slane %v2898, %v2902
    %2905 = vmatprep.subr.mxu0 0.0
    %2906 = vmatpush1.msra.mxu0 %v2893
    %2907 = vmatprep.subr.mxu0 0.0
    %2908 = vmatpush1.msra.mxu0 %v2894
    %2909 = vmatprep.subr.mxu0 0.0
    %2910 = vmatpush1.msra.mxu0 %v2895
    %2911 = vmatprep.subr.mxu0 0.0
    %2912 = vmatpush1.msra.mxu0 %v2896
    %2913 = vmatprep.subr.mxu0 0.0
    %2914 = vmatpush1.msra.mxu0 0.0
    %2915 = vmatprep.subr.mxu0 0.0
    %2916 = vmatpush1.msra.mxu0 0.0
    %2917 = vmatprep.subr.mxu0 0.0
    %2918 = vmatpush1.msra.mxu0 0.0
    %2919 = vmatprep.subr.mxu0 0.0
    %2920 = vmatpush1.msra.mxu0 0.0
    %2921 = vmatprep.subr.mxu0 0.0
    %2922 = vmatpush1.msra.mxu0 0.0
    %2923 = vmatprep.subr.mxu0 0.0
    %2924 = vmatpush1.msra.mxu0 0.0
    %2925 = vmatprep.subr.mxu0 0.0
    %2926 = vmatpush1.msra.mxu0 0.0
    %2927 = vmatprep.subr.mxu0 0.0
    %2928 = vmatpush1.msra.mxu0 0.0
    %2929 = vmatprep.subr.mxu0 0.0
    %2930 = vmatpush1.msra.mxu0 0.0
    %2931 = vmatprep.subr.mxu0 0.0
    %2932 = vmatpush1.msra.mxu0 0.0
    %2933 = vmatprep.subr.mxu0 0.0
    %2934 = vmatpush1.msra.mxu0 0.0
    %2935 = vmatprep.subr.mxu0 0.0
    %2936 = vmatpush1.msra.mxu0 0.0
    %2937 = vmatprep.subr.mxu0 0.0
    %2938 = vmatpush1.msra.mxu0 0.0
    %2939 = vmatprep.subr.mxu0 0.0
    %2940 = vmatpush1.msra.mxu0 0.0
    %2941 = vmatprep.subr.mxu0 0.0
    %2942 = vmatpush1.msra.mxu0 0.0
    %2943 = vmatprep.subr.mxu0 0.0
    %2944 = vmatpush1.msra.mxu0 0.0
    %2945 = vmatprep.subr.mxu0 0.0
    %2946 = vmatpush1.msra.mxu0 0.0
    %2947 = vmatprep.subr.mxu0 0.0
    %2948 = vmatpush1.msra.mxu0 0.0
    %2949 = vmatprep.subr.mxu0 0.0
    %2950 = vmatpush1.msra.mxu0 0.0
    %2951 = vmatprep.subr.mxu0 0.0
    %2952 = vmatpush1.msra.mxu0 0.0
    %2953 = vmatprep.subr.mxu0 0.0
    %2954 = vmatpush1.msra.mxu0 0.0
    %2955 = vmatprep.subr.mxu0 0.0
    %2956 = vmatpush1.msra.mxu0 0.0
    %2957 = vmatprep.subr.mxu0 0.0
    %2958 = vmatpush1.msra.mxu0 0.0
    %2959 = vmatprep.subr.mxu0 0.0
    %2960 = vmatpush1.msra.mxu0 0.0
    %2961 = vmatprep.subr.mxu0 0.0
    %2962 = vmatpush1.msra.mxu0 0.0
    %2963 = vmatprep.subr.mxu0 0.0
    %2964 = vmatpush1.msra.mxu0 0.0
    %2965 = vmatprep.subr.mxu0 0.0
    %2966 = vmatpush1.msra.mxu0 0.0
    %2967 = vmatprep.subr.mxu0 0.0
    %2968 = vmatpush1.msra.mxu0 0.0
    %2969 = vmatprep.mubr.f32.mxu0 0.0
    %2970 = vmatmul.mubr.f32.gmra.mrb[0].mxu0 %v150
    %v2971 = vpop.f32.mrb[0].mxu0
    %v2972 = vadd.f32 %v2903, %v2971
    %v2973 = vpop.f32.mrb[0].mxu0
    %2974 = vmatprep.mubr.f32.mxu0 0.0
    %2975 = vmatmul.mubr.f32.gmra.mrb[0].mxu0 %v153
    %v2976 = vpop.f32.mrb[0].mxu0
    %v2977 = vadd.f32 %v2903, %v2976
    %v2978 = vpop.f32.mrb[0].mxu0
    %2979 = vmatprep.mubr.f32.mxu0 0.0
    %2980 = vmatmul.mubr.f32.gmra.mrb[0].mxu0 %v156
    %v2981 = vpop.f32.mrb[0].mxu0
    %v2982 = vadd.f32 %v2903, %v2981
    %v2983 = vpop.f32.mrb[0].mxu0
    %2984 = vmatprep.mubr.f32.mxu0 0.0
    %2985 = vmatmul.mubr.f32.gmra.mrb[0].mxu0 %v159
    %v2986 = vpop.f32.mrb[0].mxu0
    %v2987 = vadd.f32 %v2903, %v2986
    %v2988 = vpop.f32.mrb[0].mxu0
    %2989 = vmatprep.mubr.f32.mxu0 0.0
    %2990 = vmatmul.mubr.f32.gmra.mrb[0].mxu0 %v162
    %v2991 = vpop.f32.mrb[0].mxu0
    %v2992 = vadd.f32 %v2903, %v2991
    %v2993 = vpop.f32.mrb[0].mxu0
    %2994 = vmatprep.mubr.f32.mxu0 0.0
    %2995 = vmatmul.mubr.f32.gmra.mrb[0].mxu0 %v165
    %v2996 = vpop.f32.mrb[0].mxu0
    %v2997 = vadd.f32 %v2903, %v2996
    %v2998 = vpop.f32.mrb[0].mxu0
    %2999 = vmatprep.mubr.f32.mxu0 0.0
    %3000 = vmatmul.mubr.f32.gmra.mrb[0].mxu0 %v168
    %v3001 = vpop.f32.mrb[0].mxu0
    %v3002 = vadd.f32 %v2903, %v3001
    %v3003 = vpop.f32.mrb[0].mxu0
    %3004 = vmatprep.mubr.f32.mxu0 0.0
    %3005 = vmatmul.mubr.f32.gmra.mrb[0].mxu0 %v171
    %v3006 = vpop.f32.mrb[0].mxu0
    %v3007 = vadd.f32 %v2903, %v3006
    %v3008 = vpop.f32.mrb[0].mxu0
    %3009 = vmatprep.mubr.f32.mxu0 0.0
    %3010 = vmatmul.mubr.f32.gmra.mrb[0].mxu0 %v174
    %v3011 = vpop.f32.mrb[0].mxu0
    %v3012 = vadd.f32 %v2903, %v3011
    %v3013 = vpop.f32.mrb[0].mxu0
    %3014 = vmatprep.mubr.f32.mxu0 0.0
    %3015 = vmatmul.mubr.f32.gmra.mrb[0].mxu0 %v177
    %v3016 = vpop.f32.mrb[0].mxu0
    %v3017 = vadd.f32 %v2903, %v3016
    %v3018 = vpop.f32.mrb[0].mxu0
    %3019 = vmatprep.mubr.f32.mxu0 0.0
    %3020 = vmatmul.mubr.f32.gmra.mrb[0].mxu0 %v180
    %v3021 = vpop.f32.mrb[0].mxu0
    %v3022 = vadd.f32 %v2903, %v3021
    %v3023 = vpop.f32.mrb[0].mxu0
    %3024 = vmatprep.mubr.f32.mxu0 0.0
    %3025 = vmatmul.mubr.f32.gmra.mrb[0].mxu0 %v183
    %v3026 = vpop.f32.mrb[0].mxu0
    %v3027 = vadd.f32 %v2903, %v3026
    %v3028 = vpop.f32.mrb[0].mxu0
    %3029 = vmatprep.mubr.f32.mxu0 0.0
    %3030 = vmatmul.mubr.f32.gmra.mrb[0].mxu0 %v186
    %v3031 = vpop.f32.mrb[0].mxu0
    %v3032 = vadd.f32 %v2903, %v3031
    %v3033 = vpop.f32.mrb[0].mxu0
    %3034 = vmatprep.mubr.f32.mxu0 0.0
    %3035 = vmatmul.mubr.f32.gmra.mrb[0].mxu0 %v189
    %v3036 = vpop.f32.mrb[0].mxu0
    %v3037 = vadd.f32 %v2903, %v3036
    %v3038 = vpop.f32.mrb[0].mxu0
    %3039 = vmatprep.mubr.f32.mxu0 0.0
    %3040 = vmatmul.mubr.f32.gmra.mrb[0].mxu0 %v192
    %v3041 = vpop.f32.mrb[0].mxu0
    %v3042 = vadd.f32 %v2903, %v3041
    %v3043 = vpop.f32.mrb[0].mxu0
    %3044 = vmatprep.mubr.f32.mxu0 0.0
    %3045 = vmatmul.mubr.f32.gmra.mrb[0].mxu0 %v195
    %v3046 = vpop.f32.mrb[0].mxu0
    %v3047 = vadd.f32 %v2903, %v3046
    %v3048 = vpop.f32.mrb[0].mxu0
    %3049 = vdwg.mxu0
    %v3051 = vsel %vm500, %v2726, 0
    %v3054 = vsel %vm500, %v2814, 0
    %v3057 = vsel %vm500, %v2819, 0
    %v3060 = vsel %vm500, %v2824, 0
    %v3063 = vsel %vm500, %v2829, 0
    %v3066 = vsel %vm500, %v2834, 0
    %v3069 = vsel %vm500, %v2839, 0
    %v3072 = vsel %vm500, %v2844, 0
    %v3075 = vsel %vm500, %v2849, 0
    %3077 = vmatprep.subr.mxu0 0.0
    %3078 = vmatpush1.xpose.msra.mxu0 %v3054
    %3079 = vmatprep.subr.mxu0 0.0
    %3080 = vmatpush1.xpose.msra.mxu0 %v3057
    %3081 = vmatprep.subr.mxu0 0.0
    %3082 = vmatpush1.xpose.msra.mxu0 %v3060
    %3083 = vmatprep.subr.mxu0 0.0
    %3084 = vmatpush1.xpose.msra.mxu0 %v3063
    %3085 = vmatprep.subr.mxu0 0.0
    %3086 = vmatpush1.xpose.msra.mxu0 %v3066
    %3087 = vmatprep.subr.mxu0 0.0
    %3088 = vmatpush1.xpose.msra.mxu0 %v3069
    %3089 = vmatprep.subr.mxu0 0.0
    %3090 = vmatpush1.xpose.msra.mxu0 %v3072
    %3091 = vmatprep.subr.mxu0 0.0
    %3092 = vmatpush1.xpose.msra.mxu0 %v3075
    %3093 = vmatprep.subr.mxu0 0.0
    %3094 = vmatpush1.xpose.msra.mxu0 0.0
    %3095 = vmatprep.subr.mxu0 0.0
    %3096 = vmatpush1.xpose.msra.mxu0 0.0
    %3097 = vmatprep.subr.mxu0 0.0
    %3098 = vmatpush1.xpose.msra.mxu0 0.0
    %3099 = vmatprep.subr.mxu0 0.0
    %3100 = vmatpush1.xpose.msra.mxu0 0.0
    %3101 = vmatprep.subr.mxu0 0.0
    %3102 = vmatpush1.xpose.msra.mxu0 0.0
    %3103 = vmatprep.subr.mxu0 0.0
    %3104 = vmatpush1.xpose.msra.mxu0 0.0
    %3105 = vmatprep.subr.mxu0 0.0
    %3106 = vmatpush1.xpose.msra.mxu0 0.0
    %3107 = vmatprep.subr.mxu0 0.0
    %3108 = vmatpush1.xpose.msra.mxu0 0.0
    %3109 = vmatprep.subr.mxu0 0.0
    %3110 = vmatpush1.xpose.msra.mxu0 0.0
    %3111 = vmatprep.subr.mxu0 0.0
    %3112 = vmatpush1.xpose.msra.mxu0 0.0
    %3113 = vmatprep.subr.mxu0 0.0
    %3114 = vmatpush1.xpose.msra.mxu0 0.0
    %3115 = vmatprep.subr.mxu0 0.0
    %3116 = vmatpush1.xpose.msra.mxu0 0.0
    %3117 = vmatprep.subr.mxu0 0.0
    %3118 = vmatpush1.xpose.msra.mxu0 0.0
    %3119 = vmatprep.subr.mxu0 0.0
    %3120 = vmatpush1.xpose.msra.mxu0 0.0
    %3121 = vmatprep.subr.mxu0 0.0
    %3122 = vmatpush1.xpose.msra.mxu0 0.0
    %3123 = vmatprep.subr.mxu0 0.0
    %3124 = vmatpush1.xpose.msra.mxu0 0.0
    %3125 = vmatprep.subr.mxu0 0.0
    %3126 = vmatpush1.xpose.msra.mxu0 0.0
    %3127 = vmatprep.subr.mxu0 0.0
    %3128 = vmatpush1.xpose.msra.mxu0 0.0
    %3129 = vmatprep.subr.mxu0 0.0
    %3130 = vmatpush1.xpose.msra.mxu0 0.0
    %3131 = vmatprep.subr.mxu0 0.0
    %3132 = vmatpush1.xpose.msra.mxu0 0.0
    %3133 = vmatprep.subr.mxu0 0.0
    %3134 = vmatpush1.xpose.msra.mxu0 0.0
    %3135 = vmatprep.subr.mxu0 0.0
    %3136 = vmatpush1.xpose.msra.mxu0 0.0
    %3137 = vmatprep.subr.mxu0 0.0
    %3138 = vmatpush1.xpose.msra.mxu0 0.0
    %3139 = vmatprep.subr.mxu0 0.0
    %3140 = vmatpush1.xpose.msra.mxu0 0.0
    %3141 = vmatprep.mubr.f32.mxu0 0.0
    %3142 = vmatmul.mubr.f32.gmra.mrb[0].mxu0 %v3051
    %v3143 = vpop.f32.mrb[0].mxu0
    %v3144 = vadd.f32 0.0, %v3143
    %v3145 = vpop.f32.mrb[0].mxu0
    %3146 = vdwg.mxu0
    %v3148 = vsel %vm500, %v2731, 0
    %v3151 = vsel %vm500, %v2854, 0
    %v3154 = vsel %vm500, %v2859, 0
    %v3157 = vsel %vm500, %v2864, 0
    %v3160 = vsel %vm500, %v2869, 0
    %v3163 = vsel %vm500, %v2874, 0
    %v3166 = vsel %vm500, %v2879, 0
    %v3169 = vsel %vm500, %v2884, 0
    %v3172 = vsel %vm500, %v2889, 0
    %3174 = vmatprep.subr.mxu0 0.0
    %3175 = vmatpush1.xpose.msra.mxu0 %v3151
    %3176 = vmatprep.subr.mxu0 0.0
    %3177 = vmatpush1.xpose.msra.mxu0 %v3154
    %3178 = vmatprep.subr.mxu0 0.0
    %3179 = vmatpush1.xpose.msra.mxu0 %v3157
    %3180 = vmatprep.subr.mxu0 0.0
    %3181 = vmatpush1.xpose.msra.mxu0 %v3160
    %3182 = vmatprep.subr.mxu0 0.0
    %3183 = vmatpush1.xpose.msra.mxu0 %v3163
    %3184 = vmatprep.subr.mxu0 0.0
    %3185 = vmatpush1.xpose.msra.mxu0 %v3166
    %3186 = vmatprep.subr.mxu0 0.0
    %3187 = vmatpush1.xpose.msra.mxu0 %v3169
    %3188 = vmatprep.subr.mxu0 0.0
    %3189 = vmatpush1.xpose.msra.mxu0 %v3172
    %3190 = vmatprep.subr.mxu0 0.0
    %3191 = vmatpush1.xpose.msra.mxu0 0.0
    %3192 = vmatprep.subr.mxu0 0.0
    %3193 = vmatpush1.xpose.msra.mxu0 0.0
    %3194 = vmatprep.subr.mxu0 0.0
    %3195 = vmatpush1.xpose.msra.mxu0 0.0
    %3196 = vmatprep.subr.mxu0 0.0
    %3197 = vmatpush1.xpose.msra.mxu0 0.0
    %3198 = vmatprep.subr.mxu0 0.0
    %3199 = vmatpush1.xpose.msra.mxu0 0.0
    %3200 = vmatprep.subr.mxu0 0.0
    %3201 = vmatpush1.xpose.msra.mxu0 0.0
    %3202 = vmatprep.subr.mxu0 0.0
    %3203 = vmatpush1.xpose.msra.mxu0 0.0
    %3204 = vmatprep.subr.mxu0 0.0
    %3205 = vmatpush1.xpose.msra.mxu0 0.0
    %3206 = vmatprep.subr.mxu0 0.0
    %3207 = vmatpush1.xpose.msra.mxu0 0.0
    %3208 = vmatprep.subr.mxu0 0.0
    %3209 = vmatpush1.xpose.msra.mxu0 0.0
    %3210 = vmatprep.subr.mxu0 0.0
    %3211 = vmatpush1.xpose.msra.mxu0 0.0
    %3212 = vmatprep.subr.mxu0 0.0
    %3213 = vmatpush1.xpose.msra.mxu0 0.0
    %3214 = vmatprep.subr.mxu0 0.0
    %3215 = vmatpush1.xpose.msra.mxu0 0.0
    %3216 = vmatprep.subr.mxu0 0.0
    %3217 = vmatpush1.xpose.msra.mxu0 0.0
    %3218 = vmatprep.subr.mxu0 0.0
    %3219 = vmatpush1.xpose.msra.mxu0 0.0
    %3220 = vmatprep.subr.mxu0 0.0
    %3221 = vmatpush1.xpose.msra.mxu0 0.0
    %3222 = vmatprep.subr.mxu0 0.0
    %3223 = vmatpush1.xpose.msra.mxu0 0.0
    %3224 = vmatprep.subr.mxu0 0.0
    %3225 = vmatpush1.xpose.msra.mxu0 0.0
    %3226 = vmatprep.subr.mxu0 0.0
    %3227 = vmatpush1.xpose.msra.mxu0 0.0
    %3228 = vmatprep.subr.mxu0 0.0
    %3229 = vmatpush1.xpose.msra.mxu0 0.0
    %3230 = vmatprep.subr.mxu0 0.0
    %3231 = vmatpush1.xpose.msra.mxu0 0.0
    %3232 = vmatprep.subr.mxu0 0.0
    %3233 = vmatpush1.xpose.msra.mxu0 0.0
    %3234 = vmatprep.subr.mxu0 0.0
    %3235 = vmatpush1.xpose.msra.mxu0 0.0
    %3236 = vmatprep.subr.mxu0 0.0
    %3237 = vmatpush1.xpose.msra.mxu0 0.0
    %3238 = vmatprep.mubr.f32.mxu0 0.0
    %3239 = vmatmul.mubr.f32.gmra.mrb[0].mxu0 %v3148
    %v3240 = vpop.f32.mrb[0].mxu0
    %v3241 = vadd.f32 0.0, %v3240
    %v3242 = vpop.f32.mrb[0].mxu0
    %3243 = vdwg.mxu0
    %v3244 = vsel %vm695, %v3144, -inf
    %3245 = vmax.xlane.f32.xlu0 %v3244
    %v3246 = vpop.xlane.xlu0 %3245
    %v3247 = vsel %vm695, %v3241, -inf
    %3248 = vmax.xlane.f32.xlu0 %v3247
    %v3249 = vpop.xlane.xlu0 %3248
    %v3250 = vsub.f32 %v3144, %v3246
    %v3251 = vsub.f32 %v3241, %v3249
    %v3252 = vmul.f32 %v3250, 1.442695
    %v3253 = vpow.pop %v3252
    %v3254 = vmul.f32 %v3251, 1.442695
    %v3255 = vpow.pop %v3254
    %v3256 = vsel %vm695, %v3253, 0.0
    %3257 = vadd.xlane.f32.xlu0 %v3256
    %v3258 = vpop.xlane.xlu0 %3257
    %v3259 = vsel %vm695, %v3255, 0.0
    %3260 = vadd.xlane.f32.xlu0 %v3259
    %v3261 = vpop.xlane.xlu0 %3260
    %v3263 = vsel %vm695, %v3253, 0
    %3265 = vmatprep.subr.mxu0 0.0
    %3266 = vmatpush1.msra.mxu0 %v2972
    %3267 = vmatprep.subr.mxu0 0.0
    %3268 = vmatpush1.msra.mxu0 %v2977
    %3269 = vmatprep.subr.mxu0 0.0
    %3270 = vmatpush1.msra.mxu0 %v2982
    %3271 = vmatprep.subr.mxu0 0.0
    %3272 = vmatpush1.msra.mxu0 %v2987
    %3273 = vmatprep.subr.mxu0 0.0
    %3274 = vmatpush1.msra.mxu0 %v2992
    %3275 = vmatprep.subr.mxu0 0.0
    %3276 = vmatpush1.msra.mxu0 %v2997
    %3277 = vmatprep.subr.mxu0 0.0
    %3278 = vmatpush1.msra.mxu0 %v3002
    %3279 = vmatprep.subr.mxu0 0.0
    %3280 = vmatpush1.msra.mxu0 %v3007
    %3281 = vmatprep.subr.mxu0 0.0
    %3282 = vmatpush1.msra.mxu0 0.0
    %3283 = vmatprep.subr.mxu0 0.0
    %3284 = vmatpush1.msra.mxu0 0.0
    %3285 = vmatprep.subr.mxu0 0.0
    %3286 = vmatpush1.msra.mxu0 0.0
    %3287 = vmatprep.subr.mxu0 0.0
    %3288 = vmatpush1.msra.mxu0 0.0
    %3289 = vmatprep.subr.mxu0 0.0
    %3290 = vmatpush1.msra.mxu0 0.0
    %3291 = vmatprep.subr.mxu0 0.0
    %3292 = vmatpush1.msra.mxu0 0.0
    %3293 = vmatprep.subr.mxu0 0.0
    %3294 = vmatpush1.msra.mxu0 0.0
    %3295 = vmatprep.subr.mxu0 0.0
    %3296 = vmatpush1.msra.mxu0 0.0
    %3297 = vmatprep.subr.mxu0 0.0
    %3298 = vmatpush1.msra.mxu0 0.0
    %3299 = vmatprep.subr.mxu0 0.0
    %3300 = vmatpush1.msra.mxu0 0.0
    %3301 = vmatprep.subr.mxu0 0.0
    %3302 = vmatpush1.msra.mxu0 0.0
    %3303 = vmatprep.subr.mxu0 0.0
    %3304 = vmatpush1.msra.mxu0 0.0
    %3305 = vmatprep.subr.mxu0 0.0
    %3306 = vmatpush1.msra.mxu0 0.0
    %3307 = vmatprep.subr.mxu0 0.0
    %3308 = vmatpush1.msra.mxu0 0.0
    %3309 = vmatprep.subr.mxu0 0.0
    %3310 = vmatpush1.msra.mxu0 0.0
    %3311 = vmatprep.subr.mxu0 0.0
    %3312 = vmatpush1.msra.mxu0 0.0
    %3313 = vmatprep.subr.mxu0 0.0
    %3314 = vmatpush1.msra.mxu0 0.0
    %3315 = vmatprep.subr.mxu0 0.0
    %3316 = vmatpush1.msra.mxu0 0.0
    %3317 = vmatprep.subr.mxu0 0.0
    %3318 = vmatpush1.msra.mxu0 0.0
    %3319 = vmatprep.subr.mxu0 0.0
    %3320 = vmatpush1.msra.mxu0 0.0
    %3321 = vmatprep.subr.mxu0 0.0
    %3322 = vmatpush1.msra.mxu0 0.0
    %3323 = vmatprep.subr.mxu0 0.0
    %3324 = vmatpush1.msra.mxu0 0.0
    %3325 = vmatprep.subr.mxu0 0.0
    %3326 = vmatpush1.msra.mxu0 0.0
    %3327 = vmatprep.subr.mxu0 0.0
    %3328 = vmatpush1.msra.mxu0 0.0
    %3329 = vmatprep.mubr.f32.mxu0 0.0
    %3330 = vmatmul.mubr.f32.gmra.mrb[0].mxu0 %v3263
    %v3331 = vpop.f32.mrb[0].mxu0
    %v3332 = vadd.f32 0.0, %v3331
    %v3333 = vpop.f32.mrb[0].mxu0
    %3334 = vdwg.mxu0
    %v3336 = vsel %vm695, %v3255, 0
    %3338 = vmatprep.subr.mxu0 0.0
    %3339 = vmatpush1.msra.mxu0 %v3012
    %3340 = vmatprep.subr.mxu0 0.0
    %3341 = vmatpush1.msra.mxu0 %v3017
    %3342 = vmatprep.subr.mxu0 0.0
    %3343 = vmatpush1.msra.mxu0 %v3022
    %3344 = vmatprep.subr.mxu0 0.0
    %3345 = vmatpush1.msra.mxu0 %v3027
    %3346 = vmatprep.subr.mxu0 0.0
    %3347 = vmatpush1.msra.mxu0 %v3032
    %3348 = vmatprep.subr.mxu0 0.0
    %3349 = vmatpush1.msra.mxu0 %v3037
    %3350 = vmatprep.subr.mxu0 0.0
    %3351 = vmatpush1.msra.mxu0 %v3042
    %3352 = vmatprep.subr.mxu0 0.0
    %3353 = vmatpush1.msra.mxu0 %v3047
    %3354 = vmatprep.subr.mxu0 0.0
    %3355 = vmatpush1.msra.mxu0 0.0
    %3356 = vmatprep.subr.mxu0 0.0
    %3357 = vmatpush1.msra.mxu0 0.0
    %3358 = vmatprep.subr.mxu0 0.0
    %3359 = vmatpush1.msra.mxu0 0.0
    %3360 = vmatprep.subr.mxu0 0.0
    %3361 = vmatpush1.msra.mxu0 0.0
    %3362 = vmatprep.subr.mxu0 0.0
    %3363 = vmatpush1.msra.mxu0 0.0
    %3364 = vmatprep.subr.mxu0 0.0
    %3365 = vmatpush1.msra.mxu0 0.0
    %3366 = vmatprep.subr.mxu0 0.0
    %3367 = vmatpush1.msra.mxu0 0.0
    %3368 = vmatprep.subr.mxu0 0.0
    %3369 = vmatpush1.msra.mxu0 0.0
    %3370 = vmatprep.subr.mxu0 0.0
    %3371 = vmatpush1.msra.mxu0 0.0
    %3372 = vmatprep.subr.mxu0 0.0
    %3373 = vmatpush1.msra.mxu0 0.0
    %3374 = vmatprep.subr.mxu0 0.0
    %3375 = vmatpush1.msra.mxu0 0.0
    %3376 = vmatprep.subr.mxu0 0.0
    %3377 = vmatpush1.msra.mxu0 0.0
    %3378 = vmatprep.subr.mxu0 0.0
    %3379 = vmatpush1.msra.mxu0 0.0
    %3380 = vmatprep.subr.mxu0 0.0
    %3381 = vmatpush1.msra.mxu0 0.0
    %3382 = vmatprep.subr.mxu0 0.0
    %3383 = vmatpush1.msra.mxu0 0.0
    %3384 = vmatprep.subr.mxu0 0.0
    %3385 = vmatpush1.msra.mxu0 0.0
    %3386 = vmatprep.subr.mxu0 0.0
    %3387 = vmatpush1.msra.mxu0 0.0
    %3388 = vmatprep.subr.mxu0 0.0
    %3389 = vmatpush1.msra.mxu0 0.0
    %3390 = vmatprep.subr.mxu0 0.0
    %3391 = vmatpush1.msra.mxu0 0.0
    %3392 = vmatprep.subr.mxu0 0.0
    %3393 = vmatpush1.msra.mxu0 0.0
    %3394 = vmatprep.subr.mxu0 0.0
    %3395 = vmatpush1.msra.mxu0 0.0
    %3396 = vmatprep.subr.mxu0 0.0
    %3397 = vmatpush1.msra.mxu0 0.0
    %3398 = vmatprep.subr.mxu0 0.0
    %3399 = vmatpush1.msra.mxu0 0.0
    %3400 = vmatprep.subr.mxu0 0.0
    %3401 = vmatpush1.msra.mxu0 0.0
    %3402 = vmatprep.mubr.f32.mxu0 0.0
    %3403 = vmatmul.mubr.f32.gmra.mrb[0].mxu0 %v3336
    %v3404 = vpop.f32.mrb[0].mxu0
    %v3405 = vadd.f32 0.0, %v3404
    %v3406 = vpop.f32.mrb[0].mxu0
    %3407 = vdwg.mxu0
    %v3408 = vrcp.pop %v3258
    %v3409 = vrcp.pop %v3261
    %v3410 = vmul.f32 %v3332, %v3408
    %v3411 = vmul.f32 %v3405, %v3409
    %s3412 = scalar_lea.vmem %s3, 24
    %v3413 = vld [vmem:[%s3412] sm:$0xff]
    %v3415 = vsel %vm500, %v3410, 0
    %v3418 = vsel %vm500, %v3411, 0
    %3420 = vmatprep.subr.mxu0 0.0
    %3421 = vmatpush1.msra.mxu0 %v3413
    %3422 = vmatprep.subr.mxu0 0.0
    %3423 = vmatpush1.msra.mxu0 0.0
    %3424 = vmatprep.subr.mxu0 0.0
    %3425 = vmatpush1.msra.mxu0 0.0
    %3426 = vmatprep.subr.mxu0 0.0
    %3427 = vmatpush1.msra.mxu0 0.0
    %3428 = vmatprep.subr.mxu0 0.0
    %3429 = vmatpush1.msra.mxu0 0.0
    %3430 = vmatprep.subr.mxu0 0.0
    %3431 = vmatpush1.msra.mxu0 0.0
    %3432 = vmatprep.subr.mxu0 0.0
    %3433 = vmatpush1.msra.mxu0 0.0
    %3434 = vmatprep.subr.mxu0 0.0
    %3435 = vmatpush1.msra.mxu0 0.0
    %3436 = vmatprep.subr.mxu0 0.0
    %3437 = vmatpush1.msra.mxu0 0.0
    %3438 = vmatprep.subr.mxu0 0.0
    %3439 = vmatpush1.msra.mxu0 0.0
    %3440 = vmatprep.subr.mxu0 0.0
    %3441 = vmatpush1.msra.mxu0 0.0
    %3442 = vmatprep.subr.mxu0 0.0
    %3443 = vmatpush1.msra.mxu0 0.0
    %3444 = vmatprep.subr.mxu0 0.0
    %3445 = vmatpush1.msra.mxu0 0.0
    %3446 = vmatprep.subr.mxu0 0.0
    %3447 = vmatpush1.msra.mxu0 0.0
    %3448 = vmatprep.subr.mxu0 0.0
    %3449 = vmatpush1.msra.mxu0 0.0
    %3450 = vmatprep.subr.mxu0 0.0
    %3451 = vmatpush1.msra.mxu0 0.0
    %3452 = vmatprep.subr.mxu0 0.0
    %3453 = vmatpush1.msra.mxu0 0.0
    %3454 = vmatprep.subr.mxu0 0.0
    %3455 = vmatpush1.msra.mxu0 0.0
    %3456 = vmatprep.subr.mxu0 0.0
    %3457 = vmatpush1.msra.mxu0 0.0
    %3458 = vmatprep.subr.mxu0 0.0
    %3459 = vmatpush1.msra.mxu0 0.0
    %3460 = vmatprep.subr.mxu0 0.0
    %3461 = vmatpush1.msra.mxu0 0.0
    %3462 = vmatprep.subr.mxu0 0.0
    %3463 = vmatpush1.msra.mxu0 0.0
    %3464 = vmatprep.subr.mxu0 0.0
    %3465 = vmatpush1.msra.mxu0 0.0
    %3466 = vmatprep.subr.mxu0 0.0
    %3467 = vmatpush1.msra.mxu0 0.0
    %3468 = vmatprep.subr.mxu0 0.0
    %3469 = vmatpush1.msra.mxu0 0.0
    %3470 = vmatprep.subr.mxu0 0.0
    %3471 = vmatpush1.msra.mxu0 0.0
    %3472 = vmatprep.subr.mxu0 0.0
    %3473 = vmatpush1.msra.mxu0 0.0
    %3474 = vmatprep.subr.mxu0 0.0
    %3475 = vmatpush1.msra.mxu0 0.0
    %3476 = vmatprep.subr.mxu0 0.0
    %3477 = vmatpush1.msra.mxu0 0.0
    %3478 = vmatprep.subr.mxu0 0.0
    %3479 = vmatpush1.msra.mxu0 0.0
    %3480 = vmatprep.subr.mxu0 0.0
    %3481 = vmatpush1.msra.mxu0 0.0
    %3482 = vmatprep.subr.mxu0 0.0
    %3483 = vmatpush1.msra.mxu0 0.0
    %3484 = vmatprep.mubr.f32.mxu0 0.0
    %3485 = vmatmul.mubr.f32.gmra.mrb[0].mxu0 %v3415
    %v3486 = vpop.f32.mrb[0].mxu0
    %v3487 = vadd.f32 0.0, %v3486
    %v3488 = vpop.f32.mrb[0].mxu0
    %3489 = vmatprep.mubr.f32.mxu0 0.0
    %3490 = vmatmul.mubr.f32.gmra.mrb[0].mxu0 %v3418
    %v3491 = vpop.f32.mrb[0].mxu0
    %v3492 = vadd.f32 0.0, %v3491
    %v3493 = vpop.f32.mrb[0].mxu0
    %3494 = vdwg.mxu0
    %v3495 = vadd.f32 %v2644, %v3487
    %v3496 = vadd.f32 %v2645, %v3492
    %v3497 = vadd.f32 %v24, %v3495
    %v3498 = vadd.f32 %v25, %v3496
    %v3499 = vlaneseq
    %v3500 = vshrl.u32 %v3499, 7
    %v3501 = vsub.s32 0, %v3500
    %v3502 = vrot.slane %v42, %v3501
    %v3503 = vadd.f32 %v3497, %v3502
    %v3504 = vadd.f32 %v3498, %v3502
    %v3505 = vsel %vm54, %v3503, 0.0
    %3506 = vadd.xlane.f32.xlu0 %v3505
    %v3507 = vpop.xlane.xlu0 %3506
    %v3508 = vsel %vm54, %v3504, 0.0
    %3509 = vadd.xlane.f32.xlu0 %v3508
    %v3510 = vpop.xlane.xlu0 %3509
    %v3511 = vrcp.pop 32.0
    %v3512 = vmul.f32 %v3507, %v3511
    %v3513 = vmul.f32 %v3510, %v3511
    %v3514 = vsub.f32 %v3503, %v3512
    %v3515 = vsub.f32 %v3504, %v3513
    %v3516 = vmul.f32 %v3514, %v3514
    %v3517 = vmul.f32 %v3515, %v3515
    %v3518 = vsel %vm54, %v3516, 0.0
    %3519 = vadd.xlane.f32.xlu0 %v3518
    %v3520 = vpop.xlane.xlu0 %3519
    %v3521 = vsel %vm54, %v3517, 0.0
    %3522 = vadd.xlane.f32.xlu0 %v3521
    %v3523 = vpop.xlane.xlu0 %3522
    %v3524 = vmul.f32 %v3520, %v3511
    %v3525 = vmul.f32 %v3523, %v3511
    %v3526 = vadd.f32 %v3524, 1e-05
    %v3527 = vadd.f32 %v3525, 1e-05
    %v3528 = vrsqrt.pop %v3526
    %v3529 = vrsqrt.pop %v3527
    %v3530 = vmul.f32 %v3514, %v3528
    %v3531 = vmul.f32 %v3515, %v3529
    %v3532 = vlaneseq
    %v3533 = vshrl.u32 %v3532, 7
    %v3534 = vsub.s32 1, %v3533
    %v3535 = vrot.slane %v42, %v3534
    %v3536 = vmul.f32 %v3530, %v3535
    %v3537 = vmul.f32 %v3531, %v3535
    %v3538 = vlaneseq
    %v3539 = vshrl.u32 %v3538, 7
    %v3540 = vsub.s32 2, %v3539
    %v3541 = vrot.slane %v42, %v3540
    %v3542 = vadd.f32 %v3536, %v3541
    %v3543 = vadd.f32 %v3537, %v3541
    %3544 = vst.msk [vmem:[#allocation2] sm:$0xff] %vm54, %v3542
    %3545 = vst.msk [vmem:[#allocation2 + $0x8] sm:$0xff] %vm54, %v3543
    // Predicated region
    $region26: #{tpu_custom_call.1} parent=1 // pred_check
      _
    $region27: #{tpu_custom_call.1} parent=1 // pred_check_branch
      %3547 = sbr.rel (0) target = $region29
    $region28: #{tpu_custom_call.1} parent=1 // pred_region
      %s3549 = ssub.s32 256, 256
      %3550 = vsyncadd [#allocation3], %s3549
      %s3551 = sshll.u32 [#allocation2], 4
      %s3552 = int_to_ptr.vmem [resolvable:$true] %s3551
      %3557 = dma.vmem_to_hbm [thread:$0]  %s3552, 256, %s6, [#allocation3], 128, 128, 8
    $region29: #{tpu_custom_call.1} parent=1 // pred_fallthru
      _
    // Predicated region
    $region30: #{tpu_custom_call.1} parent=1 // pred_check
      _
    $region31: #{tpu_custom_call.1} parent=1 // pred_check_branch
      %3559 = sbr.rel (0) target = $region33
    $region32: #{tpu_custom_call.1} parent=1 // pred_region
      %3560 = dma.done [#allocation3], 256
    $region33: #{tpu_custom_call.1} parent=1 // pred_fallthru
      _
    %3561 = vsyncpa [#allocation3], 1

</llo_original>
